<compile_context>
chip_gen: v7x
topology: tpu7x:2x2x1
jax: 0.10.0
libtpu: 0.0.40
codegen_flags: <defaults>
</compile_context>

<pallas_src>
import math
import jax
import jax.numpy as jnp
from jax import lax
from jax.experimental import pallas as pl
from jax.experimental.pallas import tpu as pltpu

# ----------------------------- config (small) -------------------------------
B = 2              # batch
S_DEC = 8          # decoder sequence length
S_ENC = 8          # encoder sequence length
D_EMB = 32         # d_embed
NUM_HEADS = 4
HEAD_DIM = D_EMB // NUM_HEADS
FFN = 64           # feedforward_dim
EPS = 1e-5
MASK_VALUE = -1e30  # finite masked_fill value (exp underflows to exactly 0)

X_ROWS = B * S_DEC
E_ROWS = B * S_ENC

# ------------------- packed-slab layouts (static, shared) --------------------
def _offsets(segs):
    out, off = {}, 0
    for name, sz in segs:
        out[name] = (off, sz)
        off += sz
    return out, off

# (D_EMB, W_TOTAL) weight slab: every matrix whose contraction dim is D_EMB.
W_SEGS = [("sa_wqkv", 3 * D_EMB), ("sa_wo", D_EMB), ("ca_wq", D_EMB),
          ("ca_wkv", 2 * D_EMB), ("ca_wo", D_EMB), ("w1", FFN)]
W_OFF, W_TOTAL = _offsets(W_SEGS)          # (32, 320)

# (1, VEC_TOTAL) row: all biases and LayerNorm gammas/betas.
VEC_SEGS = [("ln0_g", D_EMB), ("ln0_b", D_EMB), ("sa_bqkv", 3 * D_EMB),
            ("sa_bo", D_EMB), ("ln1_g", D_EMB), ("ln1_b", D_EMB),
            ("ca_bq", D_EMB), ("ca_bkv", 2 * D_EMB), ("ca_bo", D_EMB),
            ("ln2_g", D_EMB), ("ln2_b", D_EMB), ("b1", FFN), ("b2", D_EMB)]
VEC_OFF, VEC_TOTAL = _offsets(VEC_SEGS)    # (1, 544)


# ------------------------------ Pallas kernel --------------------------------
def decoder_block_kernel(acts_ref, mbias_ref, w_ref, w2_ref, vec_ref, out_ref):
    def wseg(name):
        off, sz = W_OFF[name]
        return w_ref[:, off:off + sz]

    def vseg(name):
        off, sz = VEC_OFF[name]
        return vec_ref[:, off:off + sz]

    def ln(v, gname, bname):
        # one-pass LN: var = E[x^2] - mu^2 (one XLU reduce fewer per LN)
        mu = jnp.mean(v, axis=-1, keepdims=True)
        var = jnp.mean(v * v, axis=-1, keepdims=True) - mu * mu
        return (v - mu) * lax.rsqrt(var + EPS) * vseg(gname) + vseg(bname)

    def softmax(s):
        s = s - jnp.max(s, axis=-1, keepdims=True)
        p = jnp.exp(s)
        # divide -> EUP reciprocal slot (VALU otherwise pays the divide)
        return p * pl.reciprocal(jnp.sum(p, axis=-1, keepdims=True), approx=True)

    def mha(q3, kv3, k_off, v_off, bias):
        # q3: (B, Sq, >=D), kv3: (B, Sk, >=2D), bias: (B, Sq, Sk) additive.
        # Batched over B; only the head split remains a (4-iter) Python loop.
        heads = []
        for h in range(NUM_HEADS):
            c0 = h * HEAD_DIM
            qh = q3[:, :, c0:c0 + HEAD_DIM]
            kh = kv3[:, :, k_off + c0:k_off + c0 + HEAD_DIM]
            vh = kv3[:, :, v_off + c0:v_off + c0 + HEAD_DIM]
            # K^T folded into contraction dims; scale already folded into Wq;
            # mask applied as a single broadcast add.
            s = jnp.einsum("bqd,bkd->bqk", qh, kh,
                           preferred_element_type=jnp.float32) + bias
            heads.append(jnp.einsum("bqk,bkd->bqd", softmax(s), vh,
                                    preferred_element_type=jnp.float32))
        return jnp.concatenate(heads, axis=-1)          # (B, Sq, D)

    x = acts_ref[0:X_ROWS, :]                           # (B*S_dec, D)
    enc = acts_ref[X_ROWS:X_ROWS + E_ROWS, :]           # (B*S_enc, D)
    mb = mbias_ref[...]                                 # (B, S_dec, S_dec+S_enc)
    dbias = mb[:, :, :S_DEC]                            # additive self-attn mask
    ebias = mb[:, :, S_DEC:]                            # additive cross-attn mask

    # Cross-attention K/V of the (un-normalized) encoder output does not
    # depend on the decoder state: one fused lane-dense (D, 2D) matmul.
    kv_enc = jnp.dot(enc, wseg("ca_wkv"),
                     preferred_element_type=jnp.float32) + vseg("ca_bkv")
    kv3 = kv_enc.reshape(B, S_ENC, 2 * D_EMB)           # leading-dim split: free

    # -------- sublayer 1: pre-LN masked self-attention + residual --------
    xn = ln(x, "ln0_g", "ln0_b")
    qkv = jnp.dot(xn, wseg("sa_wqkv"),
                  preferred_element_type=jnp.float32) + vseg("sa_bqkv")
    qkv3 = qkv.reshape(B, S_DEC, 3 * D_EMB)
    ctx = mha(qkv3, qkv3, D_EMB, 2 * D_EMB, dbias).reshape(X_ROWS, D_EMB)
    x = x + jnp.dot(ctx, wseg("sa_wo"),
                    preferred_element_type=jnp.float32) + vseg("sa_bo")

    # -------- sublayer 2: pre-LN cross-attention + residual --------
    xn = ln(x, "ln1_g", "ln1_b")
    q_all = jnp.dot(xn, wseg("ca_wq"),
                    preferred_element_type=jnp.float32) + vseg("ca_bq")
    q3 = q_all.reshape(B, S_DEC, D_EMB)
    ctx = mha(q3, kv3, 0, D_EMB, ebias).reshape(X_ROWS, D_EMB)
    x = x + jnp.dot(ctx, wseg("ca_wo"),
                    preferred_element_type=jnp.float32) + vseg("ca_bo")

    # -------- sublayer 3: pre-LN feed-forward + residual --------
    xn = ln(x, "ln2_g", "ln2_b")
    h1 = jnp.maximum(
        jnp.dot(xn, wseg("w1"), preferred_element_type=jnp.float32)
        + vseg("b1"), 0.0)
    x = x + jnp.dot(h1, w2_ref[...],
                    preferred_element_type=jnp.float32) + vseg("b2")

    # D_EMB=32 (<128 lanes) store; repacking to (4,128) trades an XLU relayout
    # for unmasked vst and is a wash at 2 KiB, so the natural shape is kept.
    out_ref[...] = x.astype(out_ref.dtype)


def _full_spec(shape):
    rank = len(shape)
    return pl.BlockSpec(shape, lambda i, _r=rank: (0,) * _r)


# ------------------------------ host wrapper ----------------------------------
def decoder_block_forward(encoder_output, encoder_mask, decoder_input,
                          decoder_mask, p):
    """DecoderBlock.forward(encoder_output, encoder_mask, decoder_input,
    decoder_mask) in eval mode. Masks: 1.0/True = masked."""
    scale = 1.0 / math.sqrt(HEAD_DIM)

    x = decoder_input.reshape(X_ROWS, D_EMB).astype(jnp.float32)
    enc = encoder_output.reshape(E_ROWS, D_EMB).astype(jnp.float32)
    acts = jnp.concatenate([x, enc], axis=0)                       # (32, 32)

    # masks -> additive bias, packed along the last axis into one slab
    dbias = jnp.where(decoder_mask.astype(bool), MASK_VALUE, 0.0).astype(jnp.float32)
    ebias = jnp.where(encoder_mask.astype(bool), MASK_VALUE, 0.0).astype(jnp.float32)
    mbias = jnp.concatenate([dbias, ebias], axis=-1)               # (B, 8, 16)

    # Host-side parameter transforms (one-time, genuinely free):
    #  * 1/sqrt(head_dim) folded into Q projections,
    #  * QKV / KV fusion into lane-dense tiles,
    #  * all (D, *) weights packed into one slab; all biases/LN params into one row.
    w_parts = {
        "sa_wqkv": jnp.concatenate([p["sa_Wq"] * scale, p["sa_Wk"], p["sa_Wv"]], axis=1),
        "sa_wo": p["sa_Wo"],
        "ca_wq": p["ca_Wq"] * scale,
        "ca_wkv": jnp.concatenate([p["ca_Wk"], p["ca_Wv"]], axis=1),
        "ca_wo": p["ca_Wo"],
        "w1": p["W1"],
    }
    w_slab = jnp.concatenate([w_parts[n].astype(jnp.float32) for n, _ in W_SEGS],
                             axis=1)                               # (32, 320)
    assert w_slab.shape == (D_EMB, W_TOTAL)

    vec_parts = {
        "ln0_g": p["ln0_g"], "ln0_b": p["ln0_b"],
        "sa_bqkv": jnp.concatenate([p["sa_bq"] * scale, p["sa_bk"], p["sa_bv"]]),
        "sa_bo": p["sa_bo"],
        "ln1_g": p["ln1_g"], "ln1_b": p["ln1_b"],
        "ca_bq": p["ca_bq"] * scale,
        "ca_bkv": jnp.concatenate([p["ca_bk"], p["ca_bv"]]),
        "ca_bo": p["ca_bo"],
        "ln2_g": p["ln2_g"], "ln2_b": p["ln2_b"],
        "b1": p["b1"], "b2": p["b2"],
    }
    vec_slab = jnp.concatenate(
        [vec_parts[n].astype(jnp.float32) for n, _ in VEC_SEGS]).reshape(1, VEC_TOTAL)

    operands = (acts, mbias, w_slab, p["W2"].astype(jnp.float32), vec_slab)

    # grid=(1,): v5e/v6e have one TensorCore, so a batch grid is only a serial
    # loop with per-step overhead.  On v7x, grid=(B,) with
    # dimension_semantics=("parallel",) and per-batch index_maps on
    # acts/mbias/out would place the two batch elements on the two TensorCores.
    out = pl.pallas_call(
        decoder_block_kernel,
        out_shape=jax.ShapeDtypeStruct((X_ROWS, D_EMB), jnp.float32),
        grid=(1,),
        in_specs=[_full_spec(op.shape) for op in operands],
        out_specs=_full_spec((X_ROWS, D_EMB)),
        compiler_params=pltpu.CompilerParams(
            dimension_semantics=("arbitrary",)),
    )(*operands)
    return out.reshape(B, S_DEC, D_EMB)


# --------------------------- pure-JAX reference -------------------------------
def _ref_mha(q_in, kv_in, mask, Wq, bq, Wk, bk, Wv, bv, Wo, bo):
    bsz, sq, _ = q_in.shape
    sk = kv_in.shape[1]
    q = (q_in @ Wq + bq).reshape(bsz, sq, NUM_HEADS, HEAD_DIM).transpose(0, 2, 1, 3)
    k = (kv_in @ Wk + bk).reshape(bsz, sk, NUM_HEADS, HEAD_DIM).transpose(0, 2, 1, 3)
    v = (kv_in @ Wv + bv).reshape(bsz, sk, NUM_HEADS, HEAD_DIM).transpose(0, 2, 1, 3)
    s = jnp.einsum("bhqd,bhkd->bhqk", q, k) / math.sqrt(HEAD_DIM)
    s = jnp.where(mask[:, None, :, :] > 0, -jnp.inf, s)   # masked_fill semantics
    w = jax.nn.softmax(s, axis=-1)
    ctx = jnp.einsum("bhqk,bhkd->bhqd", w, v)
    ctx = ctx.transpose(0, 2, 1, 3).reshape(bsz, sq, D_EMB)
    return ctx @ Wo + bo


def ref_forward(encoder_output, encoder_mask, decoder_input, decoder_mask, p):
    def ln(v, g, b):
        mu = jnp.mean(v, axis=-1, keepdims=True)
        var = jnp.mean((v - mu) ** 2, axis=-1, keepdims=True)
        return (v - mu) / jnp.sqrt(var + EPS) * g + b

    x = decoder_input
    xn = ln(x, p["ln0_g"], p["ln0_b"])
    x = x + _ref_mha(xn, xn, decoder_mask,
                     p["sa_Wq"], p["sa_bq"], p["sa_Wk"], p["sa_bk"],
                     p["sa_Wv"], p["sa_bv"], p["sa_Wo"], p["sa_bo"])
    xn = ln(x, p["ln1_g"], p["ln1_b"])
    x = x + _ref_mha(xn, encoder_output, encoder_mask,
                     p["ca_Wq"], p["ca_bq"], p["ca_Wk"], p["ca_bk"],
                     p["ca_Wv"], p["ca_bv"], p["ca_Wo"], p["ca_bo"])
    xn = ln(x, p["ln2_g"], p["ln2_b"])
    x = x + (jnp.maximum(xn @ p["W1"] + p["b1"], 0.0) @ p["W2"] + p["b2"])
    return x


# ------------------------------- params init ----------------------------------
def init_params(key):
    ks = jax.random.split(key, 24)
    normal = lambda k, shape: (0.08 * jax.random.normal(k, shape)).astype(jnp.float32)
    small = lambda k, shape: (0.02 * jax.random.normal(k, shape)).astype(jnp.float32)
    return {
        # masked self-attention
        "sa_Wq": normal(ks[0], (D_EMB, D_EMB)), "sa_bq": small(ks[1], (D_EMB,)),
        "sa_Wk": normal(ks[2], (D_EMB, D_EMB)), "sa_bk": small(ks[3], (D_EMB,)),
        "sa_Wv": normal(ks[4], (D_EMB, D_EMB)), "sa_bv": small(ks[5], (D_EMB,)),
        "sa_Wo": normal(ks[6], (D_EMB, D_EMB)), "sa_bo": small(ks[7], (D_EMB,)),
        # cross-attention
        "ca_Wq": normal(ks[8], (D_EMB, D_EMB)), "ca_bq": small(ks[9], (D_EMB,)),
        "ca_Wk": normal(ks[10], (D_EMB, D_EMB)), "ca_bk": small(ks[11], (D_EMB,)),
        "ca_Wv": normal(ks[12], (D_EMB, D_EMB)), "ca_bv": small(ks[13], (D_EMB,)),
        "ca_Wo": normal(ks[14], (D_EMB, D_EMB)), "ca_bo": small(ks[15], (D_EMB,)),
        # feed-forward
        "W1": normal(ks[16], (D_EMB, FFN)), "b1": small(ks[17], (FFN,)),
        "W2": normal(ks[18], (FFN, D_EMB)), "b2": small(ks[19], (D_EMB,)),
        # layer norms of the 3 residual connections
        "ln0_g": 1.0 + small(ks[20], (D_EMB,)), "ln0_b": small(ks[21], (D_EMB,)),
        "ln1_g": 1.0 + small(ks[22], (D_EMB,)), "ln1_b": small(ks[23], (D_EMB,)),
        "ln2_g": jnp.ones((D_EMB,), jnp.float32),
        "ln2_b": jnp.zeros((D_EMB,), jnp.float32),
    }


if __name__ == "__main__":
    key = jax.random.PRNGKey(0)
    pkey, ekey, dkey = jax.random.split(key, 3)
    params = init_params(pkey)
    encoder_output = (0.5 * jax.random.normal(ekey, (B, S_ENC, D_EMB))).astype(jnp.float32)
    decoder_input = (0.5 * jax.random.normal(dkey, (B, S_DEC, D_EMB))).astype(jnp.float32)

    # causal decoder self-attention mask (1.0 = masked), shared across batch
    causal = jnp.triu(jnp.ones((S_DEC, S_DEC), jnp.float32), k=1)
    decoder_mask = jnp.broadcast_to(causal, (B, S_DEC, S_DEC))
    # encoder padding mask: last two encoder positions of batch element 1 masked
    encoder_mask = jnp.zeros((B, S_DEC, S_ENC), jnp.float32)
    encoder_mask = encoder_mask.at[1, :, S_ENC - 2:].set(1.0)

    out = jax.block_until_ready(decoder_block_forward(
        encoder_output, encoder_mask, decoder_input, decoder_mask, params))
    ref = jax.block_until_ready(ref_forward(
        encoder_output, encoder_mask, decoder_input, decoder_mask, params))

    assert out.shape == (B, S_DEC, D_EMB)
    assert bool(jnp.all(jnp.isfinite(out)))
    err = float(jnp.max(jnp.abs(out - ref)))
    assert err < 2e-2, f"max abs error too large: {err}"
    print("KERNEL_OK")
</pallas_src>

<mosaic_0001>
module attributes {stable_mosaic.version = 11 : i64} {
  func.func @decoder_block_kernel(%arg0: i32, %arg1: memref<32x32xf32, #tpu.memory_space<vmem>>, %arg2: memref<2x8x16xf32, #tpu.memory_space<vmem>>, %arg3: memref<32x320xf32, #tpu.memory_space<vmem>>, %arg4: memref<64x32xf32, #tpu.memory_space<vmem>>, %arg5: memref<1x544xf32, #tpu.memory_space<vmem>>, %arg6: memref<16x32xf32, #tpu.memory_space<vmem>>) attributes {dimension_semantics = [#tpu.dimension_semantics<arbitrary>], iteration_bounds = array<i64: 1>, scalar_prefetch = 0 : i64, scratch_operands = 0 : i64, tpu.core_type = #tpu.core_type<tc>, window_params = [{pipeline_mode = #tpu.pipeline_mode<synchronous>, transform_indices = @transform_0, window_bounds = array<i64: 32, 32>}, {pipeline_mode = #tpu.pipeline_mode<synchronous>, transform_indices = @transform_1, window_bounds = array<i64: 2, 8, 16>}, {pipeline_mode = #tpu.pipeline_mode<synchronous>, transform_indices = @transform_2, window_bounds = array<i64: 32, 320>}, {pipeline_mode = #tpu.pipeline_mode<synchronous>, transform_indices = @transform_3, window_bounds = array<i64: 64, 32>}, {pipeline_mode = #tpu.pipeline_mode<synchronous>, transform_indices = @transform_4, window_bounds = array<i64: 1, 544>}, {pipeline_mode = #tpu.pipeline_mode<synchronous>, transform_indices = @transform_5, window_bounds = array<i64: 16, 32>}]} {
    %c0 = arith.constant 0 : index
    %c0_0 = arith.constant 0 : index
    %0 = vector.load %arg1[%c0, %c0_0] : memref<32x32xf32, #tpu.memory_space<vmem>>, vector<16x32xf32>
    %c16 = arith.constant 16 : index
    %c0_1 = arith.constant 0 : index
    %1 = vector.load %arg1[%c16, %c0_1] : memref<32x32xf32, #tpu.memory_space<vmem>>, vector<16x32xf32>
    %c0_2 = arith.constant 0 : index
    %c0_3 = arith.constant 0 : index
    %c0_4 = arith.constant 0 : index
    %2 = vector.load %arg2[%c0_2, %c0_3, %c0_4] : memref<2x8x16xf32, #tpu.memory_space<vmem>>, vector<2x8x16xf32>
    %3 = vector.extract_strided_slice %2 {offsets = [0, 0, 0], sizes = [2, 8, 8], strides = [1, 1, 1]} : vector<2x8x16xf32> to vector<2x8x8xf32>
    %4 = vector.extract_strided_slice %2 {offsets = [0, 0, 8], sizes = [2, 8, 8], strides = [1, 1, 1]} : vector<2x8x16xf32> to vector<2x8x8xf32>
    %c0_5 = arith.constant 0 : index
    %c160 = arith.constant 160 : index
    %5 = vector.load %arg3[%c0_5, %c160] : memref<32x320xf32, #tpu.memory_space<vmem>>, vector<32x64xf32>
    %cst = arith.constant dense<0.000000e+00> : vector<16x64xf32>
    %6 = tpu.matmul %1, %5, %cst {dimension_numbers = #tpu.dot_dimension_numbers<[1], [0], [0], [1], [0, 0, 1, 1], [], []>} : vector<16x32xf32>, vector<32x64xf32>, vector<16x64xf32> -> vector<16x64xf32>
    %c0_6 = arith.constant 0 : index
    %c288 = arith.constant 288 : index
    %7 = vector.load %arg5[%c0_6, %c288] : memref<1x544xf32, #tpu.memory_space<vmem>>, vector<1x64xf32>
    %8 = vector.broadcast %7 : vector<1x64xf32> to vector<16x64xf32>
    %9 = arith.addf %6, %8 : vector<16x64xf32>
    %10 = vector.shape_cast %9 : vector<16x64xf32> to vector<2x8x64xf32>
    %cst_7 = arith.constant dense<0.000000e+00> : vector<16xf32>
    %11 = vector.multi_reduction <add>, %0, %cst_7 [1] : vector<16x32xf32> to vector<16xf32>
    %12 = vector.shape_cast %11 : vector<16xf32> to vector<16x1xf32>
    %cst_8 = arith.constant 3.200000e+01 : f32
    %13 = vector.broadcast %cst_8 : f32 to vector<16x1xf32>
    %14 = arith.divf %12, %13 : vector<16x1xf32>
    %15 = arith.mulf %0, %0 : vector<16x32xf32>
    %cst_9 = arith.constant dense<0.000000e+00> : vector<16xf32>
    %16 = vector.multi_reduction <add>, %15, %cst_9 [1] : vector<16x32xf32> to vector<16xf32>
    %17 = vector.shape_cast %16 : vector<16xf32> to vector<16x1xf32>
    %cst_10 = arith.constant 3.200000e+01 : f32
    %18 = vector.broadcast %cst_10 : f32 to vector<16x1xf32>
    %19 = arith.divf %17, %18 : vector<16x1xf32>
    %20 = arith.mulf %14, %14 : vector<16x1xf32>
    %21 = arith.subf %19, %20 : vector<16x1xf32>
    %22 = vector.broadcast %14 : vector<16x1xf32> to vector<16x32xf32>
    %23 = arith.subf %0, %22 : vector<16x32xf32>
    %cst_11 = arith.constant 9.99999974E-6 : f32
    %24 = vector.broadcast %cst_11 : f32 to vector<16x1xf32>
    %25 = arith.addf %21, %24 : vector<16x1xf32>
    %26 = math.rsqrt %25 : vector<16x1xf32>
    %27 = vector.broadcast %26 : vector<16x1xf32> to vector<16x32xf32>
    %28 = arith.mulf %23, %27 : vector<16x32xf32>
    %c0_12 = arith.constant 0 : index
    %c0_13 = arith.constant 0 : index
    %29 = vector.load %arg5[%c0_12, %c0_13] : memref<1x544xf32, #tpu.memory_space<vmem>>, vector<1x32xf32>
    %30 = vector.broadcast %29 : vector<1x32xf32> to vector<16x32xf32>
    %31 = arith.mulf %28, %30 : vector<16x32xf32>
    %c0_14 = arith.constant 0 : index
    %c32 = arith.constant 32 : index
    %32 = vector.load %arg5[%c0_14, %c32] : memref<1x544xf32, #tpu.memory_space<vmem>>, vector<1x32xf32>
    %33 = vector.broadcast %32 : vector<1x32xf32> to vector<16x32xf32>
    %34 = arith.addf %31, %33 : vector<16x32xf32>
    %c0_15 = arith.constant 0 : index
    %c0_16 = arith.constant 0 : index
    %35 = vector.load %arg3[%c0_15, %c0_16] : memref<32x320xf32, #tpu.memory_space<vmem>>, vector<32x96xf32>
    %cst_17 = arith.constant dense<0.000000e+00> : vector<16x96xf32>
    %36 = tpu.matmul %34, %35, %cst_17 {dimension_numbers = #tpu.dot_dimension_numbers<[1], [0], [0], [1], [0, 0, 1, 1], [], []>} : vector<16x32xf32>, vector<32x96xf32>, vector<16x96xf32> -> vector<16x96xf32>
    %c0_18 = arith.constant 0 : index
    %c64 = arith.constant 64 : index
    %37 = vector.load %arg5[%c0_18, %c64] : memref<1x544xf32, #tpu.memory_space<vmem>>, vector<1x96xf32>
    %38 = vector.broadcast %37 : vector<1x96xf32> to vector<16x96xf32>
    %39 = arith.addf %36, %38 : vector<16x96xf32>
    %40 = vector.shape_cast %39 : vector<16x96xf32> to vector<2x8x96xf32>
    %41 = vector.extract_strided_slice %40 {offsets = [0, 0, 0], sizes = [2, 8, 8], strides = [1, 1, 1]} : vector<2x8x96xf32> to vector<2x8x8xf32>
    %42 = vector.extract_strided_slice %40 {offsets = [0, 0, 32], sizes = [2, 8, 8], strides = [1, 1, 1]} : vector<2x8x96xf32> to vector<2x8x8xf32>
    %43 = vector.extract_strided_slice %40 {offsets = [0, 0, 64], sizes = [2, 8, 8], strides = [1, 1, 1]} : vector<2x8x96xf32> to vector<2x8x8xf32>
    "tpu.trace_start"() <{level = 10 : i32, message = "bqd,bkd->bqk"}> : () -> ()
    %cst_19 = arith.constant dense<0.000000e+00> : vector<2x8x8xf32>
    %44 = tpu.matmul %41, %42, %cst_19 {dimension_numbers = #tpu.dot_dimension_numbers<[2], [2], [1], [1], [0, 0, 0, 1, 1, 1], [0], [0]>} : vector<2x8x8xf32>, vector<2x8x8xf32>, vector<2x8x8xf32> -> vector<2x8x8xf32>
    "tpu.trace_stop"() : () -> ()
    %45 = arith.addf %44, %3 : vector<2x8x8xf32>
    %cst_20 = arith.constant dense<0xFF800000> : vector<2x8xf32>
    %46 = vector.multi_reduction <maximumf>, %45, %cst_20 [2] : vector<2x8x8xf32> to vector<2x8xf32>
    %47 = vector.shape_cast %46 : vector<2x8xf32> to vector<2x8x1xf32>
    %48 = vector.broadcast %47 : vector<2x8x1xf32> to vector<2x8x8xf32>
    %49 = arith.subf %45, %48 : vector<2x8x8xf32>
    %50 = math.exp %49 : vector<2x8x8xf32>
    %cst_21 = arith.constant dense<0.000000e+00> : vector<2x8xf32>
    %51 = vector.multi_reduction <add>, %50, %cst_21 [2] : vector<2x8x8xf32> to vector<2x8xf32>
    %52 = vector.shape_cast %51 : vector<2x8xf32> to vector<2x8x1xf32>
    %53 = tpu.reciprocal %52 {approx = true} : vector<2x8x1xf32> -> vector<2x8x1xf32>
    %54 = vector.broadcast %53 : vector<2x8x1xf32> to vector<2x8x8xf32>
    %55 = arith.mulf %50, %54 : vector<2x8x8xf32>
    "tpu.trace_start"() <{level = 10 : i32, message = "bqk,bkd->bqd"}> : () -> ()
    %cst_22 = arith.constant dense<0.000000e+00> : vector<2x8x8xf32>
    %56 = tpu.matmul %55, %43, %cst_22 {dimension_numbers = #tpu.dot_dimension_numbers<[2], [1], [1], [2], [0, 0, 0, 1, 1, 2], [0], [0]>} : vector<2x8x8xf32>, vector<2x8x8xf32>, vector<2x8x8xf32> -> vector<2x8x8xf32>
    "tpu.trace_stop"() : () -> ()
    %57 = vector.extract_strided_slice %40 {offsets = [0, 0, 8], sizes = [2, 8, 8], strides = [1, 1, 1]} : vector<2x8x96xf32> to vector<2x8x8xf32>
    %58 = vector.extract_strided_slice %40 {offsets = [0, 0, 40], sizes = [2, 8, 8], strides = [1, 1, 1]} : vector<2x8x96xf32> to vector<2x8x8xf32>
    %59 = vector.extract_strided_slice %40 {offsets = [0, 0, 72], sizes = [2, 8, 8], strides = [1, 1, 1]} : vector<2x8x96xf32> to vector<2x8x8xf32>
    "tpu.trace_start"() <{level = 10 : i32, message = "bqd,bkd->bqk"}> : () -> ()
    %cst_23 = arith.constant dense<0.000000e+00> : vector<2x8x8xf32>
    %60 = tpu.matmul %57, %58, %cst_23 {dimension_numbers = #tpu.dot_dimension_numbers<[2], [2], [1], [1], [0, 0, 0, 1, 1, 1], [0], [0]>} : vector<2x8x8xf32>, vector<2x8x8xf32>, vector<2x8x8xf32> -> vector<2x8x8xf32>
    "tpu.trace_stop"() : () -> ()
    %61 = arith.addf %60, %3 : vector<2x8x8xf32>
    %cst_24 = arith.constant dense<0xFF800000> : vector<2x8xf32>
    %62 = vector.multi_reduction <maximumf>, %61, %cst_24 [2] : vector<2x8x8xf32> to vector<2x8xf32>
    %63 = vector.shape_cast %62 : vector<2x8xf32> to vector<2x8x1xf32>
    %64 = vector.broadcast %63 : vector<2x8x1xf32> to vector<2x8x8xf32>
    %65 = arith.subf %61, %64 : vector<2x8x8xf32>
    %66 = math.exp %65 : vector<2x8x8xf32>
    %cst_25 = arith.constant dense<0.000000e+00> : vector<2x8xf32>
    %67 = vector.multi_reduction <add>, %66, %cst_25 [2] : vector<2x8x8xf32> to vector<2x8xf32>
    %68 = vector.shape_cast %67 : vector<2x8xf32> to vector<2x8x1xf32>
    %69 = tpu.reciprocal %68 {approx = true} : vector<2x8x1xf32> -> vector<2x8x1xf32>
    %70 = vector.broadcast %69 : vector<2x8x1xf32> to vector<2x8x8xf32>
    %71 = arith.mulf %66, %70 : vector<2x8x8xf32>
    "tpu.trace_start"() <{level = 10 : i32, message = "bqk,bkd->bqd"}> : () -> ()
    %cst_26 = arith.constant dense<0.000000e+00> : vector<2x8x8xf32>
    %72 = tpu.matmul %71, %59, %cst_26 {dimension_numbers = #tpu.dot_dimension_numbers<[2], [1], [1], [2], [0, 0, 0, 1, 1, 2], [0], [0]>} : vector<2x8x8xf32>, vector<2x8x8xf32>, vector<2x8x8xf32> -> vector<2x8x8xf32>
    "tpu.trace_stop"() : () -> ()
    %73 = vector.extract_strided_slice %40 {offsets = [0, 0, 16], sizes = [2, 8, 8], strides = [1, 1, 1]} : vector<2x8x96xf32> to vector<2x8x8xf32>
    %74 = vector.extract_strided_slice %40 {offsets = [0, 0, 48], sizes = [2, 8, 8], strides = [1, 1, 1]} : vector<2x8x96xf32> to vector<2x8x8xf32>
    %75 = vector.extract_strided_slice %40 {offsets = [0, 0, 80], sizes = [2, 8, 8], strides = [1, 1, 1]} : vector<2x8x96xf32> to vector<2x8x8xf32>
    "tpu.trace_start"() <{level = 10 : i32, message = "bqd,bkd->bqk"}> : () -> ()
    %cst_27 = arith.constant dense<0.000000e+00> : vector<2x8x8xf32>
    %76 = tpu.matmul %73, %74, %cst_27 {dimension_numbers = #tpu.dot_dimension_numbers<[2], [2], [1], [1], [0, 0, 0, 1, 1, 1], [0], [0]>} : vector<2x8x8xf32>, vector<2x8x8xf32>, vector<2x8x8xf32> -> vector<2x8x8xf32>
    "tpu.trace_stop"() : () -> ()
    %77 = arith.addf %76, %3 : vector<2x8x8xf32>
    %cst_28 = arith.constant dense<0xFF800000> : vector<2x8xf32>
    %78 = vector.multi_reduction <maximumf>, %77, %cst_28 [2] : vector<2x8x8xf32> to vector<2x8xf32>
    %79 = vector.shape_cast %78 : vector<2x8xf32> to vector<2x8x1xf32>
    %80 = vector.broadcast %79 : vector<2x8x1xf32> to vector<2x8x8xf32>
    %81 = arith.subf %77, %80 : vector<2x8x8xf32>
    %82 = math.exp %81 : vector<2x8x8xf32>
    %cst_29 = arith.constant dense<0.000000e+00> : vector<2x8xf32>
    %83 = vector.multi_reduction <add>, %82, %cst_29 [2] : vector<2x8x8xf32> to vector<2x8xf32>
    %84 = vector.shape_cast %83 : vector<2x8xf32> to vector<2x8x1xf32>
    %85 = tpu.reciprocal %84 {approx = true} : vector<2x8x1xf32> -> vector<2x8x1xf32>
    %86 = vector.broadcast %85 : vector<2x8x1xf32> to vector<2x8x8xf32>
    %87 = arith.mulf %82, %86 : vector<2x8x8xf32>
    "tpu.trace_start"() <{level = 10 : i32, message = "bqk,bkd->bqd"}> : () -> ()
    %cst_30 = arith.constant dense<0.000000e+00> : vector<2x8x8xf32>
    %88 = tpu.matmul %87, %75, %cst_30 {dimension_numbers = #tpu.dot_dimension_numbers<[2], [1], [1], [2], [0, 0, 0, 1, 1, 2], [0], [0]>} : vector<2x8x8xf32>, vector<2x8x8xf32>, vector<2x8x8xf32> -> vector<2x8x8xf32>
    "tpu.trace_stop"() : () -> ()
    %89 = vector.extract_strided_slice %40 {offsets = [0, 0, 24], sizes = [2, 8, 8], strides = [1, 1, 1]} : vector<2x8x96xf32> to vector<2x8x8xf32>
    %90 = vector.extract_strided_slice %40 {offsets = [0, 0, 56], sizes = [2, 8, 8], strides = [1, 1, 1]} : vector<2x8x96xf32> to vector<2x8x8xf32>
    %91 = vector.extract_strided_slice %40 {offsets = [0, 0, 88], sizes = [2, 8, 8], strides = [1, 1, 1]} : vector<2x8x96xf32> to vector<2x8x8xf32>
    "tpu.trace_start"() <{level = 10 : i32, message = "bqd,bkd->bqk"}> : () -> ()
    %cst_31 = arith.constant dense<0.000000e+00> : vector<2x8x8xf32>
    %92 = tpu.matmul %89, %90, %cst_31 {dimension_numbers = #tpu.dot_dimension_numbers<[2], [2], [1], [1], [0, 0, 0, 1, 1, 1], [0], [0]>} : vector<2x8x8xf32>, vector<2x8x8xf32>, vector<2x8x8xf32> -> vector<2x8x8xf32>
    "tpu.trace_stop"() : () -> ()
    %93 = arith.addf %92, %3 : vector<2x8x8xf32>
    %cst_32 = arith.constant dense<0xFF800000> : vector<2x8xf32>
    %94 = vector.multi_reduction <maximumf>, %93, %cst_32 [2] : vector<2x8x8xf32> to vector<2x8xf32>
    %95 = vector.shape_cast %94 : vector<2x8xf32> to vector<2x8x1xf32>
    %96 = vector.broadcast %95 : vector<2x8x1xf32> to vector<2x8x8xf32>
    %97 = arith.subf %93, %96 : vector<2x8x8xf32>
    %98 = math.exp %97 : vector<2x8x8xf32>
    %cst_33 = arith.constant dense<0.000000e+00> : vector<2x8xf32>
    %99 = vector.multi_reduction <add>, %98, %cst_33 [2] : vector<2x8x8xf32> to vector<2x8xf32>
    %100 = vector.shape_cast %99 : vector<2x8xf32> to vector<2x8x1xf32>
    %101 = tpu.reciprocal %100 {approx = true} : vector<2x8x1xf32> -> vector<2x8x1xf32>
    %102 = vector.broadcast %101 : vector<2x8x1xf32> to vector<2x8x8xf32>
    %103 = arith.mulf %98, %102 : vector<2x8x8xf32>
    "tpu.trace_start"() <{level = 10 : i32, message = "bqk,bkd->bqd"}> : () -> ()
    %cst_34 = arith.constant dense<0.000000e+00> : vector<2x8x8xf32>
    %104 = tpu.matmul %103, %91, %cst_34 {dimension_numbers = #tpu.dot_dimension_numbers<[2], [1], [1], [2], [0, 0, 0, 1, 1, 2], [0], [0]>} : vector<2x8x8xf32>, vector<2x8x8xf32>, vector<2x8x8xf32> -> vector<2x8x8xf32>
    "tpu.trace_stop"() : () -> ()
    %105 = tpu.concatenate %56, %72, %88, %104 in 2 : vector<2x8x8xf32>, vector<2x8x8xf32>, vector<2x8x8xf32>, vector<2x8x8xf32> -> vector<2x8x32xf32>
    %106 = vector.shape_cast %105 : vector<2x8x32xf32> to vector<16x32xf32>
    %c0_35 = arith.constant 0 : index
    %c96 = arith.constant 96 : index
    %107 = vector.load %arg3[%c0_35, %c96] : memref<32x320xf32, #tpu.memory_space<vmem>>, vector<32x32xf32>
    %cst_36 = arith.constant dense<0.000000e+00> : vector<16x32xf32>
    %108 = tpu.matmul %106, %107, %cst_36 {dimension_numbers = #tpu.dot_dimension_numbers<[1], [0], [0], [1], [0, 0, 1, 1], [], []>} : vector<16x32xf32>, vector<32x32xf32>, vector<16x32xf32> -> vector<16x32xf32>
    %109 = arith.addf %0, %108 : vector<16x32xf32>
    %c0_37 = arith.constant 0 : index
    %c160_38 = arith.constant 160 : index
    %110 = vector.load %arg5[%c0_37, %c160_38] : memref<1x544xf32, #tpu.memory_space<vmem>>, vector<1x32xf32>
    %111 = vector.broadcast %110 : vector<1x32xf32> to vector<16x32xf32>
    %112 = arith.addf %109, %111 : vector<16x32xf32>
    %cst_39 = arith.constant dense<0.000000e+00> : vector<16xf32>
    %113 = vector.multi_reduction <add>, %112, %cst_39 [1] : vector<16x32xf32> to vector<16xf32>
    %114 = vector.shape_cast %113 : vector<16xf32> to vector<16x1xf32>
    %cst_40 = arith.constant 3.200000e+01 : f32
    %115 = vector.broadcast %cst_40 : f32 to vector<16x1xf32>
    %116 = arith.divf %114, %115 : vector<16x1xf32>
    %117 = arith.mulf %112, %112 : vector<16x32xf32>
    %cst_41 = arith.constant dense<0.000000e+00> : vector<16xf32>
    %118 = vector.multi_reduction <add>, %117, %cst_41 [1] : vector<16x32xf32> to vector<16xf32>
    %119 = vector.shape_cast %118 : vector<16xf32> to vector<16x1xf32>
    %cst_42 = arith.constant 3.200000e+01 : f32
    %120 = vector.broadcast %cst_42 : f32 to vector<16x1xf32>
    %121 = arith.divf %119, %120 : vector<16x1xf32>
    %122 = arith.mulf %116, %116 : vector<16x1xf32>
    %123 = arith.subf %121, %122 : vector<16x1xf32>
    %124 = vector.broadcast %116 : vector<16x1xf32> to vector<16x32xf32>
    %125 = arith.subf %112, %124 : vector<16x32xf32>
    %cst_43 = arith.constant 9.99999974E-6 : f32
    %126 = vector.broadcast %cst_43 : f32 to vector<16x1xf32>
    %127 = arith.addf %123, %126 : vector<16x1xf32>
    %128 = math.rsqrt %127 : vector<16x1xf32>
    %129 = vector.broadcast %128 : vector<16x1xf32> to vector<16x32xf32>
    %130 = arith.mulf %125, %129 : vector<16x32xf32>
    %c0_44 = arith.constant 0 : index
    %c192 = arith.constant 192 : index
    %131 = vector.load %arg5[%c0_44, %c192] : memref<1x544xf32, #tpu.memory_space<vmem>>, vector<1x32xf32>
    %132 = vector.broadcast %131 : vector<1x32xf32> to vector<16x32xf32>
    %133 = arith.mulf %130, %132 : vector<16x32xf32>
    %c0_45 = arith.constant 0 : index
    %c224 = arith.constant 224 : index
    %134 = vector.load %arg5[%c0_45, %c224] : memref<1x544xf32, #tpu.memory_space<vmem>>, vector<1x32xf32>
    %135 = vector.broadcast %134 : vector<1x32xf32> to vector<16x32xf32>
    %136 = arith.addf %133, %135 : vector<16x32xf32>
    %c0_46 = arith.constant 0 : index
    %c128 = arith.constant 128 : index
    %137 = vector.load %arg3[%c0_46, %c128] : memref<32x320xf32, #tpu.memory_space<vmem>>, vector<32x32xf32>
    %cst_47 = arith.constant dense<0.000000e+00> : vector<16x32xf32>
    %138 = tpu.matmul %136, %137, %cst_47 {dimension_numbers = #tpu.dot_dimension_numbers<[1], [0], [0], [1], [0, 0, 1, 1], [], []>} : vector<16x32xf32>, vector<32x32xf32>, vector<16x32xf32> -> vector<16x32xf32>
    %c0_48 = arith.constant 0 : index
    %c256 = arith.constant 256 : index
    %139 = vector.load %arg5[%c0_48, %c256] : memref<1x544xf32, #tpu.memory_space<vmem>>, vector<1x32xf32>
    %140 = vector.broadcast %139 : vector<1x32xf32> to vector<16x32xf32>
    %141 = arith.addf %138, %140 : vector<16x32xf32>
    %142 = vector.shape_cast %141 : vector<16x32xf32> to vector<2x8x32xf32>
    %143 = vector.extract_strided_slice %142 {offsets = [0, 0, 0], sizes = [2, 8, 8], strides = [1, 1, 1]} : vector<2x8x32xf32> to vector<2x8x8xf32>
    %144 = vector.extract_strided_slice %10 {offsets = [0, 0, 0], sizes = [2, 8, 8], strides = [1, 1, 1]} : vector<2x8x64xf32> to vector<2x8x8xf32>
    %145 = vector.extract_strided_slice %10 {offsets = [0, 0, 32], sizes = [2, 8, 8], strides = [1, 1, 1]} : vector<2x8x64xf32> to vector<2x8x8xf32>
    "tpu.trace_start"() <{level = 10 : i32, message = "bqd,bkd->bqk"}> : () -> ()
    %cst_49 = arith.constant dense<0.000000e+00> : vector<2x8x8xf32>
    %146 = tpu.matmul %143, %144, %cst_49 {dimension_numbers = #tpu.dot_dimension_numbers<[2], [2], [1], [1], [0, 0, 0, 1, 1, 1], [0], [0]>} : vector<2x8x8xf32>, vector<2x8x8xf32>, vector<2x8x8xf32> -> vector<2x8x8xf32>
    "tpu.trace_stop"() : () -> ()
    %147 = arith.addf %146, %4 : vector<2x8x8xf32>
    %cst_50 = arith.constant dense<0xFF800000> : vector<2x8xf32>
    %148 = vector.multi_reduction <maximumf>, %147, %cst_50 [2] : vector<2x8x8xf32> to vector<2x8xf32>
    %149 = vector.shape_cast %148 : vector<2x8xf32> to vector<2x8x1xf32>
    %150 = vector.broadcast %149 : vector<2x8x1xf32> to vector<2x8x8xf32>
    %151 = arith.subf %147, %150 : vector<2x8x8xf32>
    %152 = math.exp %151 : vector<2x8x8xf32>
    %cst_51 = arith.constant dense<0.000000e+00> : vector<2x8xf32>
    %153 = vector.multi_reduction <add>, %152, %cst_51 [2] : vector<2x8x8xf32> to vector<2x8xf32>
    %154 = vector.shape_cast %153 : vector<2x8xf32> to vector<2x8x1xf32>
    %155 = tpu.reciprocal %154 {approx = true} : vector<2x8x1xf32> -> vector<2x8x1xf32>
    %156 = vector.broadcast %155 : vector<2x8x1xf32> to vector<2x8x8xf32>
    %157 = arith.mulf %152, %156 : vector<2x8x8xf32>
    "tpu.trace_start"() <{level = 10 : i32, message = "bqk,bkd->bqd"}> : () -> ()
    %cst_52 = arith.constant dense<0.000000e+00> : vector<2x8x8xf32>
    %158 = tpu.matmul %157, %145, %cst_52 {dimension_numbers = #tpu.dot_dimension_numbers<[2], [1], [1], [2], [0, 0, 0, 1, 1, 2], [0], [0]>} : vector<2x8x8xf32>, vector<2x8x8xf32>, vector<2x8x8xf32> -> vector<2x8x8xf32>
    "tpu.trace_stop"() : () -> ()
    %159 = vector.extract_strided_slice %142 {offsets = [0, 0, 8], sizes = [2, 8, 8], strides = [1, 1, 1]} : vector<2x8x32xf32> to vector<2x8x8xf32>
    %160 = vector.extract_strided_slice %10 {offsets = [0, 0, 8], sizes = [2, 8, 8], strides = [1, 1, 1]} : vector<2x8x64xf32> to vector<2x8x8xf32>
    %161 = vector.extract_strided_slice %10 {offsets = [0, 0, 40], sizes = [2, 8, 8], strides = [1, 1, 1]} : vector<2x8x64xf32> to vector<2x8x8xf32>
    "tpu.trace_start"() <{level = 10 : i32, message = "bqd,bkd->bqk"}> : () -> ()
    %cst_53 = arith.constant dense<0.000000e+00> : vector<2x8x8xf32>
    %162 = tpu.matmul %159, %160, %cst_53 {dimension_numbers = #tpu.dot_dimension_numbers<[2], [2], [1], [1], [0, 0, 0, 1, 1, 1], [0], [0]>} : vector<2x8x8xf32>, vector<2x8x8xf32>, vector<2x8x8xf32> -> vector<2x8x8xf32>
    "tpu.trace_stop"() : () -> ()
    %163 = arith.addf %162, %4 : vector<2x8x8xf32>
    %cst_54 = arith.constant dense<0xFF800000> : vector<2x8xf32>
    %164 = vector.multi_reduction <maximumf>, %163, %cst_54 [2] : vector<2x8x8xf32> to vector<2x8xf32>
    %165 = vector.shape_cast %164 : vector<2x8xf32> to vector<2x8x1xf32>
    %166 = vector.broadcast %165 : vector<2x8x1xf32> to vector<2x8x8xf32>
    %167 = arith.subf %163, %166 : vector<2x8x8xf32>
    %168 = math.exp %167 : vector<2x8x8xf32>
    %cst_55 = arith.constant dense<0.000000e+00> : vector<2x8xf32>
    %169 = vector.multi_reduction <add>, %168, %cst_55 [2] : vector<2x8x8xf32> to vector<2x8xf32>
    %170 = vector.shape_cast %169 : vector<2x8xf32> to vector<2x8x1xf32>
    %171 = tpu.reciprocal %170 {approx = true} : vector<2x8x1xf32> -> vector<2x8x1xf32>
    %172 = vector.broadcast %171 : vector<2x8x1xf32> to vector<2x8x8xf32>
    %173 = arith.mulf %168, %172 : vector<2x8x8xf32>
    "tpu.trace_start"() <{level = 10 : i32, message = "bqk,bkd->bqd"}> : () -> ()
    %cst_56 = arith.constant dense<0.000000e+00> : vector<2x8x8xf32>
    %174 = tpu.matmul %173, %161, %cst_56 {dimension_numbers = #tpu.dot_dimension_numbers<[2], [1], [1], [2], [0, 0, 0, 1, 1, 2], [0], [0]>} : vector<2x8x8xf32>, vector<2x8x8xf32>, vector<2x8x8xf32> -> vector<2x8x8xf32>
    "tpu.trace_stop"() : () -> ()
    %175 = vector.extract_strided_slice %142 {offsets = [0, 0, 16], sizes = [2, 8, 8], strides = [1, 1, 1]} : vector<2x8x32xf32> to vector<2x8x8xf32>
    %176 = vector.extract_strided_slice %10 {offsets = [0, 0, 16], sizes = [2, 8, 8], strides = [1, 1, 1]} : vector<2x8x64xf32> to vector<2x8x8xf32>
    %177 = vector.extract_strided_slice %10 {offsets = [0, 0, 48], sizes = [2, 8, 8], strides = [1, 1, 1]} : vector<2x8x64xf32> to vector<2x8x8xf32>
    "tpu.trace_start"() <{level = 10 : i32, message = "bqd,bkd->bqk"}> : () -> ()
    %cst_57 = arith.constant dense<0.000000e+00> : vector<2x8x8xf32>
    %178 = tpu.matmul %175, %176, %cst_57 {dimension_numbers = #tpu.dot_dimension_numbers<[2], [2], [1], [1], [0, 0, 0, 1, 1, 1], [0], [0]>} : vector<2x8x8xf32>, vector<2x8x8xf32>, vector<2x8x8xf32> -> vector<2x8x8xf32>
    "tpu.trace_stop"() : () -> ()
    %179 = arith.addf %178, %4 : vector<2x8x8xf32>
    %cst_58 = arith.constant dense<0xFF800000> : vector<2x8xf32>
    %180 = vector.multi_reduction <maximumf>, %179, %cst_58 [2] : vector<2x8x8xf32> to vector<2x8xf32>
    %181 = vector.shape_cast %180 : vector<2x8xf32> to vector<2x8x1xf32>
    %182 = vector.broadcast %181 : vector<2x8x1xf32> to vector<2x8x8xf32>
    %183 = arith.subf %179, %182 : vector<2x8x8xf32>
    %184 = math.exp %183 : vector<2x8x8xf32>
    %cst_59 = arith.constant dense<0.000000e+00> : vector<2x8xf32>
    %185 = vector.multi_reduction <add>, %184, %cst_59 [2] : vector<2x8x8xf32> to vector<2x8xf32>
    %186 = vector.shape_cast %185 : vector<2x8xf32> to vector<2x8x1xf32>
    %187 = tpu.reciprocal %186 {approx = true} : vector<2x8x1xf32> -> vector<2x8x1xf32>
    %188 = vector.broadcast %187 : vector<2x8x1xf32> to vector<2x8x8xf32>
    %189 = arith.mulf %184, %188 : vector<2x8x8xf32>
    "tpu.trace_start"() <{level = 10 : i32, message = "bqk,bkd->bqd"}> : () -> ()
    %cst_60 = arith.constant dense<0.000000e+00> : vector<2x8x8xf32>
    %190 = tpu.matmul %189, %177, %cst_60 {dimension_numbers = #tpu.dot_dimension_numbers<[2], [1], [1], [2], [0, 0, 0, 1, 1, 2], [0], [0]>} : vector<2x8x8xf32>, vector<2x8x8xf32>, vector<2x8x8xf32> -> vector<2x8x8xf32>
    "tpu.trace_stop"() : () -> ()
    %191 = vector.extract_strided_slice %142 {offsets = [0, 0, 24], sizes = [2, 8, 8], strides = [1, 1, 1]} : vector<2x8x32xf32> to vector<2x8x8xf32>
    %192 = vector.extract_strided_slice %10 {offsets = [0, 0, 24], sizes = [2, 8, 8], strides = [1, 1, 1]} : vector<2x8x64xf32> to vector<2x8x8xf32>
    %193 = vector.extract_strided_slice %10 {offsets = [0, 0, 56], sizes = [2, 8, 8], strides = [1, 1, 1]} : vector<2x8x64xf32> to vector<2x8x8xf32>
    "tpu.trace_start"() <{level = 10 : i32, message = "bqd,bkd->bqk"}> : () -> ()
    %cst_61 = arith.constant dense<0.000000e+00> : vector<2x8x8xf32>
    %194 = tpu.matmul %191, %192, %cst_61 {dimension_numbers = #tpu.dot_dimension_numbers<[2], [2], [1], [1], [0, 0, 0, 1, 1, 1], [0], [0]>} : vector<2x8x8xf32>, vector<2x8x8xf32>, vector<2x8x8xf32> -> vector<2x8x8xf32>
    "tpu.trace_stop"() : () -> ()
    %195 = arith.addf %194, %4 : vector<2x8x8xf32>
    %cst_62 = arith.constant dense<0xFF800000> : vector<2x8xf32>
    %196 = vector.multi_reduction <maximumf>, %195, %cst_62 [2] : vector<2x8x8xf32> to vector<2x8xf32>
    %197 = vector.shape_cast %196 : vector<2x8xf32> to vector<2x8x1xf32>
    %198 = vector.broadcast %197 : vector<2x8x1xf32> to vector<2x8x8xf32>
    %199 = arith.subf %195, %198 : vector<2x8x8xf32>
    %200 = math.exp %199 : vector<2x8x8xf32>
    %cst_63 = arith.constant dense<0.000000e+00> : vector<2x8xf32>
    %201 = vector.multi_reduction <add>, %200, %cst_63 [2] : vector<2x8x8xf32> to vector<2x8xf32>
    %202 = vector.shape_cast %201 : vector<2x8xf32> to vector<2x8x1xf32>
    %203 = tpu.reciprocal %202 {approx = true} : vector<2x8x1xf32> -> vector<2x8x1xf32>
    %204 = vector.broadcast %203 : vector<2x8x1xf32> to vector<2x8x8xf32>
    %205 = arith.mulf %200, %204 : vector<2x8x8xf32>
    "tpu.trace_start"() <{level = 10 : i32, message = "bqk,bkd->bqd"}> : () -> ()
    %cst_64 = arith.constant dense<0.000000e+00> : vector<2x8x8xf32>
    %206 = tpu.matmul %205, %193, %cst_64 {dimension_numbers = #tpu.dot_dimension_numbers<[2], [1], [1], [2], [0, 0, 0, 1, 1, 2], [0], [0]>} : vector<2x8x8xf32>, vector<2x8x8xf32>, vector<2x8x8xf32> -> vector<2x8x8xf32>
    "tpu.trace_stop"() : () -> ()
    %207 = tpu.concatenate %158, %174, %190, %206 in 2 : vector<2x8x8xf32>, vector<2x8x8xf32>, vector<2x8x8xf32>, vector<2x8x8xf32> -> vector<2x8x32xf32>
    %208 = vector.shape_cast %207 : vector<2x8x32xf32> to vector<16x32xf32>
    %c0_65 = arith.constant 0 : index
    %c224_66 = arith.constant 224 : index
    %209 = vector.load %arg3[%c0_65, %c224_66] : memref<32x320xf32, #tpu.memory_space<vmem>>, vector<32x32xf32>
    %cst_67 = arith.constant dense<0.000000e+00> : vector<16x32xf32>
    %210 = tpu.matmul %208, %209, %cst_67 {dimension_numbers = #tpu.dot_dimension_numbers<[1], [0], [0], [1], [0, 0, 1, 1], [], []>} : vector<16x32xf32>, vector<32x32xf32>, vector<16x32xf32> -> vector<16x32xf32>
    %211 = arith.addf %112, %210 : vector<16x32xf32>
    %c0_68 = arith.constant 0 : index
    %c352 = arith.constant 352 : index
    %212 = vector.load %arg5[%c0_68, %c352] : memref<1x544xf32, #tpu.memory_space<vmem>>, vector<1x32xf32>
    %213 = vector.broadcast %212 : vector<1x32xf32> to vector<16x32xf32>
    %214 = arith.addf %211, %213 : vector<16x32xf32>
    %cst_69 = arith.constant dense<0.000000e+00> : vector<16xf32>
    %215 = vector.multi_reduction <add>, %214, %cst_69 [1] : vector<16x32xf32> to vector<16xf32>
    %216 = vector.shape_cast %215 : vector<16xf32> to vector<16x1xf32>
    %cst_70 = arith.constant 3.200000e+01 : f32
    %217 = vector.broadcast %cst_70 : f32 to vector<16x1xf32>
    %218 = arith.divf %216, %217 : vector<16x1xf32>
    %219 = arith.mulf %214, %214 : vector<16x32xf32>
    %cst_71 = arith.constant dense<0.000000e+00> : vector<16xf32>
    %220 = vector.multi_reduction <add>, %219, %cst_71 [1] : vector<16x32xf32> to vector<16xf32>
    %221 = vector.shape_cast %220 : vector<16xf32> to vector<16x1xf32>
    %cst_72 = arith.constant 3.200000e+01 : f32
    %222 = vector.broadcast %cst_72 : f32 to vector<16x1xf32>
    %223 = arith.divf %221, %222 : vector<16x1xf32>
    %224 = arith.mulf %218, %218 : vector<16x1xf32>
    %225 = arith.subf %223, %224 : vector<16x1xf32>
    %226 = vector.broadcast %218 : vector<16x1xf32> to vector<16x32xf32>
    %227 = arith.subf %214, %226 : vector<16x32xf32>
    %cst_73 = arith.constant 9.99999974E-6 : f32
    %228 = vector.broadcast %cst_73 : f32 to vector<16x1xf32>
    %229 = arith.addf %225, %228 : vector<16x1xf32>
    %230 = math.rsqrt %229 : vector<16x1xf32>
    %231 = vector.broadcast %230 : vector<16x1xf32> to vector<16x32xf32>
    %232 = arith.mulf %227, %231 : vector<16x32xf32>
    %c0_74 = arith.constant 0 : index
    %c384 = arith.constant 384 : index
    %233 = vector.load %arg5[%c0_74, %c384] : memref<1x544xf32, #tpu.memory_space<vmem>>, vector<1x32xf32>
    %234 = vector.broadcast %233 : vector<1x32xf32> to vector<16x32xf32>
    %235 = arith.mulf %232, %234 : vector<16x32xf32>
    %c0_75 = arith.constant 0 : index
    %c416 = arith.constant 416 : index
    %236 = vector.load %arg5[%c0_75, %c416] : memref<1x544xf32, #tpu.memory_space<vmem>>, vector<1x32xf32>
    %237 = vector.broadcast %236 : vector<1x32xf32> to vector<16x32xf32>
    %238 = arith.addf %235, %237 : vector<16x32xf32>
    %c0_76 = arith.constant 0 : index
    %c256_77 = arith.constant 256 : index
    %239 = vector.load %arg3[%c0_76, %c256_77] : memref<32x320xf32, #tpu.memory_space<vmem>>, vector<32x64xf32>
    %cst_78 = arith.constant dense<0.000000e+00> : vector<16x64xf32>
    %240 = tpu.matmul %238, %239, %cst_78 {dimension_numbers = #tpu.dot_dimension_numbers<[1], [0], [0], [1], [0, 0, 1, 1], [], []>} : vector<16x32xf32>, vector<32x64xf32>, vector<16x64xf32> -> vector<16x64xf32>
    %c0_79 = arith.constant 0 : index
    %c448 = arith.constant 448 : index
    %241 = vector.load %arg5[%c0_79, %c448] : memref<1x544xf32, #tpu.memory_space<vmem>>, vector<1x64xf32>
    %242 = vector.broadcast %241 : vector<1x64xf32> to vector<16x64xf32>
    %243 = arith.addf %240, %242 : vector<16x64xf32>
    %cst_80 = arith.constant 0.000000e+00 : f32
    %244 = vector.broadcast %cst_80 : f32 to vector<16x64xf32>
    %245 = arith.maximumf %243, %244 : vector<16x64xf32>
    %c0_81 = arith.constant 0 : index
    %c0_82 = arith.constant 0 : index
    %246 = vector.load %arg4[%c0_81, %c0_82] : memref<64x32xf32, #tpu.memory_space<vmem>>, vector<64x32xf32>
    %cst_83 = arith.constant dense<0.000000e+00> : vector<16x32xf32>
    %247 = tpu.matmul %245, %246, %cst_83 {dimension_numbers = #tpu.dot_dimension_numbers<[1], [0], [0], [1], [0, 0, 1, 1], [], []>} : vector<16x64xf32>, vector<64x32xf32>, vector<16x32xf32> -> vector<16x32xf32>
    %248 = arith.addf %214, %247 : vector<16x32xf32>
    %c0_84 = arith.constant 0 : index
    %c512 = arith.constant 512 : index
    %249 = vector.load %arg5[%c0_84, %c512] : memref<1x544xf32, #tpu.memory_space<vmem>>, vector<1x32xf32>
    %250 = vector.broadcast %249 : vector<1x32xf32> to vector<16x32xf32>
    %251 = arith.addf %248, %250 : vector<16x32xf32>
    %c0_85 = arith.constant 0 : index
    %c0_86 = arith.constant 0 : index
    %252 = vector.load %arg6[%c0_85, %c0_86] : memref<16x32xf32, #tpu.memory_space<vmem>>, vector<16x32xf32>
    tpu.vector_store %arg6[%c0_85, %c0_86], %251 {strides = array<i32>} : memref<16x32xf32, #tpu.memory_space<vmem>>, vector<16x32xf32>,
    return
  }
  func.func @transform_0(%arg0: i32) -> (i32, i32) {
    %c0_i32 = arith.constant 0 : i32
    %c0_i32_0 = arith.constant 0 : i32
    %c0_i32_1 = arith.constant 0 : i32
    return %c0_i32, %c0_i32_0 : i32, i32
  }
  func.func @transform_1(%arg0: i32) -> (i32, i32, i32) {
    %c0_i32 = arith.constant 0 : i32
    %c0_i32_0 = arith.constant 0 : i32
    %c0_i32_1 = arith.constant 0 : i32
    %c0_i32_2 = arith.constant 0 : i32
    return %c0_i32, %c0_i32_0, %c0_i32_1 : i32, i32, i32
  }
  func.func @transform_2(%arg0: i32) -> (i32, i32) {
    %c0_i32 = arith.constant 0 : i32
    %c0_i32_0 = arith.constant 0 : i32
    %c0_i32_1 = arith.constant 0 : i32
    return %c0_i32, %c0_i32_0 : i32, i32
  }
  func.func @transform_3(%arg0: i32) -> (i32, i32) {
    %c0_i32 = arith.constant 0 : i32
    %c0_i32_0 = arith.constant 0 : i32
    %c0_i32_1 = arith.constant 0 : i32
    return %c0_i32, %c0_i32_0 : i32, i32
  }
  func.func @transform_4(%arg0: i32) -> (i32, i32) {
    %c0_i32 = arith.constant 0 : i32
    %c0_i32_0 = arith.constant 0 : i32
    %c0_i32_1 = arith.constant 0 : i32
    return %c0_i32, %c0_i32_0 : i32, i32
  }
  func.func @transform_5(%arg0: i32) -> (i32, i32) {
    %c0_i32 = arith.constant 0 : i32
    %c0_i32_0 = arith.constant 0 : i32
    %c0_i32_1 = arith.constant 0 : i32
    return %c0_i32, %c0_i32_0 : i32, i32
  }
}

</mosaic_0001>

<llo_original>
// kernel: tpu_custom_call.1
$region0: #{tpu_custom_call.1}
  #allocation0 [shape = 'u32[]', space=smem, size = 0x4, offset = 0x4, fixed_abs, tag = 'smem constant byte address 0x4 - core index']
  #allocation1 [shape = 'u32[144,128]{1,0:T(1,128)}', space=vmem, size = 0x12000, scoped, tag = 'internal scratch']
  %s0 = inlined_call_operand.hbm [shape: f32[32,32], index: 0, kind: input, shape index: {}]
  %s1 = inlined_call_operand.hbm [shape: f32[2,8,16], index: 1, kind: input, shape index: {}]
  %s2 = inlined_call_operand.vmem [shape: f32[32,320], index: 2, kind: input, shape index: {}]
  %s3 = inlined_call_operand.vmem [shape: f32[64,32], index: 3, kind: input, shape index: {}]
  %s4 = inlined_call_operand.vmem [shape: f32[1,544], index: 4, kind: input, shape index: {}]
  %s5 = inlined_call_operand.hbm [shape: f32[16,32], index: 5, kind: output, shape index: {}]
  %s6 = sld [smem:[#allocation0]]
  $region38: #{tpu_custom_call.1} parent=0
    _
  %s8 = ssub.s32 1, %s6
  %s9 = scalar_select 0, %s8, %s6
  $region1: #{tpu_custom_call.1} parent=0
    #allocation2 [shape = 'u8[16384]{0}', space=vmem, size = 0x4000, scoped, tag = 'input window, operand 0, single buffered']
    #allocation3 [shape = 's32[1]{0}', space=sflag, size = 0x4, scoped, tag = 'scoped memory for tpu_custom_call.1']
    #allocation4 [shape = 's32[1]{0}', space=sflag, size = 0x4, scoped, tag = 'scoped memory for tpu_custom_call.1']
    #allocation5 [shape = 'u8[8192]{0}', space=vmem, size = 0x2000, scoped, tag = 'input window, operand 1, single buffered']
    #allocation6 [shape = 's32[1]{0}', space=sflag, size = 0x4, scoped, tag = 'scoped memory for tpu_custom_call.1']
    #allocation7 [shape = 'u8[8192]{0}', space=vmem, size = 0x2000, scoped, tag = 'output window, operand 0, single buffered']
    %10 = vsyncpa [#allocation3], 0
    %11 = vsyncpa [#allocation6], 0
    %12 = vsyncpa [#allocation4], 0
    // Predicated region
    $region2: #{tpu_custom_call.1} parent=1 // pred_check
      _
    $region3: #{tpu_custom_call.1} parent=1 // pred_check_branch
      %14 = sbr.rel (0) target = $region5
    $region4: #{tpu_custom_call.1} parent=1 // pred_region
      %s16 = ssub.s32 512, 512
      %17 = vsyncadd [#allocation3], %s16
      %s18 = sshll.u32 [#allocation2], 4
      %s19 = int_to_ptr.vmem [resolvable:$true] %s18
      %24 = dma.hbm_to_vmem [thread:$0]  %s0, 512, %s19, [#allocation3], 128, 128, 8
    $region5: #{tpu_custom_call.1} parent=1 // pred_fallthru
      _
    // Predicated region
    $region6: #{tpu_custom_call.1} parent=1 // pred_check
      _
    $region7: #{tpu_custom_call.1} parent=1 // pred_check_branch
      %26 = sbr.rel (0) target = $region9
    $region8: #{tpu_custom_call.1} parent=1 // pred_region
      %s28 = ssub.s32 256, 256
      %29 = vsyncadd [#allocation6], %s28
      %s30 = sshll.u32 [#allocation5], 4
      %s31 = int_to_ptr.vmem [resolvable:$true] %s30
      %36 = dma.hbm_to_vmem [thread:$0]  %s1, 256, %s31, [#allocation6], 128, 128, 8
    $region9: #{tpu_custom_call.1} parent=1 // pred_fallthru
      _
    // Predicated region
    $region10: #{tpu_custom_call.1} parent=1 // pred_check
      _
    $region11: #{tpu_custom_call.1} parent=1 // pred_check_branch
      %38 = sbr.rel (0) target = $region13
    $region12: #{tpu_custom_call.1} parent=1 // pred_region
      _
    $region13: #{tpu_custom_call.1} parent=1 // pred_fallthru
      _
    // Predicated region
    $region14: #{tpu_custom_call.1} parent=1 // pred_check
      _
    $region15: #{tpu_custom_call.1} parent=1 // pred_check_branch
      %40 = sbr.rel (0) target = $region17
    $region16: #{tpu_custom_call.1} parent=1 // pred_region
      _
    $region17: #{tpu_custom_call.1} parent=1 // pred_fallthru
      _
    // Predicated region
    $region18: #{tpu_custom_call.1} parent=1 // pred_check
      _
    $region19: #{tpu_custom_call.1} parent=1 // pred_check_branch
      %42 = sbr.rel (0) target = $region21
    $region20: #{tpu_custom_call.1} parent=1 // pred_region
      _
    $region21: #{tpu_custom_call.1} parent=1 // pred_fallthru
      _
    // Predicated region
    $region22: #{tpu_custom_call.1} parent=1 // pred_check
      _
    $region23: #{tpu_custom_call.1} parent=1 // pred_check_branch
      %44 = sbr.rel (0) target = $region25
    $region24: #{tpu_custom_call.1} parent=1 // pred_region
      %45 = dma.done [#allocation3], 512
    $region25: #{tpu_custom_call.1} parent=1 // pred_fallthru
      _
    // Predicated region
    $region26: #{tpu_custom_call.1} parent=1 // pred_check
      _
    $region27: #{tpu_custom_call.1} parent=1 // pred_check_branch
      %47 = sbr.rel (0) target = $region29
    $region28: #{tpu_custom_call.1} parent=1 // pred_region
      %48 = dma.done [#allocation6], 256
    $region29: #{tpu_custom_call.1} parent=1 // pred_fallthru
      _
    %v49 = vld [vmem:[#allocation2] sm:$0xff]
    %v50 = vld [vmem:[#allocation2 + $0x8] sm:$0xff]
    %v51 = vld [vmem:[#allocation2 + $0x10] sm:$0xff]
    %v52 = vld [vmem:[#allocation2 + $0x18] sm:$0xff]
    %v53 = vld [vmem:[#allocation5] sm:$0xff]
    %v54 = vld [vmem:[#allocation5 + $0x8] sm:$0xff]
    %v55 = vld [vmem:[%s2 + $0x8] sm:$0xff]
    %v56 = vld [vmem:[%s2 + $0x20] sm:$0xff]
    %v57 = vld [vmem:[%s2 + $0x38] sm:$0xff]
    %v58 = vld [vmem:[%s2 + $0x50] sm:$0xff]
    %v59 = vld [vmem:[%s4 + $0x2] sm:$0x1]
    %v61 = vlaneseq
    %v62 = vshrl.u32 %v61, 7
    %v63 = vsub.s32 0, %v62
    %v64 = vrot.slane %v59, %v63
    %69 = vrot.lane.b32.xlu0 %v55, 96
    %v70 = vpop.permute.xlu0 %69
    %71 = vrot.lane.b32.xlu0 %v56, 96
    %v72 = vpop.permute.xlu0 %71
    %73 = vrot.lane.b32.xlu0 %v57, 96
    %v74 = vpop.permute.xlu0 %73
    %75 = vrot.lane.b32.xlu0 %v58, 96
    %v76 = vpop.permute.xlu0 %75
    %81 = vrot.lane.b32.xlu0 %v64, 96
    %v82 = vpop.permute.xlu0 %81
    %vm84 = vcmask 261120
    %v86 = vsel %vm84, %v51, 0
    %v89 = vsel %vm84, %v52, 0
    %91 = vmatprep.subr.mxu0 0.0
    %92 = vmatpush1.msra.mxu0 %v70
    %93 = vmatprep.subr.mxu0 0.0
    %94 = vmatpush1.msra.mxu0 %v72
    %95 = vmatprep.subr.mxu0 0.0
    %96 = vmatpush1.msra.mxu0 %v74
    %97 = vmatprep.subr.mxu0 0.0
    %98 = vmatpush1.msra.mxu0 %v76
    %99 = vmatprep.subr.mxu0 0.0
    %100 = vmatpush1.msra.mxu0 0.0
    %101 = vmatprep.subr.mxu0 0.0
    %102 = vmatpush1.msra.mxu0 0.0
    %103 = vmatprep.subr.mxu0 0.0
    %104 = vmatpush1.msra.mxu0 0.0
    %105 = vmatprep.subr.mxu0 0.0
    %106 = vmatpush1.msra.mxu0 0.0
    %107 = vmatprep.subr.mxu0 0.0
    %108 = vmatpush1.msra.mxu0 0.0
    %109 = vmatprep.subr.mxu0 0.0
    %110 = vmatpush1.msra.mxu0 0.0
    %111 = vmatprep.subr.mxu0 0.0
    %112 = vmatpush1.msra.mxu0 0.0
    %113 = vmatprep.subr.mxu0 0.0
    %114 = vmatpush1.msra.mxu0 0.0
    %115 = vmatprep.subr.mxu0 0.0
    %116 = vmatpush1.msra.mxu0 0.0
    %117 = vmatprep.subr.mxu0 0.0
    %118 = vmatpush1.msra.mxu0 0.0
    %119 = vmatprep.subr.mxu0 0.0
    %120 = vmatpush1.msra.mxu0 0.0
    %121 = vmatprep.subr.mxu0 0.0
    %122 = vmatpush1.msra.mxu0 0.0
    %123 = vmatprep.subr.mxu0 0.0
    %124 = vmatpush1.msra.mxu0 0.0
    %125 = vmatprep.subr.mxu0 0.0
    %126 = vmatpush1.msra.mxu0 0.0
    %127 = vmatprep.subr.mxu0 0.0
    %128 = vmatpush1.msra.mxu0 0.0
    %129 = vmatprep.subr.mxu0 0.0
    %130 = vmatpush1.msra.mxu0 0.0
    %131 = vmatprep.subr.mxu0 0.0
    %132 = vmatpush1.msra.mxu0 0.0
    %133 = vmatprep.subr.mxu0 0.0
    %134 = vmatpush1.msra.mxu0 0.0
    %135 = vmatprep.subr.mxu0 0.0
    %136 = vmatpush1.msra.mxu0 0.0
    %137 = vmatprep.subr.mxu0 0.0
    %138 = vmatpush1.msra.mxu0 0.0
    %139 = vmatprep.subr.mxu0 0.0
    %140 = vmatpush1.msra.mxu0 0.0
    %141 = vmatprep.subr.mxu0 0.0
    %142 = vmatpush1.msra.mxu0 0.0
    %143 = vmatprep.subr.mxu0 0.0
    %144 = vmatpush1.msra.mxu0 0.0
    %145 = vmatprep.subr.mxu0 0.0
    %146 = vmatpush1.msra.mxu0 0.0
    %147 = vmatprep.subr.mxu0 0.0
    %148 = vmatpush1.msra.mxu0 0.0
    %149 = vmatprep.subr.mxu0 0.0
    %150 = vmatpush1.msra.mxu0 0.0
    %151 = vmatprep.subr.mxu0 0.0
    %152 = vmatpush1.msra.mxu0 0.0
    %153 = vmatprep.subr.mxu0 0.0
    %154 = vmatpush1.msra.mxu0 0.0
    %155 = vmatprep.mubr.f32.mxu0 0.0
    %156 = vmatmul.mubr.f32.gmra.mrb[0].mxu0 %v86
    %v157 = vpop.f32.mrb[0].mxu0
    %v158 = vadd.f32 %v82, %v157
    %v159 = vpop.f32.mrb[0].mxu0
    %160 = vmatprep.mubr.f32.mxu0 0.0
    %161 = vmatmul.mubr.f32.gmra.mrb[0].mxu0 %v89
    %v162 = vpop.f32.mrb[0].mxu0
    %v163 = vadd.f32 %v82, %v162
    %v164 = vpop.f32.mrb[0].mxu0
    %165 = vdwg.mxu0
    %v166 = vsel %vm84, %v49, 0.0
    %167 = vadd.xlane.f32.xlu0 %v166
    %v168 = vpop.xlane.xlu0 %167
    %v169 = vsel %vm84, %v50, 0.0
    %170 = vadd.xlane.f32.xlu0 %v169
    %v171 = vpop.xlane.xlu0 %170
    %v172 = vrcp.pop 32.0
    %v173 = vmul.f32 %v168, %v172
    %v174 = vmul.f32 %v171, %v172
    %v175 = vmul.f32 %v49, %v49
    %v176 = vmul.f32 %v50, %v50
    %v177 = vsel %vm84, %v175, 0.0
    %178 = vadd.xlane.f32.xlu0 %v177
    %v179 = vpop.xlane.xlu0 %178
    %v180 = vsel %vm84, %v176, 0.0
    %181 = vadd.xlane.f32.xlu0 %v180
    %v182 = vpop.xlane.xlu0 %181
    %v183 = vmul.f32 %v179, %v172
    %v184 = vmul.f32 %v182, %v172
    %v185 = vmul.f32 %v173, %v173
    %v186 = vmul.f32 %v174, %v174
    %v187 = vsub.f32 %v183, %v185
    %v188 = vsub.f32 %v184, %v186
    %v189 = vsub.f32 %v49, %v173
    %v190 = vsub.f32 %v50, %v174
    %v191 = vadd.f32 %v187, 1e-05
    %v192 = vadd.f32 %v188, 1e-05
    %v193 = vrsqrt.pop %v191
    %v194 = vrsqrt.pop %v192
    %v195 = vmul.f32 %v189, %v193
    %v196 = vmul.f32 %v190, %v194
    %v197 = vld [vmem:[%s4] sm:$0x1]
    %v199 = vlaneseq
    %v200 = vshrl.u32 %v199, 7
    %v201 = vsub.s32 0, %v200
    %v202 = vrot.slane %v197, %v201
    %v204 = vmul.f32 %v195, %v202
    %v205 = vmul.f32 %v196, %v202
    %206 = vrot.lane.b32.xlu0 %v202, 96
    %v207 = vpop.permute.xlu0 %206
    %v209 = vadd.f32 %v204, %v207
    %v210 = vadd.f32 %v205, %v207
    %v211 = vld [vmem:[%s2] sm:$0xff]
    %v212 = vld [vmem:[%s2 + $0x18] sm:$0xff]
    %v213 = vld [vmem:[%s2 + $0x30] sm:$0xff]
    %v214 = vld [vmem:[%s2 + $0x48] sm:$0xff]
    %v215 = vld [vmem:[%s4] sm:$0x3]
    %v217 = vlaneseq
    %v218 = vshrl.u32 %v217, 7
    %v219 = vsub.s32 0, %v218
    %v220 = vrot.slane %v215, %v219
    %v221 = vlaneseq
    %v222 = vshrl.u32 %v221, 7
    %v223 = vsub.s32 1, %v222
    %v224 = vrot.slane %v215, %v223
    %225 = vrot.lane.b32.xlu0 %v220, 64
    %v226 = vpop.permute.xlu0 %225
    %227 = vrot.lane.b32.xlu0 %v224, 64
    %v228 = vpop.permute.xlu0 %227
    %vm229 = vcmask 523264
    %v230 = vsel %vm229, %v226, %v228
    %v233 = vsel %vm84, %v209, 0
    %v236 = vsel %vm84, %v210, 0
    %238 = vmatprep.subr.mxu0 0.0
    %239 = vmatpush1.msra.mxu0 %v211
    %240 = vmatprep.subr.mxu0 0.0
    %241 = vmatpush1.msra.mxu0 %v212
    %242 = vmatprep.subr.mxu0 0.0
    %243 = vmatpush1.msra.mxu0 %v213
    %244 = vmatprep.subr.mxu0 0.0
    %245 = vmatpush1.msra.mxu0 %v214
    %246 = vmatprep.subr.mxu0 0.0
    %247 = vmatpush1.msra.mxu0 0.0
    %248 = vmatprep.subr.mxu0 0.0
    %249 = vmatpush1.msra.mxu0 0.0
    %250 = vmatprep.subr.mxu0 0.0
    %251 = vmatpush1.msra.mxu0 0.0
    %252 = vmatprep.subr.mxu0 0.0
    %253 = vmatpush1.msra.mxu0 0.0
    %254 = vmatprep.subr.mxu0 0.0
    %255 = vmatpush1.msra.mxu0 0.0
    %256 = vmatprep.subr.mxu0 0.0
    %257 = vmatpush1.msra.mxu0 0.0
    %258 = vmatprep.subr.mxu0 0.0
    %259 = vmatpush1.msra.mxu0 0.0
    %260 = vmatprep.subr.mxu0 0.0
    %261 = vmatpush1.msra.mxu0 0.0
    %262 = vmatprep.subr.mxu0 0.0
    %263 = vmatpush1.msra.mxu0 0.0
    %264 = vmatprep.subr.mxu0 0.0
    %265 = vmatpush1.msra.mxu0 0.0
    %266 = vmatprep.subr.mxu0 0.0
    %267 = vmatpush1.msra.mxu0 0.0
    %268 = vmatprep.subr.mxu0 0.0
    %269 = vmatpush1.msra.mxu0 0.0
    %270 = vmatprep.subr.mxu0 0.0
    %271 = vmatpush1.msra.mxu0 0.0
    %272 = vmatprep.subr.mxu0 0.0
    %273 = vmatpush1.msra.mxu0 0.0
    %274 = vmatprep.subr.mxu0 0.0
    %275 = vmatpush1.msra.mxu0 0.0
    %276 = vmatprep.subr.mxu0 0.0
    %277 = vmatpush1.msra.mxu0 0.0
    %278 = vmatprep.subr.mxu0 0.0
    %279 = vmatpush1.msra.mxu0 0.0
    %280 = vmatprep.subr.mxu0 0.0
    %281 = vmatpush1.msra.mxu0 0.0
    %282 = vmatprep.subr.mxu0 0.0
    %283 = vmatpush1.msra.mxu0 0.0
    %284 = vmatprep.subr.mxu0 0.0
    %285 = vmatpush1.msra.mxu0 0.0
    %286 = vmatprep.subr.mxu0 0.0
    %287 = vmatpush1.msra.mxu0 0.0
    %288 = vmatprep.subr.mxu0 0.0
    %289 = vmatpush1.msra.mxu0 0.0
    %290 = vmatprep.subr.mxu0 0.0
    %291 = vmatpush1.msra.mxu0 0.0
    %292 = vmatprep.subr.mxu0 0.0
    %293 = vmatpush1.msra.mxu0 0.0
    %294 = vmatprep.subr.mxu0 0.0
    %295 = vmatpush1.msra.mxu0 0.0
    %296 = vmatprep.subr.mxu0 0.0
    %297 = vmatpush1.msra.mxu0 0.0
    %298 = vmatprep.subr.mxu0 0.0
    %299 = vmatpush1.msra.mxu0 0.0
    %300 = vmatprep.subr.mxu0 0.0
    %301 = vmatpush1.msra.mxu0 0.0
    %302 = vmatprep.mubr.f32.mxu0 0.0
    %303 = vmatmul.mubr.f32.gmra.mrb[0].mxu0 %v233
    %v304 = vpop.f32.mrb[0].mxu0
    %v305 = vadd.f32 %v230, %v304
    %v306 = vpop.f32.mrb[0].mxu0
    %307 = vmatprep.mubr.f32.mxu0 0.0
    %308 = vmatmul.mubr.f32.gmra.mrb[0].mxu0 %v236
    %v309 = vpop.f32.mrb[0].mxu0
    %v310 = vadd.f32 %v230, %v309
    %v311 = vpop.f32.mrb[0].mxu0
    %312 = vdwg.mxu0
    %314 = vrot.lane.b32.xlu0 %v305, 96
    %v315 = vpop.permute.xlu0 %314
    %vm316 = vcmask 64512
    %v317 = vsel %vm316, %v305, 0
    %v319 = vsel %vm316, %v315, 0
    %321 = vmatprep.subr.mxu0 0.0
    %322 = vmatpush1.xpose.msra.mxu0 %v319
    %323 = vmatprep.subr.mxu0 0.0
    %324 = vmatpush1.xpose.msra.mxu0 0.0
    %325 = vmatprep.subr.mxu0 0.0
    %326 = vmatpush1.xpose.msra.mxu0 0.0
    %327 = vmatprep.subr.mxu0 0.0
    %328 = vmatpush1.xpose.msra.mxu0 0.0
    %329 = vmatprep.subr.mxu0 0.0
    %330 = vmatpush1.xpose.msra.mxu0 0.0
    %331 = vmatprep.subr.mxu0 0.0
    %332 = vmatpush1.xpose.msra.mxu0 0.0
    %333 = vmatprep.subr.mxu0 0.0
    %334 = vmatpush1.xpose.msra.mxu0 0.0
    %335 = vmatprep.subr.mxu0 0.0
    %336 = vmatpush1.xpose.msra.mxu0 0.0
    %337 = vmatprep.subr.mxu0 0.0
    %338 = vmatpush1.xpose.msra.mxu0 0.0
    %339 = vmatprep.subr.mxu0 0.0
    %340 = vmatpush1.xpose.msra.mxu0 0.0
    %341 = vmatprep.subr.mxu0 0.0
    %342 = vmatpush1.xpose.msra.mxu0 0.0
    %343 = vmatprep.subr.mxu0 0.0
    %344 = vmatpush1.xpose.msra.mxu0 0.0
    %345 = vmatprep.subr.mxu0 0.0
    %346 = vmatpush1.xpose.msra.mxu0 0.0
    %347 = vmatprep.subr.mxu0 0.0
    %348 = vmatpush1.xpose.msra.mxu0 0.0
    %349 = vmatprep.subr.mxu0 0.0
    %350 = vmatpush1.xpose.msra.mxu0 0.0
    %351 = vmatprep.subr.mxu0 0.0
    %352 = vmatpush1.xpose.msra.mxu0 0.0
    %353 = vmatprep.subr.mxu0 0.0
    %354 = vmatpush1.xpose.msra.mxu0 0.0
    %355 = vmatprep.subr.mxu0 0.0
    %356 = vmatpush1.xpose.msra.mxu0 0.0
    %357 = vmatprep.subr.mxu0 0.0
    %358 = vmatpush1.xpose.msra.mxu0 0.0
    %359 = vmatprep.subr.mxu0 0.0
    %360 = vmatpush1.xpose.msra.mxu0 0.0
    %361 = vmatprep.subr.mxu0 0.0
    %362 = vmatpush1.xpose.msra.mxu0 0.0
    %363 = vmatprep.subr.mxu0 0.0
    %364 = vmatpush1.xpose.msra.mxu0 0.0
    %365 = vmatprep.subr.mxu0 0.0
    %366 = vmatpush1.xpose.msra.mxu0 0.0
    %367 = vmatprep.subr.mxu0 0.0
    %368 = vmatpush1.xpose.msra.mxu0 0.0
    %369 = vmatprep.subr.mxu0 0.0
    %370 = vmatpush1.xpose.msra.mxu0 0.0
    %371 = vmatprep.subr.mxu0 0.0
    %372 = vmatpush1.xpose.msra.mxu0 0.0
    %373 = vmatprep.subr.mxu0 0.0
    %374 = vmatpush1.xpose.msra.mxu0 0.0
    %375 = vmatprep.subr.mxu0 0.0
    %376 = vmatpush1.xpose.msra.mxu0 0.0
    %377 = vmatprep.subr.mxu0 0.0
    %378 = vmatpush1.xpose.msra.mxu0 0.0
    %379 = vmatprep.subr.mxu0 0.0
    %380 = vmatpush1.xpose.msra.mxu0 0.0
    %381 = vmatprep.subr.mxu0 0.0
    %382 = vmatpush1.xpose.msra.mxu0 0.0
    %383 = vmatprep.subr.mxu0 0.0
    %384 = vmatpush1.xpose.msra.mxu0 0.0
    %385 = vmatprep.mubr.f32.mxu0 0.0
    %386 = vmatmul.mubr.f32.gmra.mrb[0].mxu0 %v317
    %v387 = vpop.f32.mrb[0].mxu0
    %v388 = vadd.f32 %v53, %v387
    %v389 = vpop.f32.mrb[0].mxu0
    %390 = vdwg.mxu0
    %392 = vrot.lane.b32.xlu0 %v310, 96
    %v393 = vpop.permute.xlu0 %392
    %v394 = vsel %vm316, %v310, 0
    %v396 = vsel %vm316, %v393, 0
    %398 = vmatprep.subr.mxu0 0.0
    %399 = vmatpush1.xpose.msra.mxu0 %v396
    %400 = vmatprep.subr.mxu0 0.0
    %401 = vmatpush1.xpose.msra.mxu0 0.0
    %402 = vmatprep.subr.mxu0 0.0
    %403 = vmatpush1.xpose.msra.mxu0 0.0
    %404 = vmatprep.subr.mxu0 0.0
    %405 = vmatpush1.xpose.msra.mxu0 0.0
    %406 = vmatprep.subr.mxu0 0.0
    %407 = vmatpush1.xpose.msra.mxu0 0.0
    %408 = vmatprep.subr.mxu0 0.0
    %409 = vmatpush1.xpose.msra.mxu0 0.0
    %410 = vmatprep.subr.mxu0 0.0
    %411 = vmatpush1.xpose.msra.mxu0 0.0
    %412 = vmatprep.subr.mxu0 0.0
    %413 = vmatpush1.xpose.msra.mxu0 0.0
    %414 = vmatprep.subr.mxu0 0.0
    %415 = vmatpush1.xpose.msra.mxu0 0.0
    %416 = vmatprep.subr.mxu0 0.0
    %417 = vmatpush1.xpose.msra.mxu0 0.0
    %418 = vmatprep.subr.mxu0 0.0
    %419 = vmatpush1.xpose.msra.mxu0 0.0
    %420 = vmatprep.subr.mxu0 0.0
    %421 = vmatpush1.xpose.msra.mxu0 0.0
    %422 = vmatprep.subr.mxu0 0.0
    %423 = vmatpush1.xpose.msra.mxu0 0.0
    %424 = vmatprep.subr.mxu0 0.0
    %425 = vmatpush1.xpose.msra.mxu0 0.0
    %426 = vmatprep.subr.mxu0 0.0
    %427 = vmatpush1.xpose.msra.mxu0 0.0
    %428 = vmatprep.subr.mxu0 0.0
    %429 = vmatpush1.xpose.msra.mxu0 0.0
    %430 = vmatprep.subr.mxu0 0.0
    %431 = vmatpush1.xpose.msra.mxu0 0.0
    %432 = vmatprep.subr.mxu0 0.0
    %433 = vmatpush1.xpose.msra.mxu0 0.0
    %434 = vmatprep.subr.mxu0 0.0
    %435 = vmatpush1.xpose.msra.mxu0 0.0
    %436 = vmatprep.subr.mxu0 0.0
    %437 = vmatpush1.xpose.msra.mxu0 0.0
    %438 = vmatprep.subr.mxu0 0.0
    %439 = vmatpush1.xpose.msra.mxu0 0.0
    %440 = vmatprep.subr.mxu0 0.0
    %441 = vmatpush1.xpose.msra.mxu0 0.0
    %442 = vmatprep.subr.mxu0 0.0
    %443 = vmatpush1.xpose.msra.mxu0 0.0
    %444 = vmatprep.subr.mxu0 0.0
    %445 = vmatpush1.xpose.msra.mxu0 0.0
    %446 = vmatprep.subr.mxu0 0.0
    %447 = vmatpush1.xpose.msra.mxu0 0.0
    %448 = vmatprep.subr.mxu0 0.0
    %449 = vmatpush1.xpose.msra.mxu0 0.0
    %450 = vmatprep.subr.mxu0 0.0
    %451 = vmatpush1.xpose.msra.mxu0 0.0
    %452 = vmatprep.subr.mxu0 0.0
    %453 = vmatpush1.xpose.msra.mxu0 0.0
    %454 = vmatprep.subr.mxu0 0.0
    %455 = vmatpush1.xpose.msra.mxu0 0.0
    %456 = vmatprep.subr.mxu0 0.0
    %457 = vmatpush1.xpose.msra.mxu0 0.0
    %458 = vmatprep.subr.mxu0 0.0
    %459 = vmatpush1.xpose.msra.mxu0 0.0
    %460 = vmatprep.subr.mxu0 0.0
    %461 = vmatpush1.xpose.msra.mxu0 0.0
    %462 = vmatprep.mubr.f32.mxu0 0.0
    %463 = vmatmul.mubr.f32.gmra.mrb[0].mxu0 %v394
    %v464 = vpop.f32.mrb[0].mxu0
    %v465 = vadd.f32 %v54, %v464
    %v466 = vpop.f32.mrb[0].mxu0
    %467 = vdwg.mxu0
    %v468 = vsel %vm316, %v388, -inf
    %469 = vmax.xlane.f32.xlu0 %v468
    %v470 = vpop.xlane.xlu0 %469
    %v471 = vsel %vm316, %v465, -inf
    %472 = vmax.xlane.f32.xlu0 %v471
    %v473 = vpop.xlane.xlu0 %472
    %v474 = vsub.f32 %v388, %v470
    %v475 = vsub.f32 %v465, %v473
    %v476 = vmul.f32 %v474, 1.442695
    %v477 = vpow.pop %v476
    %v478 = vmul.f32 %v475, 1.442695
    %v479 = vpow.pop %v478
    %v480 = vsel %vm316, %v477, 0.0
    %481 = vadd.xlane.f32.xlu0 %v480
    %v482 = vpop.xlane.xlu0 %481
    %v483 = vsel %vm316, %v479, 0.0
    %484 = vadd.xlane.f32.xlu0 %v483
    %v485 = vpop.xlane.xlu0 %484
    %v486 = vrcp.pop %v482
    %v487 = vrcp.pop %v485
    %v488 = vmul.f32 %v477, %v486
    %v489 = vmul.f32 %v479, %v487
    %490 = vrot.lane.b32.xlu0 %v305, 64
    %v491 = vpop.permute.xlu0 %490
    %v494 = vsel %vm316, %v488, 0
    %496 = vmatprep.subr.mxu0 0.0
    %497 = vmatpush1.msra.mxu0 %v491
    %498 = vmatprep.subr.mxu0 0.0
    %499 = vmatpush1.msra.mxu0 0.0
    %500 = vmatprep.subr.mxu0 0.0
    %501 = vmatpush1.msra.mxu0 0.0
    %502 = vmatprep.subr.mxu0 0.0
    %503 = vmatpush1.msra.mxu0 0.0
    %504 = vmatprep.subr.mxu0 0.0
    %505 = vmatpush1.msra.mxu0 0.0
    %506 = vmatprep.subr.mxu0 0.0
    %507 = vmatpush1.msra.mxu0 0.0
    %508 = vmatprep.subr.mxu0 0.0
    %509 = vmatpush1.msra.mxu0 0.0
    %510 = vmatprep.subr.mxu0 0.0
    %511 = vmatpush1.msra.mxu0 0.0
    %512 = vmatprep.subr.mxu0 0.0
    %513 = vmatpush1.msra.mxu0 0.0
    %514 = vmatprep.subr.mxu0 0.0
    %515 = vmatpush1.msra.mxu0 0.0
    %516 = vmatprep.subr.mxu0 0.0
    %517 = vmatpush1.msra.mxu0 0.0
    %518 = vmatprep.subr.mxu0 0.0
    %519 = vmatpush1.msra.mxu0 0.0
    %520 = vmatprep.subr.mxu0 0.0
    %521 = vmatpush1.msra.mxu0 0.0
    %522 = vmatprep.subr.mxu0 0.0
    %523 = vmatpush1.msra.mxu0 0.0
    %524 = vmatprep.subr.mxu0 0.0
    %525 = vmatpush1.msra.mxu0 0.0
    %526 = vmatprep.subr.mxu0 0.0
    %527 = vmatpush1.msra.mxu0 0.0
    %528 = vmatprep.subr.mxu0 0.0
    %529 = vmatpush1.msra.mxu0 0.0
    %530 = vmatprep.subr.mxu0 0.0
    %531 = vmatpush1.msra.mxu0 0.0
    %532 = vmatprep.subr.mxu0 0.0
    %533 = vmatpush1.msra.mxu0 0.0
    %534 = vmatprep.subr.mxu0 0.0
    %535 = vmatpush1.msra.mxu0 0.0
    %536 = vmatprep.subr.mxu0 0.0
    %537 = vmatpush1.msra.mxu0 0.0
    %538 = vmatprep.subr.mxu0 0.0
    %539 = vmatpush1.msra.mxu0 0.0
    %540 = vmatprep.subr.mxu0 0.0
    %541 = vmatpush1.msra.mxu0 0.0
    %542 = vmatprep.subr.mxu0 0.0
    %543 = vmatpush1.msra.mxu0 0.0
    %544 = vmatprep.subr.mxu0 0.0
    %545 = vmatpush1.msra.mxu0 0.0
    %546 = vmatprep.subr.mxu0 0.0
    %547 = vmatpush1.msra.mxu0 0.0
    %548 = vmatprep.subr.mxu0 0.0
    %549 = vmatpush1.msra.mxu0 0.0
    %550 = vmatprep.subr.mxu0 0.0
    %551 = vmatpush1.msra.mxu0 0.0
    %552 = vmatprep.subr.mxu0 0.0
    %553 = vmatpush1.msra.mxu0 0.0
    %554 = vmatprep.subr.mxu0 0.0
    %555 = vmatpush1.msra.mxu0 0.0
    %556 = vmatprep.subr.mxu0 0.0
    %557 = vmatpush1.msra.mxu0 0.0
    %558 = vmatprep.subr.mxu0 0.0
    %559 = vmatpush1.msra.mxu0 0.0
    %560 = vmatprep.mubr.f32.mxu0 0.0
    %561 = vmatmul.mubr.f32.gmra.mrb[0].mxu0 %v494
    %v562 = vpop.f32.mrb[0].mxu0
    %v563 = vadd.f32 0.0, %v562
    %v564 = vpop.f32.mrb[0].mxu0
    %565 = vdwg.mxu0
    %566 = vrot.lane.b32.xlu0 %v310, 64
    %v567 = vpop.permute.xlu0 %566
    %v570 = vsel %vm316, %v489, 0
    %572 = vmatprep.subr.mxu0 0.0
    %573 = vmatpush1.msra.mxu0 %v567
    %574 = vmatprep.subr.mxu0 0.0
    %575 = vmatpush1.msra.mxu0 0.0
    %576 = vmatprep.subr.mxu0 0.0
    %577 = vmatpush1.msra.mxu0 0.0
    %578 = vmatprep.subr.mxu0 0.0
    %579 = vmatpush1.msra.mxu0 0.0
    %580 = vmatprep.subr.mxu0 0.0
    %581 = vmatpush1.msra.mxu0 0.0
    %582 = vmatprep.subr.mxu0 0.0
    %583 = vmatpush1.msra.mxu0 0.0
    %584 = vmatprep.subr.mxu0 0.0
    %585 = vmatpush1.msra.mxu0 0.0
    %586 = vmatprep.subr.mxu0 0.0
    %587 = vmatpush1.msra.mxu0 0.0
    %588 = vmatprep.subr.mxu0 0.0
    %589 = vmatpush1.msra.mxu0 0.0
    %590 = vmatprep.subr.mxu0 0.0
    %591 = vmatpush1.msra.mxu0 0.0
    %592 = vmatprep.subr.mxu0 0.0
    %593 = vmatpush1.msra.mxu0 0.0
    %594 = vmatprep.subr.mxu0 0.0
    %595 = vmatpush1.msra.mxu0 0.0
    %596 = vmatprep.subr.mxu0 0.0
    %597 = vmatpush1.msra.mxu0 0.0
    %598 = vmatprep.subr.mxu0 0.0
    %599 = vmatpush1.msra.mxu0 0.0
    %600 = vmatprep.subr.mxu0 0.0
    %601 = vmatpush1.msra.mxu0 0.0
    %602 = vmatprep.subr.mxu0 0.0
    %603 = vmatpush1.msra.mxu0 0.0
    %604 = vmatprep.subr.mxu0 0.0
    %605 = vmatpush1.msra.mxu0 0.0
    %606 = vmatprep.subr.mxu0 0.0
    %607 = vmatpush1.msra.mxu0 0.0
    %608 = vmatprep.subr.mxu0 0.0
    %609 = vmatpush1.msra.mxu0 0.0
    %610 = vmatprep.subr.mxu0 0.0
    %611 = vmatpush1.msra.mxu0 0.0
    %612 = vmatprep.subr.mxu0 0.0
    %613 = vmatpush1.msra.mxu0 0.0
    %614 = vmatprep.subr.mxu0 0.0
    %615 = vmatpush1.msra.mxu0 0.0
    %616 = vmatprep.subr.mxu0 0.0
    %617 = vmatpush1.msra.mxu0 0.0
    %618 = vmatprep.subr.mxu0 0.0
    %619 = vmatpush1.msra.mxu0 0.0
    %620 = vmatprep.subr.mxu0 0.0
    %621 = vmatpush1.msra.mxu0 0.0
    %622 = vmatprep.subr.mxu0 0.0
    %623 = vmatpush1.msra.mxu0 0.0
    %624 = vmatprep.subr.mxu0 0.0
    %625 = vmatpush1.msra.mxu0 0.0
    %626 = vmatprep.subr.mxu0 0.0
    %627 = vmatpush1.msra.mxu0 0.0
    %628 = vmatprep.subr.mxu0 0.0
    %629 = vmatpush1.msra.mxu0 0.0
    %630 = vmatprep.subr.mxu0 0.0
    %631 = vmatpush1.msra.mxu0 0.0
    %632 = vmatprep.subr.mxu0 0.0
    %633 = vmatpush1.msra.mxu0 0.0
    %634 = vmatprep.subr.mxu0 0.0
    %635 = vmatpush1.msra.mxu0 0.0
    %636 = vmatprep.mubr.f32.mxu0 0.0
    %637 = vmatmul.mubr.f32.gmra.mrb[0].mxu0 %v570
    %v638 = vpop.f32.mrb[0].mxu0
    %v639 = vadd.f32 0.0, %v638
    %v640 = vpop.f32.mrb[0].mxu0
    %641 = vdwg.mxu0
    %642 = vrot.lane.b32.xlu0 %v305, 120
    %v643 = vpop.permute.xlu0 %642
    %644 = vrot.lane.b32.xlu0 %v305, 88
    %v645 = vpop.permute.xlu0 %644
    %v646 = vsel %vm316, %v643, 0
    %v648 = vsel %vm316, %v645, 0
    %650 = vmatprep.subr.mxu0 0.0
    %651 = vmatpush1.xpose.msra.mxu0 %v648
    %652 = vmatprep.subr.mxu0 0.0
    %653 = vmatpush1.xpose.msra.mxu0 0.0
    %654 = vmatprep.subr.mxu0 0.0
    %655 = vmatpush1.xpose.msra.mxu0 0.0
    %656 = vmatprep.subr.mxu0 0.0
    %657 = vmatpush1.xpose.msra.mxu0 0.0
    %658 = vmatprep.subr.mxu0 0.0
    %659 = vmatpush1.xpose.msra.mxu0 0.0
    %660 = vmatprep.subr.mxu0 0.0
    %661 = vmatpush1.xpose.msra.mxu0 0.0
    %662 = vmatprep.subr.mxu0 0.0
    %663 = vmatpush1.xpose.msra.mxu0 0.0
    %664 = vmatprep.subr.mxu0 0.0
    %665 = vmatpush1.xpose.msra.mxu0 0.0
    %666 = vmatprep.subr.mxu0 0.0
    %667 = vmatpush1.xpose.msra.mxu0 0.0
    %668 = vmatprep.subr.mxu0 0.0
    %669 = vmatpush1.xpose.msra.mxu0 0.0
    %670 = vmatprep.subr.mxu0 0.0
    %671 = vmatpush1.xpose.msra.mxu0 0.0
    %672 = vmatprep.subr.mxu0 0.0
    %673 = vmatpush1.xpose.msra.mxu0 0.0
    %674 = vmatprep.subr.mxu0 0.0
    %675 = vmatpush1.xpose.msra.mxu0 0.0
    %676 = vmatprep.subr.mxu0 0.0
    %677 = vmatpush1.xpose.msra.mxu0 0.0
    %678 = vmatprep.subr.mxu0 0.0
    %679 = vmatpush1.xpose.msra.mxu0 0.0
    %680 = vmatprep.subr.mxu0 0.0
    %681 = vmatpush1.xpose.msra.mxu0 0.0
    %682 = vmatprep.subr.mxu0 0.0
    %683 = vmatpush1.xpose.msra.mxu0 0.0
    %684 = vmatprep.subr.mxu0 0.0
    %685 = vmatpush1.xpose.msra.mxu0 0.0
    %686 = vmatprep.subr.mxu0 0.0
    %687 = vmatpush1.xpose.msra.mxu0 0.0
    %688 = vmatprep.subr.mxu0 0.0
    %689 = vmatpush1.xpose.msra.mxu0 0.0
    %690 = vmatprep.subr.mxu0 0.0
    %691 = vmatpush1.xpose.msra.mxu0 0.0
    %692 = vmatprep.subr.mxu0 0.0
    %693 = vmatpush1.xpose.msra.mxu0 0.0
    %694 = vmatprep.subr.mxu0 0.0
    %695 = vmatpush1.xpose.msra.mxu0 0.0
    %696 = vmatprep.subr.mxu0 0.0
    %697 = vmatpush1.xpose.msra.mxu0 0.0
    %698 = vmatprep.subr.mxu0 0.0
    %699 = vmatpush1.xpose.msra.mxu0 0.0
    %700 = vmatprep.subr.mxu0 0.0
    %701 = vmatpush1.xpose.msra.mxu0 0.0
    %702 = vmatprep.subr.mxu0 0.0
    %703 = vmatpush1.xpose.msra.mxu0 0.0
    %704 = vmatprep.subr.mxu0 0.0
    %705 = vmatpush1.xpose.msra.mxu0 0.0
    %706 = vmatprep.subr.mxu0 0.0
    %707 = vmatpush1.xpose.msra.mxu0 0.0
    %708 = vmatprep.subr.mxu0 0.0
    %709 = vmatpush1.xpose.msra.mxu0 0.0
    %710 = vmatprep.subr.mxu0 0.0
    %711 = vmatpush1.xpose.msra.mxu0 0.0
    %712 = vmatprep.subr.mxu0 0.0
    %713 = vmatpush1.xpose.msra.mxu0 0.0
    %714 = vmatprep.mubr.f32.mxu0 0.0
    %715 = vmatmul.mubr.f32.gmra.mrb[0].mxu0 %v646
    %v716 = vpop.f32.mrb[0].mxu0
    %v717 = vadd.f32 %v53, %v716
    %v718 = vpop.f32.mrb[0].mxu0
    %719 = vdwg.mxu0
    %720 = vrot.lane.b32.xlu0 %v310, 120
    %v721 = vpop.permute.xlu0 %720
    %722 = vrot.lane.b32.xlu0 %v310, 88
    %v723 = vpop.permute.xlu0 %722
    %v724 = vsel %vm316, %v721, 0
    %v726 = vsel %vm316, %v723, 0
    %728 = vmatprep.subr.mxu0 0.0
    %729 = vmatpush1.xpose.msra.mxu0 %v726
    %730 = vmatprep.subr.mxu0 0.0
    %731 = vmatpush1.xpose.msra.mxu0 0.0
    %732 = vmatprep.subr.mxu0 0.0
    %733 = vmatpush1.xpose.msra.mxu0 0.0
    %734 = vmatprep.subr.mxu0 0.0
    %735 = vmatpush1.xpose.msra.mxu0 0.0
    %736 = vmatprep.subr.mxu0 0.0
    %737 = vmatpush1.xpose.msra.mxu0 0.0
    %738 = vmatprep.subr.mxu0 0.0
    %739 = vmatpush1.xpose.msra.mxu0 0.0
    %740 = vmatprep.subr.mxu0 0.0
    %741 = vmatpush1.xpose.msra.mxu0 0.0
    %742 = vmatprep.subr.mxu0 0.0
    %743 = vmatpush1.xpose.msra.mxu0 0.0
    %744 = vmatprep.subr.mxu0 0.0
    %745 = vmatpush1.xpose.msra.mxu0 0.0
    %746 = vmatprep.subr.mxu0 0.0
    %747 = vmatpush1.xpose.msra.mxu0 0.0
    %748 = vmatprep.subr.mxu0 0.0
    %749 = vmatpush1.xpose.msra.mxu0 0.0
    %750 = vmatprep.subr.mxu0 0.0
    %751 = vmatpush1.xpose.msra.mxu0 0.0
    %752 = vmatprep.subr.mxu0 0.0
    %753 = vmatpush1.xpose.msra.mxu0 0.0
    %754 = vmatprep.subr.mxu0 0.0
    %755 = vmatpush1.xpose.msra.mxu0 0.0
    %756 = vmatprep.subr.mxu0 0.0
    %757 = vmatpush1.xpose.msra.mxu0 0.0
    %758 = vmatprep.subr.mxu0 0.0
    %759 = vmatpush1.xpose.msra.mxu0 0.0
    %760 = vmatprep.subr.mxu0 0.0
    %761 = vmatpush1.xpose.msra.mxu0 0.0
    %762 = vmatprep.subr.mxu0 0.0
    %763 = vmatpush1.xpose.msra.mxu0 0.0
    %764 = vmatprep.subr.mxu0 0.0
    %765 = vmatpush1.xpose.msra.mxu0 0.0
    %766 = vmatprep.subr.mxu0 0.0
    %767 = vmatpush1.xpose.msra.mxu0 0.0
    %768 = vmatprep.subr.mxu0 0.0
    %769 = vmatpush1.xpose.msra.mxu0 0.0
    %770 = vmatprep.subr.mxu0 0.0
    %771 = vmatpush1.xpose.msra.mxu0 0.0
    %772 = vmatprep.subr.mxu0 0.0
    %773 = vmatpush1.xpose.msra.mxu0 0.0
    %774 = vmatprep.subr.mxu0 0.0
    %775 = vmatpush1.xpose.msra.mxu0 0.0
    %776 = vmatprep.subr.mxu0 0.0
    %777 = vmatpush1.xpose.msra.mxu0 0.0
    %778 = vmatprep.subr.mxu0 0.0
    %779 = vmatpush1.xpose.msra.mxu0 0.0
    %780 = vmatprep.subr.mxu0 0.0
    %781 = vmatpush1.xpose.msra.mxu0 0.0
    %782 = vmatprep.subr.mxu0 0.0
    %783 = vmatpush1.xpose.msra.mxu0 0.0
    %784 = vmatprep.subr.mxu0 0.0
    %785 = vmatpush1.xpose.msra.mxu0 0.0
    %786 = vmatprep.subr.mxu0 0.0
    %787 = vmatpush1.xpose.msra.mxu0 0.0
    %788 = vmatprep.subr.mxu0 0.0
    %789 = vmatpush1.xpose.msra.mxu0 0.0
    %790 = vmatprep.subr.mxu0 0.0
    %791 = vmatpush1.xpose.msra.mxu0 0.0
    %792 = vmatprep.mubr.f32.mxu0 0.0
    %793 = vmatmul.mubr.f32.gmra.mrb[0].mxu0 %v724
    %v794 = vpop.f32.mrb[0].mxu0
    %v795 = vadd.f32 %v54, %v794
    %v796 = vpop.f32.mrb[0].mxu0
    %797 = vdwg.mxu0
    %v798 = vsel %vm316, %v717, -inf
    %799 = vmax.xlane.f32.xlu0 %v798
    %v800 = vpop.xlane.xlu0 %799
    %v801 = vsel %vm316, %v795, -inf
    %802 = vmax.xlane.f32.xlu0 %v801
    %v803 = vpop.xlane.xlu0 %802
    %v804 = vsub.f32 %v717, %v800
    %v805 = vsub.f32 %v795, %v803
    %v806 = vmul.f32 %v804, 1.442695
    %v807 = vpow.pop %v806
    %v808 = vmul.f32 %v805, 1.442695
    %v809 = vpow.pop %v808
    %v810 = vsel %vm316, %v807, 0.0
    %811 = vadd.xlane.f32.xlu0 %v810
    %v812 = vpop.xlane.xlu0 %811
    %v813 = vsel %vm316, %v809, 0.0
    %814 = vadd.xlane.f32.xlu0 %v813
    %v815 = vpop.xlane.xlu0 %814
    %v816 = vrcp.pop %v812
    %v817 = vrcp.pop %v815
    %v818 = vmul.f32 %v807, %v816
    %v819 = vmul.f32 %v809, %v817
    %820 = vrot.lane.b32.xlu0 %v305, 56
    %v821 = vpop.permute.xlu0 %820
    %v824 = vsel %vm316, %v818, 0
    %826 = vmatprep.subr.mxu0 0.0
    %827 = vmatpush1.msra.mxu0 %v821
    %828 = vmatprep.subr.mxu0 0.0
    %829 = vmatpush1.msra.mxu0 0.0
    %830 = vmatprep.subr.mxu0 0.0
    %831 = vmatpush1.msra.mxu0 0.0
    %832 = vmatprep.subr.mxu0 0.0
    %833 = vmatpush1.msra.mxu0 0.0
    %834 = vmatprep.subr.mxu0 0.0
    %835 = vmatpush1.msra.mxu0 0.0
    %836 = vmatprep.subr.mxu0 0.0
    %837 = vmatpush1.msra.mxu0 0.0
    %838 = vmatprep.subr.mxu0 0.0
    %839 = vmatpush1.msra.mxu0 0.0
    %840 = vmatprep.subr.mxu0 0.0
    %841 = vmatpush1.msra.mxu0 0.0
    %842 = vmatprep.subr.mxu0 0.0
    %843 = vmatpush1.msra.mxu0 0.0
    %844 = vmatprep.subr.mxu0 0.0
    %845 = vmatpush1.msra.mxu0 0.0
    %846 = vmatprep.subr.mxu0 0.0
    %847 = vmatpush1.msra.mxu0 0.0
    %848 = vmatprep.subr.mxu0 0.0
    %849 = vmatpush1.msra.mxu0 0.0
    %850 = vmatprep.subr.mxu0 0.0
    %851 = vmatpush1.msra.mxu0 0.0
    %852 = vmatprep.subr.mxu0 0.0
    %853 = vmatpush1.msra.mxu0 0.0
    %854 = vmatprep.subr.mxu0 0.0
    %855 = vmatpush1.msra.mxu0 0.0
    %856 = vmatprep.subr.mxu0 0.0
    %857 = vmatpush1.msra.mxu0 0.0
    %858 = vmatprep.subr.mxu0 0.0
    %859 = vmatpush1.msra.mxu0 0.0
    %860 = vmatprep.subr.mxu0 0.0
    %861 = vmatpush1.msra.mxu0 0.0
    %862 = vmatprep.subr.mxu0 0.0
    %863 = vmatpush1.msra.mxu0 0.0
    %864 = vmatprep.subr.mxu0 0.0
    %865 = vmatpush1.msra.mxu0 0.0
    %866 = vmatprep.subr.mxu0 0.0
    %867 = vmatpush1.msra.mxu0 0.0
    %868 = vmatprep.subr.mxu0 0.0
    %869 = vmatpush1.msra.mxu0 0.0
    %870 = vmatprep.subr.mxu0 0.0
    %871 = vmatpush1.msra.mxu0 0.0
    %872 = vmatprep.subr.mxu0 0.0
    %873 = vmatpush1.msra.mxu0 0.0
    %874 = vmatprep.subr.mxu0 0.0
    %875 = vmatpush1.msra.mxu0 0.0
    %876 = vmatprep.subr.mxu0 0.0
    %877 = vmatpush1.msra.mxu0 0.0
    %878 = vmatprep.subr.mxu0 0.0
    %879 = vmatpush1.msra.mxu0 0.0
    %880 = vmatprep.subr.mxu0 0.0
    %881 = vmatpush1.msra.mxu0 0.0
    %882 = vmatprep.subr.mxu0 0.0
    %883 = vmatpush1.msra.mxu0 0.0
    %884 = vmatprep.subr.mxu0 0.0
    %885 = vmatpush1.msra.mxu0 0.0
    %886 = vmatprep.subr.mxu0 0.0
    %887 = vmatpush1.msra.mxu0 0.0
    %888 = vmatprep.subr.mxu0 0.0
    %889 = vmatpush1.msra.mxu0 0.0
    %890 = vmatprep.mubr.f32.mxu0 0.0
    %891 = vmatmul.mubr.f32.gmra.mrb[0].mxu0 %v824
    %v892 = vpop.f32.mrb[0].mxu0
    %v893 = vadd.f32 0.0, %v892
    %v894 = vpop.f32.mrb[0].mxu0
    %895 = vdwg.mxu0
    %896 = vrot.lane.b32.xlu0 %v310, 56
    %v897 = vpop.permute.xlu0 %896
    %v900 = vsel %vm316, %v819, 0
    %902 = vmatprep.subr.mxu0 0.0
    %903 = vmatpush1.msra.mxu0 %v897
    %904 = vmatprep.subr.mxu0 0.0
    %905 = vmatpush1.msra.mxu0 0.0
    %906 = vmatprep.subr.mxu0 0.0
    %907 = vmatpush1.msra.mxu0 0.0
    %908 = vmatprep.subr.mxu0 0.0
    %909 = vmatpush1.msra.mxu0 0.0
    %910 = vmatprep.subr.mxu0 0.0
    %911 = vmatpush1.msra.mxu0 0.0
    %912 = vmatprep.subr.mxu0 0.0
    %913 = vmatpush1.msra.mxu0 0.0
    %914 = vmatprep.subr.mxu0 0.0
    %915 = vmatpush1.msra.mxu0 0.0
    %916 = vmatprep.subr.mxu0 0.0
    %917 = vmatpush1.msra.mxu0 0.0
    %918 = vmatprep.subr.mxu0 0.0
    %919 = vmatpush1.msra.mxu0 0.0
    %920 = vmatprep.subr.mxu0 0.0
    %921 = vmatpush1.msra.mxu0 0.0
    %922 = vmatprep.subr.mxu0 0.0
    %923 = vmatpush1.msra.mxu0 0.0
    %924 = vmatprep.subr.mxu0 0.0
    %925 = vmatpush1.msra.mxu0 0.0
    %926 = vmatprep.subr.mxu0 0.0
    %927 = vmatpush1.msra.mxu0 0.0
    %928 = vmatprep.subr.mxu0 0.0
    %929 = vmatpush1.msra.mxu0 0.0
    %930 = vmatprep.subr.mxu0 0.0
    %931 = vmatpush1.msra.mxu0 0.0
    %932 = vmatprep.subr.mxu0 0.0
    %933 = vmatpush1.msra.mxu0 0.0
    %934 = vmatprep.subr.mxu0 0.0
    %935 = vmatpush1.msra.mxu0 0.0
    %936 = vmatprep.subr.mxu0 0.0
    %937 = vmatpush1.msra.mxu0 0.0
    %938 = vmatprep.subr.mxu0 0.0
    %939 = vmatpush1.msra.mxu0 0.0
    %940 = vmatprep.subr.mxu0 0.0
    %941 = vmatpush1.msra.mxu0 0.0
    %942 = vmatprep.subr.mxu0 0.0
    %943 = vmatpush1.msra.mxu0 0.0
    %944 = vmatprep.subr.mxu0 0.0
    %945 = vmatpush1.msra.mxu0 0.0
    %946 = vmatprep.subr.mxu0 0.0
    %947 = vmatpush1.msra.mxu0 0.0
    %948 = vmatprep.subr.mxu0 0.0
    %949 = vmatpush1.msra.mxu0 0.0
    %950 = vmatprep.subr.mxu0 0.0
    %951 = vmatpush1.msra.mxu0 0.0
    %952 = vmatprep.subr.mxu0 0.0
    %953 = vmatpush1.msra.mxu0 0.0
    %954 = vmatprep.subr.mxu0 0.0
    %955 = vmatpush1.msra.mxu0 0.0
    %956 = vmatprep.subr.mxu0 0.0
    %957 = vmatpush1.msra.mxu0 0.0
    %958 = vmatprep.subr.mxu0 0.0
    %959 = vmatpush1.msra.mxu0 0.0
    %960 = vmatprep.subr.mxu0 0.0
    %961 = vmatpush1.msra.mxu0 0.0
    %962 = vmatprep.subr.mxu0 0.0
    %963 = vmatpush1.msra.mxu0 0.0
    %964 = vmatprep.subr.mxu0 0.0
    %965 = vmatpush1.msra.mxu0 0.0
    %966 = vmatprep.mubr.f32.mxu0 0.0
    %967 = vmatmul.mubr.f32.gmra.mrb[0].mxu0 %v900
    %v968 = vpop.f32.mrb[0].mxu0
    %v969 = vadd.f32 0.0, %v968
    %v970 = vpop.f32.mrb[0].mxu0
    %971 = vdwg.mxu0
    %972 = vrot.lane.b32.xlu0 %v305, 112
    %v973 = vpop.permute.xlu0 %972
    %974 = vrot.lane.b32.xlu0 %v305, 80
    %v975 = vpop.permute.xlu0 %974
    %v976 = vsel %vm316, %v973, 0
    %v978 = vsel %vm316, %v975, 0
    %980 = vmatprep.subr.mxu0 0.0
    %981 = vmatpush1.xpose.msra.mxu0 %v978
    %982 = vmatprep.subr.mxu0 0.0
    %983 = vmatpush1.xpose.msra.mxu0 0.0
    %984 = vmatprep.subr.mxu0 0.0
    %985 = vmatpush1.xpose.msra.mxu0 0.0
    %986 = vmatprep.subr.mxu0 0.0
    %987 = vmatpush1.xpose.msra.mxu0 0.0
    %988 = vmatprep.subr.mxu0 0.0
    %989 = vmatpush1.xpose.msra.mxu0 0.0
    %990 = vmatprep.subr.mxu0 0.0
    %991 = vmatpush1.xpose.msra.mxu0 0.0
    %992 = vmatprep.subr.mxu0 0.0
    %993 = vmatpush1.xpose.msra.mxu0 0.0
    %994 = vmatprep.subr.mxu0 0.0
    %995 = vmatpush1.xpose.msra.mxu0 0.0
    %996 = vmatprep.subr.mxu0 0.0
    %997 = vmatpush1.xpose.msra.mxu0 0.0
    %998 = vmatprep.subr.mxu0 0.0
    %999 = vmatpush1.xpose.msra.mxu0 0.0
    %1000 = vmatprep.subr.mxu0 0.0
    %1001 = vmatpush1.xpose.msra.mxu0 0.0
    %1002 = vmatprep.subr.mxu0 0.0
    %1003 = vmatpush1.xpose.msra.mxu0 0.0
    %1004 = vmatprep.subr.mxu0 0.0
    %1005 = vmatpush1.xpose.msra.mxu0 0.0
    %1006 = vmatprep.subr.mxu0 0.0
    %1007 = vmatpush1.xpose.msra.mxu0 0.0
    %1008 = vmatprep.subr.mxu0 0.0
    %1009 = vmatpush1.xpose.msra.mxu0 0.0
    %1010 = vmatprep.subr.mxu0 0.0
    %1011 = vmatpush1.xpose.msra.mxu0 0.0
    %1012 = vmatprep.subr.mxu0 0.0
    %1013 = vmatpush1.xpose.msra.mxu0 0.0
    %1014 = vmatprep.subr.mxu0 0.0
    %1015 = vmatpush1.xpose.msra.mxu0 0.0
    %1016 = vmatprep.subr.mxu0 0.0
    %1017 = vmatpush1.xpose.msra.mxu0 0.0
    %1018 = vmatprep.subr.mxu0 0.0
    %1019 = vmatpush1.xpose.msra.mxu0 0.0
    %1020 = vmatprep.subr.mxu0 0.0
    %1021 = vmatpush1.xpose.msra.mxu0 0.0
    %1022 = vmatprep.subr.mxu0 0.0
    %1023 = vmatpush1.xpose.msra.mxu0 0.0
    %1024 = vmatprep.subr.mxu0 0.0
    %1025 = vmatpush1.xpose.msra.mxu0 0.0
    %1026 = vmatprep.subr.mxu0 0.0
    %1027 = vmatpush1.xpose.msra.mxu0 0.0
    %1028 = vmatprep.subr.mxu0 0.0
    %1029 = vmatpush1.xpose.msra.mxu0 0.0
    %1030 = vmatprep.subr.mxu0 0.0
    %1031 = vmatpush1.xpose.msra.mxu0 0.0
    %1032 = vmatprep.subr.mxu0 0.0
    %1033 = vmatpush1.xpose.msra.mxu0 0.0
    %1034 = vmatprep.subr.mxu0 0.0
    %1035 = vmatpush1.xpose.msra.mxu0 0.0
    %1036 = vmatprep.subr.mxu0 0.0
    %1037 = vmatpush1.xpose.msra.mxu0 0.0
    %1038 = vmatprep.subr.mxu0 0.0
    %1039 = vmatpush1.xpose.msra.mxu0 0.0
    %1040 = vmatprep.subr.mxu0 0.0
    %1041 = vmatpush1.xpose.msra.mxu0 0.0
    %1042 = vmatprep.subr.mxu0 0.0
    %1043 = vmatpush1.xpose.msra.mxu0 0.0
    %1044 = vmatprep.mubr.f32.mxu0 0.0
    %1045 = vmatmul.mubr.f32.gmra.mrb[0].mxu0 %v976
    %v1046 = vpop.f32.mrb[0].mxu0
    %v1047 = vadd.f32 %v53, %v1046
    %v1048 = vpop.f32.mrb[0].mxu0
    %1049 = vdwg.mxu0
    %1050 = vrot.lane.b32.xlu0 %v310, 112
    %v1051 = vpop.permute.xlu0 %1050
    %1052 = vrot.lane.b32.xlu0 %v310, 80
    %v1053 = vpop.permute.xlu0 %1052
    %v1054 = vsel %vm316, %v1051, 0
    %v1056 = vsel %vm316, %v1053, 0
    %1058 = vmatprep.subr.mxu0 0.0
    %1059 = vmatpush1.xpose.msra.mxu0 %v1056
    %1060 = vmatprep.subr.mxu0 0.0
    %1061 = vmatpush1.xpose.msra.mxu0 0.0
    %1062 = vmatprep.subr.mxu0 0.0
    %1063 = vmatpush1.xpose.msra.mxu0 0.0
    %1064 = vmatprep.subr.mxu0 0.0
    %1065 = vmatpush1.xpose.msra.mxu0 0.0
    %1066 = vmatprep.subr.mxu0 0.0
    %1067 = vmatpush1.xpose.msra.mxu0 0.0
    %1068 = vmatprep.subr.mxu0 0.0
    %1069 = vmatpush1.xpose.msra.mxu0 0.0
    %1070 = vmatprep.subr.mxu0 0.0
    %1071 = vmatpush1.xpose.msra.mxu0 0.0
    %1072 = vmatprep.subr.mxu0 0.0
    %1073 = vmatpush1.xpose.msra.mxu0 0.0
    %1074 = vmatprep.subr.mxu0 0.0
    %1075 = vmatpush1.xpose.msra.mxu0 0.0
    %1076 = vmatprep.subr.mxu0 0.0
    %1077 = vmatpush1.xpose.msra.mxu0 0.0
    %1078 = vmatprep.subr.mxu0 0.0
    %1079 = vmatpush1.xpose.msra.mxu0 0.0
    %1080 = vmatprep.subr.mxu0 0.0
    %1081 = vmatpush1.xpose.msra.mxu0 0.0
    %1082 = vmatprep.subr.mxu0 0.0
    %1083 = vmatpush1.xpose.msra.mxu0 0.0
    %1084 = vmatprep.subr.mxu0 0.0
    %1085 = vmatpush1.xpose.msra.mxu0 0.0
    %1086 = vmatprep.subr.mxu0 0.0
    %1087 = vmatpush1.xpose.msra.mxu0 0.0
    %1088 = vmatprep.subr.mxu0 0.0
    %1089 = vmatpush1.xpose.msra.mxu0 0.0
    %1090 = vmatprep.subr.mxu0 0.0
    %1091 = vmatpush1.xpose.msra.mxu0 0.0
    %1092 = vmatprep.subr.mxu0 0.0
    %1093 = vmatpush1.xpose.msra.mxu0 0.0
    %1094 = vmatprep.subr.mxu0 0.0
    %1095 = vmatpush1.xpose.msra.mxu0 0.0
    %1096 = vmatprep.subr.mxu0 0.0
    %1097 = vmatpush1.xpose.msra.mxu0 0.0
    %1098 = vmatprep.subr.mxu0 0.0
    %1099 = vmatpush1.xpose.msra.mxu0 0.0
    %1100 = vmatprep.subr.mxu0 0.0
    %1101 = vmatpush1.xpose.msra.mxu0 0.0
    %1102 = vmatprep.subr.mxu0 0.0
    %1103 = vmatpush1.xpose.msra.mxu0 0.0
    %1104 = vmatprep.subr.mxu0 0.0
    %1105 = vmatpush1.xpose.msra.mxu0 0.0
    %1106 = vmatprep.subr.mxu0 0.0
    %1107 = vmatpush1.xpose.msra.mxu0 0.0
    %1108 = vmatprep.subr.mxu0 0.0
    %1109 = vmatpush1.xpose.msra.mxu0 0.0
    %1110 = vmatprep.subr.mxu0 0.0
    %1111 = vmatpush1.xpose.msra.mxu0 0.0
    %1112 = vmatprep.subr.mxu0 0.0
    %1113 = vmatpush1.xpose.msra.mxu0 0.0
    %1114 = vmatprep.subr.mxu0 0.0
    %1115 = vmatpush1.xpose.msra.mxu0 0.0
    %1116 = vmatprep.subr.mxu0 0.0
    %1117 = vmatpush1.xpose.msra.mxu0 0.0
    %1118 = vmatprep.subr.mxu0 0.0
    %1119 = vmatpush1.xpose.msra.mxu0 0.0
    %1120 = vmatprep.subr.mxu0 0.0
    %1121 = vmatpush1.xpose.msra.mxu0 0.0
    %1122 = vmatprep.mubr.f32.mxu0 0.0
    %1123 = vmatmul.mubr.f32.gmra.mrb[0].mxu0 %v1054
    %v1124 = vpop.f32.mrb[0].mxu0
    %v1125 = vadd.f32 %v54, %v1124
    %v1126 = vpop.f32.mrb[0].mxu0
    %1127 = vdwg.mxu0
    %v1128 = vsel %vm316, %v1047, -inf
    %1129 = vmax.xlane.f32.xlu0 %v1128
    %v1130 = vpop.xlane.xlu0 %1129
    %v1131 = vsel %vm316, %v1125, -inf
    %1132 = vmax.xlane.f32.xlu0 %v1131
    %v1133 = vpop.xlane.xlu0 %1132
    %v1134 = vsub.f32 %v1047, %v1130
    %v1135 = vsub.f32 %v1125, %v1133
    %v1136 = vmul.f32 %v1134, 1.442695
    %v1137 = vpow.pop %v1136
    %v1138 = vmul.f32 %v1135, 1.442695
    %v1139 = vpow.pop %v1138
    %v1140 = vsel %vm316, %v1137, 0.0
    %1141 = vadd.xlane.f32.xlu0 %v1140
    %v1142 = vpop.xlane.xlu0 %1141
    %v1143 = vsel %vm316, %v1139, 0.0
    %1144 = vadd.xlane.f32.xlu0 %v1143
    %v1145 = vpop.xlane.xlu0 %1144
    %v1146 = vrcp.pop %v1142
    %v1147 = vrcp.pop %v1145
    %v1148 = vmul.f32 %v1137, %v1146
    %v1149 = vmul.f32 %v1139, %v1147
    %1150 = vrot.lane.b32.xlu0 %v305, 48
    %v1151 = vpop.permute.xlu0 %1150
    %v1154 = vsel %vm316, %v1148, 0
    %1156 = vmatprep.subr.mxu0 0.0
    %1157 = vmatpush1.msra.mxu0 %v1151
    %1158 = vmatprep.subr.mxu0 0.0
    %1159 = vmatpush1.msra.mxu0 0.0
    %1160 = vmatprep.subr.mxu0 0.0
    %1161 = vmatpush1.msra.mxu0 0.0
    %1162 = vmatprep.subr.mxu0 0.0
    %1163 = vmatpush1.msra.mxu0 0.0
    %1164 = vmatprep.subr.mxu0 0.0
    %1165 = vmatpush1.msra.mxu0 0.0
    %1166 = vmatprep.subr.mxu0 0.0
    %1167 = vmatpush1.msra.mxu0 0.0
    %1168 = vmatprep.subr.mxu0 0.0
    %1169 = vmatpush1.msra.mxu0 0.0
    %1170 = vmatprep.subr.mxu0 0.0
    %1171 = vmatpush1.msra.mxu0 0.0
    %1172 = vmatprep.subr.mxu0 0.0
    %1173 = vmatpush1.msra.mxu0 0.0
    %1174 = vmatprep.subr.mxu0 0.0
    %1175 = vmatpush1.msra.mxu0 0.0
    %1176 = vmatprep.subr.mxu0 0.0
    %1177 = vmatpush1.msra.mxu0 0.0
    %1178 = vmatprep.subr.mxu0 0.0
    %1179 = vmatpush1.msra.mxu0 0.0
    %1180 = vmatprep.subr.mxu0 0.0
    %1181 = vmatpush1.msra.mxu0 0.0
    %1182 = vmatprep.subr.mxu0 0.0
    %1183 = vmatpush1.msra.mxu0 0.0
    %1184 = vmatprep.subr.mxu0 0.0
    %1185 = vmatpush1.msra.mxu0 0.0
    %1186 = vmatprep.subr.mxu0 0.0
    %1187 = vmatpush1.msra.mxu0 0.0
    %1188 = vmatprep.subr.mxu0 0.0
    %1189 = vmatpush1.msra.mxu0 0.0
    %1190 = vmatprep.subr.mxu0 0.0
    %1191 = vmatpush1.msra.mxu0 0.0
    %1192 = vmatprep.subr.mxu0 0.0
    %1193 = vmatpush1.msra.mxu0 0.0
    %1194 = vmatprep.subr.mxu0 0.0
    %1195 = vmatpush1.msra.mxu0 0.0
    %1196 = vmatprep.subr.mxu0 0.0
    %1197 = vmatpush1.msra.mxu0 0.0
    %1198 = vmatprep.subr.mxu0 0.0
    %1199 = vmatpush1.msra.mxu0 0.0
    %1200 = vmatprep.subr.mxu0 0.0
    %1201 = vmatpush1.msra.mxu0 0.0
    %1202 = vmatprep.subr.mxu0 0.0
    %1203 = vmatpush1.msra.mxu0 0.0
    %1204 = vmatprep.subr.mxu0 0.0
    %1205 = vmatpush1.msra.mxu0 0.0
    %1206 = vmatprep.subr.mxu0 0.0
    %1207 = vmatpush1.msra.mxu0 0.0
    %1208 = vmatprep.subr.mxu0 0.0
    %1209 = vmatpush1.msra.mxu0 0.0
    %1210 = vmatprep.subr.mxu0 0.0
    %1211 = vmatpush1.msra.mxu0 0.0
    %1212 = vmatprep.subr.mxu0 0.0
    %1213 = vmatpush1.msra.mxu0 0.0
    %1214 = vmatprep.subr.mxu0 0.0
    %1215 = vmatpush1.msra.mxu0 0.0
    %1216 = vmatprep.subr.mxu0 0.0
    %1217 = vmatpush1.msra.mxu0 0.0
    %1218 = vmatprep.subr.mxu0 0.0
    %1219 = vmatpush1.msra.mxu0 0.0
    %1220 = vmatprep.mubr.f32.mxu0 0.0
    %1221 = vmatmul.mubr.f32.gmra.mrb[0].mxu0 %v1154
    %v1222 = vpop.f32.mrb[0].mxu0
    %v1223 = vadd.f32 0.0, %v1222
    %v1224 = vpop.f32.mrb[0].mxu0
    %1225 = vdwg.mxu0
    %1226 = vrot.lane.b32.xlu0 %v310, 48
    %v1227 = vpop.permute.xlu0 %1226
    %v1230 = vsel %vm316, %v1149, 0
    %1232 = vmatprep.subr.mxu0 0.0
    %1233 = vmatpush1.msra.mxu0 %v1227
    %1234 = vmatprep.subr.mxu0 0.0
    %1235 = vmatpush1.msra.mxu0 0.0
    %1236 = vmatprep.subr.mxu0 0.0
    %1237 = vmatpush1.msra.mxu0 0.0
    %1238 = vmatprep.subr.mxu0 0.0
    %1239 = vmatpush1.msra.mxu0 0.0
    %1240 = vmatprep.subr.mxu0 0.0
    %1241 = vmatpush1.msra.mxu0 0.0
    %1242 = vmatprep.subr.mxu0 0.0
    %1243 = vmatpush1.msra.mxu0 0.0
    %1244 = vmatprep.subr.mxu0 0.0
    %1245 = vmatpush1.msra.mxu0 0.0
    %1246 = vmatprep.subr.mxu0 0.0
    %1247 = vmatpush1.msra.mxu0 0.0
    %1248 = vmatprep.subr.mxu0 0.0
    %1249 = vmatpush1.msra.mxu0 0.0
    %1250 = vmatprep.subr.mxu0 0.0
    %1251 = vmatpush1.msra.mxu0 0.0
    %1252 = vmatprep.subr.mxu0 0.0
    %1253 = vmatpush1.msra.mxu0 0.0
    %1254 = vmatprep.subr.mxu0 0.0
    %1255 = vmatpush1.msra.mxu0 0.0
    %1256 = vmatprep.subr.mxu0 0.0
    %1257 = vmatpush1.msra.mxu0 0.0
    %1258 = vmatprep.subr.mxu0 0.0
    %1259 = vmatpush1.msra.mxu0 0.0
    %1260 = vmatprep.subr.mxu0 0.0
    %1261 = vmatpush1.msra.mxu0 0.0
    %1262 = vmatprep.subr.mxu0 0.0
    %1263 = vmatpush1.msra.mxu0 0.0
    %1264 = vmatprep.subr.mxu0 0.0
    %1265 = vmatpush1.msra.mxu0 0.0
    %1266 = vmatprep.subr.mxu0 0.0
    %1267 = vmatpush1.msra.mxu0 0.0
    %1268 = vmatprep.subr.mxu0 0.0
    %1269 = vmatpush1.msra.mxu0 0.0
    %1270 = vmatprep.subr.mxu0 0.0
    %1271 = vmatpush1.msra.mxu0 0.0
    %1272 = vmatprep.subr.mxu0 0.0
    %1273 = vmatpush1.msra.mxu0 0.0
    %1274 = vmatprep.subr.mxu0 0.0
    %1275 = vmatpush1.msra.mxu0 0.0
    %1276 = vmatprep.subr.mxu0 0.0
    %1277 = vmatpush1.msra.mxu0 0.0
    %1278 = vmatprep.subr.mxu0 0.0
    %1279 = vmatpush1.msra.mxu0 0.0
    %1280 = vmatprep.subr.mxu0 0.0
    %1281 = vmatpush1.msra.mxu0 0.0
    %1282 = vmatprep.subr.mxu0 0.0
    %1283 = vmatpush1.msra.mxu0 0.0
    %1284 = vmatprep.subr.mxu0 0.0
    %1285 = vmatpush1.msra.mxu0 0.0
    %1286 = vmatprep.subr.mxu0 0.0
    %1287 = vmatpush1.msra.mxu0 0.0
    %1288 = vmatprep.subr.mxu0 0.0
    %1289 = vmatpush1.msra.mxu0 0.0
    %1290 = vmatprep.subr.mxu0 0.0
    %1291 = vmatpush1.msra.mxu0 0.0
    %1292 = vmatprep.subr.mxu0 0.0
    %1293 = vmatpush1.msra.mxu0 0.0
    %1294 = vmatprep.subr.mxu0 0.0
    %1295 = vmatpush1.msra.mxu0 0.0
    %1296 = vmatprep.mubr.f32.mxu0 0.0
    %1297 = vmatmul.mubr.f32.gmra.mrb[0].mxu0 %v1230
    %v1298 = vpop.f32.mrb[0].mxu0
    %v1299 = vadd.f32 0.0, %v1298
    %v1300 = vpop.f32.mrb[0].mxu0
    %1301 = vdwg.mxu0
    %1302 = vrot.lane.b32.xlu0 %v305, 104
    %v1303 = vpop.permute.xlu0 %1302
    %1304 = vrot.lane.b32.xlu0 %v305, 72
    %v1305 = vpop.permute.xlu0 %1304
    %v1306 = vsel %vm316, %v1303, 0
    %v1308 = vsel %vm316, %v1305, 0
    %1310 = vmatprep.subr.mxu0 0.0
    %1311 = vmatpush1.xpose.msra.mxu0 %v1308
    %1312 = vmatprep.subr.mxu0 0.0
    %1313 = vmatpush1.xpose.msra.mxu0 0.0
    %1314 = vmatprep.subr.mxu0 0.0
    %1315 = vmatpush1.xpose.msra.mxu0 0.0
    %1316 = vmatprep.subr.mxu0 0.0
    %1317 = vmatpush1.xpose.msra.mxu0 0.0
    %1318 = vmatprep.subr.mxu0 0.0
    %1319 = vmatpush1.xpose.msra.mxu0 0.0
    %1320 = vmatprep.subr.mxu0 0.0
    %1321 = vmatpush1.xpose.msra.mxu0 0.0
    %1322 = vmatprep.subr.mxu0 0.0
    %1323 = vmatpush1.xpose.msra.mxu0 0.0
    %1324 = vmatprep.subr.mxu0 0.0
    %1325 = vmatpush1.xpose.msra.mxu0 0.0
    %1326 = vmatprep.subr.mxu0 0.0
    %1327 = vmatpush1.xpose.msra.mxu0 0.0
    %1328 = vmatprep.subr.mxu0 0.0
    %1329 = vmatpush1.xpose.msra.mxu0 0.0
    %1330 = vmatprep.subr.mxu0 0.0
    %1331 = vmatpush1.xpose.msra.mxu0 0.0
    %1332 = vmatprep.subr.mxu0 0.0
    %1333 = vmatpush1.xpose.msra.mxu0 0.0
    %1334 = vmatprep.subr.mxu0 0.0
    %1335 = vmatpush1.xpose.msra.mxu0 0.0
    %1336 = vmatprep.subr.mxu0 0.0
    %1337 = vmatpush1.xpose.msra.mxu0 0.0
    %1338 = vmatprep.subr.mxu0 0.0
    %1339 = vmatpush1.xpose.msra.mxu0 0.0
    %1340 = vmatprep.subr.mxu0 0.0
    %1341 = vmatpush1.xpose.msra.mxu0 0.0
    %1342 = vmatprep.subr.mxu0 0.0
    %1343 = vmatpush1.xpose.msra.mxu0 0.0
    %1344 = vmatprep.subr.mxu0 0.0
    %1345 = vmatpush1.xpose.msra.mxu0 0.0
    %1346 = vmatprep.subr.mxu0 0.0
    %1347 = vmatpush1.xpose.msra.mxu0 0.0
    %1348 = vmatprep.subr.mxu0 0.0
    %1349 = vmatpush1.xpose.msra.mxu0 0.0
    %1350 = vmatprep.subr.mxu0 0.0
    %1351 = vmatpush1.xpose.msra.mxu0 0.0
    %1352 = vmatprep.subr.mxu0 0.0
    %1353 = vmatpush1.xpose.msra.mxu0 0.0
    %1354 = vmatprep.subr.mxu0 0.0
    %1355 = vmatpush1.xpose.msra.mxu0 0.0
    %1356 = vmatprep.subr.mxu0 0.0
    %1357 = vmatpush1.xpose.msra.mxu0 0.0
    %1358 = vmatprep.subr.mxu0 0.0
    %1359 = vmatpush1.xpose.msra.mxu0 0.0
    %1360 = vmatprep.subr.mxu0 0.0
    %1361 = vmatpush1.xpose.msra.mxu0 0.0
    %1362 = vmatprep.subr.mxu0 0.0
    %1363 = vmatpush1.xpose.msra.mxu0 0.0
    %1364 = vmatprep.subr.mxu0 0.0
    %1365 = vmatpush1.xpose.msra.mxu0 0.0
    %1366 = vmatprep.subr.mxu0 0.0
    %1367 = vmatpush1.xpose.msra.mxu0 0.0
    %1368 = vmatprep.subr.mxu0 0.0
    %1369 = vmatpush1.xpose.msra.mxu0 0.0
    %1370 = vmatprep.subr.mxu0 0.0
    %1371 = vmatpush1.xpose.msra.mxu0 0.0
    %1372 = vmatprep.subr.mxu0 0.0
    %1373 = vmatpush1.xpose.msra.mxu0 0.0
    %1374 = vmatprep.mubr.f32.mxu0 0.0
    %1375 = vmatmul.mubr.f32.gmra.mrb[0].mxu0 %v1306
    %v1376 = vpop.f32.mrb[0].mxu0
    %v1377 = vadd.f32 %v53, %v1376
    %v1378 = vpop.f32.mrb[0].mxu0
    %1379 = vdwg.mxu0
    %1380 = vrot.lane.b32.xlu0 %v310, 104
    %v1381 = vpop.permute.xlu0 %1380
    %1382 = vrot.lane.b32.xlu0 %v310, 72
    %v1383 = vpop.permute.xlu0 %1382
    %v1384 = vsel %vm316, %v1381, 0
    %v1386 = vsel %vm316, %v1383, 0
    %1388 = vmatprep.subr.mxu0 0.0
    %1389 = vmatpush1.xpose.msra.mxu0 %v1386
    %1390 = vmatprep.subr.mxu0 0.0
    %1391 = vmatpush1.xpose.msra.mxu0 0.0
    %1392 = vmatprep.subr.mxu0 0.0
    %1393 = vmatpush1.xpose.msra.mxu0 0.0
    %1394 = vmatprep.subr.mxu0 0.0
    %1395 = vmatpush1.xpose.msra.mxu0 0.0
    %1396 = vmatprep.subr.mxu0 0.0
    %1397 = vmatpush1.xpose.msra.mxu0 0.0
    %1398 = vmatprep.subr.mxu0 0.0
    %1399 = vmatpush1.xpose.msra.mxu0 0.0
    %1400 = vmatprep.subr.mxu0 0.0
    %1401 = vmatpush1.xpose.msra.mxu0 0.0
    %1402 = vmatprep.subr.mxu0 0.0
    %1403 = vmatpush1.xpose.msra.mxu0 0.0
    %1404 = vmatprep.subr.mxu0 0.0
    %1405 = vmatpush1.xpose.msra.mxu0 0.0
    %1406 = vmatprep.subr.mxu0 0.0
    %1407 = vmatpush1.xpose.msra.mxu0 0.0
    %1408 = vmatprep.subr.mxu0 0.0
    %1409 = vmatpush1.xpose.msra.mxu0 0.0
    %1410 = vmatprep.subr.mxu0 0.0
    %1411 = vmatpush1.xpose.msra.mxu0 0.0
    %1412 = vmatprep.subr.mxu0 0.0
    %1413 = vmatpush1.xpose.msra.mxu0 0.0
    %1414 = vmatprep.subr.mxu0 0.0
    %1415 = vmatpush1.xpose.msra.mxu0 0.0
    %1416 = vmatprep.subr.mxu0 0.0
    %1417 = vmatpush1.xpose.msra.mxu0 0.0
    %1418 = vmatprep.subr.mxu0 0.0
    %1419 = vmatpush1.xpose.msra.mxu0 0.0
    %1420 = vmatprep.subr.mxu0 0.0
    %1421 = vmatpush1.xpose.msra.mxu0 0.0
    %1422 = vmatprep.subr.mxu0 0.0
    %1423 = vmatpush1.xpose.msra.mxu0 0.0
    %1424 = vmatprep.subr.mxu0 0.0
    %1425 = vmatpush1.xpose.msra.mxu0 0.0
    %1426 = vmatprep.subr.mxu0 0.0
    %1427 = vmatpush1.xpose.msra.mxu0 0.0
    %1428 = vmatprep.subr.mxu0 0.0
    %1429 = vmatpush1.xpose.msra.mxu0 0.0
    %1430 = vmatprep.subr.mxu0 0.0
    %1431 = vmatpush1.xpose.msra.mxu0 0.0
    %1432 = vmatprep.subr.mxu0 0.0
    %1433 = vmatpush1.xpose.msra.mxu0 0.0
    %1434 = vmatprep.subr.mxu0 0.0
    %1435 = vmatpush1.xpose.msra.mxu0 0.0
    %1436 = vmatprep.subr.mxu0 0.0
    %1437 = vmatpush1.xpose.msra.mxu0 0.0
    %1438 = vmatprep.subr.mxu0 0.0
    %1439 = vmatpush1.xpose.msra.mxu0 0.0
    %1440 = vmatprep.subr.mxu0 0.0
    %1441 = vmatpush1.xpose.msra.mxu0 0.0
    %1442 = vmatprep.subr.mxu0 0.0
    %1443 = vmatpush1.xpose.msra.mxu0 0.0
    %1444 = vmatprep.subr.mxu0 0.0
    %1445 = vmatpush1.xpose.msra.mxu0 0.0
    %1446 = vmatprep.subr.mxu0 0.0
    %1447 = vmatpush1.xpose.msra.mxu0 0.0
    %1448 = vmatprep.subr.mxu0 0.0
    %1449 = vmatpush1.xpose.msra.mxu0 0.0
    %1450 = vmatprep.subr.mxu0 0.0
    %1451 = vmatpush1.xpose.msra.mxu0 0.0
    %1452 = vmatprep.mubr.f32.mxu0 0.0
    %1453 = vmatmul.mubr.f32.gmra.mrb[0].mxu0 %v1384
    %v1454 = vpop.f32.mrb[0].mxu0
    %v1455 = vadd.f32 %v54, %v1454
    %v1456 = vpop.f32.mrb[0].mxu0
    %1457 = vdwg.mxu0
    %v1458 = vsel %vm316, %v1377, -inf
    %1459 = vmax.xlane.f32.xlu0 %v1458
    %v1460 = vpop.xlane.xlu0 %1459
    %v1461 = vsel %vm316, %v1455, -inf
    %1462 = vmax.xlane.f32.xlu0 %v1461
    %v1463 = vpop.xlane.xlu0 %1462
    %v1464 = vsub.f32 %v1377, %v1460
    %v1465 = vsub.f32 %v1455, %v1463
    %v1466 = vmul.f32 %v1464, 1.442695
    %v1467 = vpow.pop %v1466
    %v1468 = vmul.f32 %v1465, 1.442695
    %v1469 = vpow.pop %v1468
    %v1470 = vsel %vm316, %v1467, 0.0
    %1471 = vadd.xlane.f32.xlu0 %v1470
    %v1472 = vpop.xlane.xlu0 %1471
    %v1473 = vsel %vm316, %v1469, 0.0
    %1474 = vadd.xlane.f32.xlu0 %v1473
    %v1475 = vpop.xlane.xlu0 %1474
    %v1476 = vrcp.pop %v1472
    %v1477 = vrcp.pop %v1475
    %v1478 = vmul.f32 %v1467, %v1476
    %v1479 = vmul.f32 %v1469, %v1477
    %1480 = vrot.lane.b32.xlu0 %v305, 40
    %v1481 = vpop.permute.xlu0 %1480
    %v1484 = vsel %vm316, %v1478, 0
    %1486 = vmatprep.subr.mxu0 0.0
    %1487 = vmatpush1.msra.mxu0 %v1481
    %1488 = vmatprep.subr.mxu0 0.0
    %1489 = vmatpush1.msra.mxu0 0.0
    %1490 = vmatprep.subr.mxu0 0.0
    %1491 = vmatpush1.msra.mxu0 0.0
    %1492 = vmatprep.subr.mxu0 0.0
    %1493 = vmatpush1.msra.mxu0 0.0
    %1494 = vmatprep.subr.mxu0 0.0
    %1495 = vmatpush1.msra.mxu0 0.0
    %1496 = vmatprep.subr.mxu0 0.0
    %1497 = vmatpush1.msra.mxu0 0.0
    %1498 = vmatprep.subr.mxu0 0.0
    %1499 = vmatpush1.msra.mxu0 0.0
    %1500 = vmatprep.subr.mxu0 0.0
    %1501 = vmatpush1.msra.mxu0 0.0
    %1502 = vmatprep.subr.mxu0 0.0
    %1503 = vmatpush1.msra.mxu0 0.0
    %1504 = vmatprep.subr.mxu0 0.0
    %1505 = vmatpush1.msra.mxu0 0.0
    %1506 = vmatprep.subr.mxu0 0.0
    %1507 = vmatpush1.msra.mxu0 0.0
    %1508 = vmatprep.subr.mxu0 0.0
    %1509 = vmatpush1.msra.mxu0 0.0
    %1510 = vmatprep.subr.mxu0 0.0
    %1511 = vmatpush1.msra.mxu0 0.0
    %1512 = vmatprep.subr.mxu0 0.0
    %1513 = vmatpush1.msra.mxu0 0.0
    %1514 = vmatprep.subr.mxu0 0.0
    %1515 = vmatpush1.msra.mxu0 0.0
    %1516 = vmatprep.subr.mxu0 0.0
    %1517 = vmatpush1.msra.mxu0 0.0
    %1518 = vmatprep.subr.mxu0 0.0
    %1519 = vmatpush1.msra.mxu0 0.0
    %1520 = vmatprep.subr.mxu0 0.0
    %1521 = vmatpush1.msra.mxu0 0.0
    %1522 = vmatprep.subr.mxu0 0.0
    %1523 = vmatpush1.msra.mxu0 0.0
    %1524 = vmatprep.subr.mxu0 0.0
    %1525 = vmatpush1.msra.mxu0 0.0
    %1526 = vmatprep.subr.mxu0 0.0
    %1527 = vmatpush1.msra.mxu0 0.0
    %1528 = vmatprep.subr.mxu0 0.0
    %1529 = vmatpush1.msra.mxu0 0.0
    %1530 = vmatprep.subr.mxu0 0.0
    %1531 = vmatpush1.msra.mxu0 0.0
    %1532 = vmatprep.subr.mxu0 0.0
    %1533 = vmatpush1.msra.mxu0 0.0
    %1534 = vmatprep.subr.mxu0 0.0
    %1535 = vmatpush1.msra.mxu0 0.0
    %1536 = vmatprep.subr.mxu0 0.0
    %1537 = vmatpush1.msra.mxu0 0.0
    %1538 = vmatprep.subr.mxu0 0.0
    %1539 = vmatpush1.msra.mxu0 0.0
    %1540 = vmatprep.subr.mxu0 0.0
    %1541 = vmatpush1.msra.mxu0 0.0
    %1542 = vmatprep.subr.mxu0 0.0
    %1543 = vmatpush1.msra.mxu0 0.0
    %1544 = vmatprep.subr.mxu0 0.0
    %1545 = vmatpush1.msra.mxu0 0.0
    %1546 = vmatprep.subr.mxu0 0.0
    %1547 = vmatpush1.msra.mxu0 0.0
    %1548 = vmatprep.subr.mxu0 0.0
    %1549 = vmatpush1.msra.mxu0 0.0
    %1550 = vmatprep.mubr.f32.mxu0 0.0
    %1551 = vmatmul.mubr.f32.gmra.mrb[0].mxu0 %v1484
    %v1552 = vpop.f32.mrb[0].mxu0
    %v1553 = vadd.f32 0.0, %v1552
    %v1554 = vpop.f32.mrb[0].mxu0
    %1555 = vdwg.mxu0
    %1556 = vrot.lane.b32.xlu0 %v310, 40
    %v1557 = vpop.permute.xlu0 %1556
    %v1560 = vsel %vm316, %v1479, 0
    %1562 = vmatprep.subr.mxu0 0.0
    %1563 = vmatpush1.msra.mxu0 %v1557
    %1564 = vmatprep.subr.mxu0 0.0
    %1565 = vmatpush1.msra.mxu0 0.0
    %1566 = vmatprep.subr.mxu0 0.0
    %1567 = vmatpush1.msra.mxu0 0.0
    %1568 = vmatprep.subr.mxu0 0.0
    %1569 = vmatpush1.msra.mxu0 0.0
    %1570 = vmatprep.subr.mxu0 0.0
    %1571 = vmatpush1.msra.mxu0 0.0
    %1572 = vmatprep.subr.mxu0 0.0
    %1573 = vmatpush1.msra.mxu0 0.0
    %1574 = vmatprep.subr.mxu0 0.0
    %1575 = vmatpush1.msra.mxu0 0.0
    %1576 = vmatprep.subr.mxu0 0.0
    %1577 = vmatpush1.msra.mxu0 0.0
    %1578 = vmatprep.subr.mxu0 0.0
    %1579 = vmatpush1.msra.mxu0 0.0
    %1580 = vmatprep.subr.mxu0 0.0
    %1581 = vmatpush1.msra.mxu0 0.0
    %1582 = vmatprep.subr.mxu0 0.0
    %1583 = vmatpush1.msra.mxu0 0.0
    %1584 = vmatprep.subr.mxu0 0.0
    %1585 = vmatpush1.msra.mxu0 0.0
    %1586 = vmatprep.subr.mxu0 0.0
    %1587 = vmatpush1.msra.mxu0 0.0
    %1588 = vmatprep.subr.mxu0 0.0
    %1589 = vmatpush1.msra.mxu0 0.0
    %1590 = vmatprep.subr.mxu0 0.0
    %1591 = vmatpush1.msra.mxu0 0.0
    %1592 = vmatprep.subr.mxu0 0.0
    %1593 = vmatpush1.msra.mxu0 0.0
    %1594 = vmatprep.subr.mxu0 0.0
    %1595 = vmatpush1.msra.mxu0 0.0
    %1596 = vmatprep.subr.mxu0 0.0
    %1597 = vmatpush1.msra.mxu0 0.0
    %1598 = vmatprep.subr.mxu0 0.0
    %1599 = vmatpush1.msra.mxu0 0.0
    %1600 = vmatprep.subr.mxu0 0.0
    %1601 = vmatpush1.msra.mxu0 0.0
    %1602 = vmatprep.subr.mxu0 0.0
    %1603 = vmatpush1.msra.mxu0 0.0
    %1604 = vmatprep.subr.mxu0 0.0
    %1605 = vmatpush1.msra.mxu0 0.0
    %1606 = vmatprep.subr.mxu0 0.0
    %1607 = vmatpush1.msra.mxu0 0.0
    %1608 = vmatprep.subr.mxu0 0.0
    %1609 = vmatpush1.msra.mxu0 0.0
    %1610 = vmatprep.subr.mxu0 0.0
    %1611 = vmatpush1.msra.mxu0 0.0
    %1612 = vmatprep.subr.mxu0 0.0
    %1613 = vmatpush1.msra.mxu0 0.0
    %1614 = vmatprep.subr.mxu0 0.0
    %1615 = vmatpush1.msra.mxu0 0.0
    %1616 = vmatprep.subr.mxu0 0.0
    %1617 = vmatpush1.msra.mxu0 0.0
    %1618 = vmatprep.subr.mxu0 0.0
    %1619 = vmatpush1.msra.mxu0 0.0
    %1620 = vmatprep.subr.mxu0 0.0
    %1621 = vmatpush1.msra.mxu0 0.0
    %1622 = vmatprep.subr.mxu0 0.0
    %1623 = vmatpush1.msra.mxu0 0.0
    %1624 = vmatprep.subr.mxu0 0.0
    %1625 = vmatpush1.msra.mxu0 0.0
    %1626 = vmatprep.mubr.f32.mxu0 0.0
    %1627 = vmatmul.mubr.f32.gmra.mrb[0].mxu0 %v1560
    %v1628 = vpop.f32.mrb[0].mxu0
    %v1629 = vadd.f32 0.0, %v1628
    %v1630 = vpop.f32.mrb[0].mxu0
    %1631 = vdwg.mxu0
    %1634 = vrot.lane.b32.xlu0 %v893, 8
    %v1635 = vpop.permute.xlu0 %1634
    %1636 = vrot.lane.b32.xlu0 %v969, 8
    %v1637 = vpop.permute.xlu0 %1636
    %1642 = vrot.lane.b32.xlu0 %v1223, 16
    %v1643 = vpop.permute.xlu0 %1642
    %1644 = vrot.lane.b32.xlu0 %v1299, 16
    %v1645 = vpop.permute.xlu0 %1644
    %1650 = vrot.lane.b32.xlu0 %v1553, 24
    %v1651 = vpop.permute.xlu0 %1650
    %1652 = vrot.lane.b32.xlu0 %v1629, 24
    %v1653 = vpop.permute.xlu0 %1652
    %v1656 = vsel %vm316, %v563, %v1635
    %v1657 = vsel %vm316, %v639, %v1637
    %vm1658 = vcmask 130048
    %v1659 = vsel %vm1658, %v1656, %v1643
    %v1660 = vsel %vm1658, %v1657, %v1645
    %vm1661 = vcmask 195584
    %v1662 = vsel %vm1661, %v1659, %v1651
    %v1663 = vsel %vm1661, %v1660, %v1653
    %v1664 = vld [vmem:[%s2] sm:$0xff]
    %v1665 = vld [vmem:[%s2 + $0x18] sm:$0xff]
    %v1666 = vld [vmem:[%s2 + $0x30] sm:$0xff]
    %v1667 = vld [vmem:[%s2 + $0x48] sm:$0xff]
    %1672 = vrot.lane.b32.xlu0 %v1664, 32
    %v1673 = vpop.permute.xlu0 %1672
    %1674 = vrot.lane.b32.xlu0 %v1665, 32
    %v1675 = vpop.permute.xlu0 %1674
    %1676 = vrot.lane.b32.xlu0 %v1666, 32
    %v1677 = vpop.permute.xlu0 %1676
    %1678 = vrot.lane.b32.xlu0 %v1667, 32
    %v1679 = vpop.permute.xlu0 %1678
    %v1685 = vsel %vm84, %v1662, 0
    %v1688 = vsel %vm84, %v1663, 0
    %1690 = vmatprep.subr.mxu0 0.0
    %1691 = vmatpush1.msra.mxu0 %v1673
    %1692 = vmatprep.subr.mxu0 0.0
    %1693 = vmatpush1.msra.mxu0 %v1675
    %1694 = vmatprep.subr.mxu0 0.0
    %1695 = vmatpush1.msra.mxu0 %v1677
    %1696 = vmatprep.subr.mxu0 0.0
    %1697 = vmatpush1.msra.mxu0 %v1679
    %1698 = vmatprep.subr.mxu0 0.0
    %1699 = vmatpush1.msra.mxu0 0.0
    %1700 = vmatprep.subr.mxu0 0.0
    %1701 = vmatpush1.msra.mxu0 0.0
    %1702 = vmatprep.subr.mxu0 0.0
    %1703 = vmatpush1.msra.mxu0 0.0
    %1704 = vmatprep.subr.mxu0 0.0
    %1705 = vmatpush1.msra.mxu0 0.0
    %1706 = vmatprep.subr.mxu0 0.0
    %1707 = vmatpush1.msra.mxu0 0.0
    %1708 = vmatprep.subr.mxu0 0.0
    %1709 = vmatpush1.msra.mxu0 0.0
    %1710 = vmatprep.subr.mxu0 0.0
    %1711 = vmatpush1.msra.mxu0 0.0
    %1712 = vmatprep.subr.mxu0 0.0
    %1713 = vmatpush1.msra.mxu0 0.0
    %1714 = vmatprep.subr.mxu0 0.0
    %1715 = vmatpush1.msra.mxu0 0.0
    %1716 = vmatprep.subr.mxu0 0.0
    %1717 = vmatpush1.msra.mxu0 0.0
    %1718 = vmatprep.subr.mxu0 0.0
    %1719 = vmatpush1.msra.mxu0 0.0
    %1720 = vmatprep.subr.mxu0 0.0
    %1721 = vmatpush1.msra.mxu0 0.0
    %1722 = vmatprep.subr.mxu0 0.0
    %1723 = vmatpush1.msra.mxu0 0.0
    %1724 = vmatprep.subr.mxu0 0.0
    %1725 = vmatpush1.msra.mxu0 0.0
    %1726 = vmatprep.subr.mxu0 0.0
    %1727 = vmatpush1.msra.mxu0 0.0
    %1728 = vmatprep.subr.mxu0 0.0
    %1729 = vmatpush1.msra.mxu0 0.0
    %1730 = vmatprep.subr.mxu0 0.0
    %1731 = vmatpush1.msra.mxu0 0.0
    %1732 = vmatprep.subr.mxu0 0.0
    %1733 = vmatpush1.msra.mxu0 0.0
    %1734 = vmatprep.subr.mxu0 0.0
    %1735 = vmatpush1.msra.mxu0 0.0
    %1736 = vmatprep.subr.mxu0 0.0
    %1737 = vmatpush1.msra.mxu0 0.0
    %1738 = vmatprep.subr.mxu0 0.0
    %1739 = vmatpush1.msra.mxu0 0.0
    %1740 = vmatprep.subr.mxu0 0.0
    %1741 = vmatpush1.msra.mxu0 0.0
    %1742 = vmatprep.subr.mxu0 0.0
    %1743 = vmatpush1.msra.mxu0 0.0
    %1744 = vmatprep.subr.mxu0 0.0
    %1745 = vmatpush1.msra.mxu0 0.0
    %1746 = vmatprep.subr.mxu0 0.0
    %1747 = vmatpush1.msra.mxu0 0.0
    %1748 = vmatprep.subr.mxu0 0.0
    %1749 = vmatpush1.msra.mxu0 0.0
    %1750 = vmatprep.subr.mxu0 0.0
    %1751 = vmatpush1.msra.mxu0 0.0
    %1752 = vmatprep.subr.mxu0 0.0
    %1753 = vmatpush1.msra.mxu0 0.0
    %1754 = vmatprep.mubr.f32.mxu0 0.0
    %1755 = vmatmul.mubr.f32.gmra.mrb[0].mxu0 %v1685
    %v1756 = vpop.f32.mrb[0].mxu0
    %v1757 = vadd.f32 0.0, %v1756
    %v1758 = vpop.f32.mrb[0].mxu0
    %1759 = vmatprep.mubr.f32.mxu0 0.0
    %1760 = vmatmul.mubr.f32.gmra.mrb[0].mxu0 %v1688
    %v1761 = vpop.f32.mrb[0].mxu0
    %v1762 = vadd.f32 0.0, %v1761
    %v1763 = vpop.f32.mrb[0].mxu0
    %1764 = vdwg.mxu0
    %v1765 = vadd.f32 %v49, %v1757
    %v1766 = vadd.f32 %v50, %v1762
    %v1767 = vld [vmem:[%s4 + $0x1] sm:$0x1]
    %v1769 = vlaneseq
    %v1770 = vshrl.u32 %v1769, 7
    %v1771 = vsub.s32 0, %v1770
    %v1772 = vrot.slane %v1767, %v1771
    %1773 = vrot.lane.b32.xlu0 %v1772, 96
    %v1774 = vpop.permute.xlu0 %1773
    %v1776 = vadd.f32 %v1765, %v1774
    %v1777 = vadd.f32 %v1766, %v1774
    %v1778 = vsel %vm84, %v1776, 0.0
    %1779 = vadd.xlane.f32.xlu0 %v1778
    %v1780 = vpop.xlane.xlu0 %1779
    %v1781 = vsel %vm84, %v1777, 0.0
    %1782 = vadd.xlane.f32.xlu0 %v1781
    %v1783 = vpop.xlane.xlu0 %1782
    %v1784 = vmul.f32 %v1780, %v172
    %v1785 = vmul.f32 %v1783, %v172
    %v1786 = vmul.f32 %v1776, %v1776
    %v1787 = vmul.f32 %v1777, %v1777
    %v1788 = vsel %vm84, %v1786, 0.0
    %1789 = vadd.xlane.f32.xlu0 %v1788
    %v1790 = vpop.xlane.xlu0 %1789
    %v1791 = vsel %vm84, %v1787, 0.0
    %1792 = vadd.xlane.f32.xlu0 %v1791
    %v1793 = vpop.xlane.xlu0 %1792
    %v1794 = vmul.f32 %v1790, %v172
    %v1795 = vmul.f32 %v1793, %v172
    %v1796 = vmul.f32 %v1784, %v1784
    %v1797 = vmul.f32 %v1785, %v1785
    %v1798 = vsub.f32 %v1794, %v1796
    %v1799 = vsub.f32 %v1795, %v1797
    %v1800 = vsub.f32 %v1776, %v1784
    %v1801 = vsub.f32 %v1777, %v1785
    %v1802 = vadd.f32 %v1798, 1e-05
    %v1803 = vadd.f32 %v1799, 1e-05
    %v1804 = vrsqrt.pop %v1802
    %v1805 = vrsqrt.pop %v1803
    %v1806 = vmul.f32 %v1800, %v1804
    %v1807 = vmul.f32 %v1801, %v1805
    %1808 = vrot.lane.b32.xlu0 %v1772, 64
    %v1809 = vpop.permute.xlu0 %1808
    %v1811 = vmul.f32 %v1806, %v1809
    %v1812 = vmul.f32 %v1807, %v1809
    %1813 = vrot.lane.b32.xlu0 %v1772, 32
    %v1814 = vpop.permute.xlu0 %1813
    %v1816 = vadd.f32 %v1811, %v1814
    %v1817 = vadd.f32 %v1812, %v1814
    %v1818 = vld [vmem:[%s2 + $0x8] sm:$0xff]
    %v1819 = vld [vmem:[%s2 + $0x20] sm:$0xff]
    %v1820 = vld [vmem:[%s2 + $0x38] sm:$0xff]
    %v1821 = vld [vmem:[%s2 + $0x50] sm:$0xff]
    %v1822 = vld [vmem:[%s4 + $0x2] sm:$0x1]
    %v1824 = vlaneseq
    %v1825 = vshrl.u32 %v1824, 7
    %v1826 = vsub.s32 0, %v1825
    %v1827 = vrot.slane %v1822, %v1826
    %v1830 = vsel %vm84, %v1816, 0
    %v1833 = vsel %vm84, %v1817, 0
    %1835 = vmatprep.subr.mxu0 0.0
    %1836 = vmatpush1.msra.mxu0 %v1818
    %1837 = vmatprep.subr.mxu0 0.0
    %1838 = vmatpush1.msra.mxu0 %v1819
    %1839 = vmatprep.subr.mxu0 0.0
    %1840 = vmatpush1.msra.mxu0 %v1820
    %1841 = vmatprep.subr.mxu0 0.0
    %1842 = vmatpush1.msra.mxu0 %v1821
    %1843 = vmatprep.subr.mxu0 0.0
    %1844 = vmatpush1.msra.mxu0 0.0
    %1845 = vmatprep.subr.mxu0 0.0
    %1846 = vmatpush1.msra.mxu0 0.0
    %1847 = vmatprep.subr.mxu0 0.0
    %1848 = vmatpush1.msra.mxu0 0.0
    %1849 = vmatprep.subr.mxu0 0.0
    %1850 = vmatpush1.msra.mxu0 0.0
    %1851 = vmatprep.subr.mxu0 0.0
    %1852 = vmatpush1.msra.mxu0 0.0
    %1853 = vmatprep.subr.mxu0 0.0
    %1854 = vmatpush1.msra.mxu0 0.0
    %1855 = vmatprep.subr.mxu0 0.0
    %1856 = vmatpush1.msra.mxu0 0.0
    %1857 = vmatprep.subr.mxu0 0.0
    %1858 = vmatpush1.msra.mxu0 0.0
    %1859 = vmatprep.subr.mxu0 0.0
    %1860 = vmatpush1.msra.mxu0 0.0
    %1861 = vmatprep.subr.mxu0 0.0
    %1862 = vmatpush1.msra.mxu0 0.0
    %1863 = vmatprep.subr.mxu0 0.0
    %1864 = vmatpush1.msra.mxu0 0.0
    %1865 = vmatprep.subr.mxu0 0.0
    %1866 = vmatpush1.msra.mxu0 0.0
    %1867 = vmatprep.subr.mxu0 0.0
    %1868 = vmatpush1.msra.mxu0 0.0
    %1869 = vmatprep.subr.mxu0 0.0
    %1870 = vmatpush1.msra.mxu0 0.0
    %1871 = vmatprep.subr.mxu0 0.0
    %1872 = vmatpush1.msra.mxu0 0.0
    %1873 = vmatprep.subr.mxu0 0.0
    %1874 = vmatpush1.msra.mxu0 0.0
    %1875 = vmatprep.subr.mxu0 0.0
    %1876 = vmatpush1.msra.mxu0 0.0
    %1877 = vmatprep.subr.mxu0 0.0
    %1878 = vmatpush1.msra.mxu0 0.0
    %1879 = vmatprep.subr.mxu0 0.0
    %1880 = vmatpush1.msra.mxu0 0.0
    %1881 = vmatprep.subr.mxu0 0.0
    %1882 = vmatpush1.msra.mxu0 0.0
    %1883 = vmatprep.subr.mxu0 0.0
    %1884 = vmatpush1.msra.mxu0 0.0
    %1885 = vmatprep.subr.mxu0 0.0
    %1886 = vmatpush1.msra.mxu0 0.0
    %1887 = vmatprep.subr.mxu0 0.0
    %1888 = vmatpush1.msra.mxu0 0.0
    %1889 = vmatprep.subr.mxu0 0.0
    %1890 = vmatpush1.msra.mxu0 0.0
    %1891 = vmatprep.subr.mxu0 0.0
    %1892 = vmatpush1.msra.mxu0 0.0
    %1893 = vmatprep.subr.mxu0 0.0
    %1894 = vmatpush1.msra.mxu0 0.0
    %1895 = vmatprep.subr.mxu0 0.0
    %1896 = vmatpush1.msra.mxu0 0.0
    %1897 = vmatprep.subr.mxu0 0.0
    %1898 = vmatpush1.msra.mxu0 0.0
    %1899 = vmatprep.mubr.f32.mxu0 0.0
    %1900 = vmatmul.mubr.f32.gmra.mrb[0].mxu0 %v1830
    %v1901 = vpop.f32.mrb[0].mxu0
    %v1902 = vadd.f32 %v1827, %v1901
    %v1903 = vpop.f32.mrb[0].mxu0
    %1904 = vmatprep.mubr.f32.mxu0 0.0
    %1905 = vmatmul.mubr.f32.gmra.mrb[0].mxu0 %v1833
    %v1906 = vpop.f32.mrb[0].mxu0
    %v1907 = vadd.f32 %v1827, %v1906
    %v1908 = vpop.f32.mrb[0].mxu0
    %1909 = vdwg.mxu0
    %1911 = vrot.lane.b32.xlu0 %v53, 120
    %v1912 = vpop.permute.xlu0 %1911
    %v1915 = vsel %vm316, %v1902, 0
    %v1918 = vsel %vm316, %v158, 0
    %1920 = vmatprep.subr.mxu0 0.0
    %1921 = vmatpush1.xpose.msra.mxu0 %v1918
    %1922 = vmatprep.subr.mxu0 0.0
    %1923 = vmatpush1.xpose.msra.mxu0 0.0
    %1924 = vmatprep.subr.mxu0 0.0
    %1925 = vmatpush1.xpose.msra.mxu0 0.0
    %1926 = vmatprep.subr.mxu0 0.0
    %1927 = vmatpush1.xpose.msra.mxu0 0.0
    %1928 = vmatprep.subr.mxu0 0.0
    %1929 = vmatpush1.xpose.msra.mxu0 0.0
    %1930 = vmatprep.subr.mxu0 0.0
    %1931 = vmatpush1.xpose.msra.mxu0 0.0
    %1932 = vmatprep.subr.mxu0 0.0
    %1933 = vmatpush1.xpose.msra.mxu0 0.0
    %1934 = vmatprep.subr.mxu0 0.0
    %1935 = vmatpush1.xpose.msra.mxu0 0.0
    %1936 = vmatprep.subr.mxu0 0.0
    %1937 = vmatpush1.xpose.msra.mxu0 0.0
    %1938 = vmatprep.subr.mxu0 0.0
    %1939 = vmatpush1.xpose.msra.mxu0 0.0
    %1940 = vmatprep.subr.mxu0 0.0
    %1941 = vmatpush1.xpose.msra.mxu0 0.0
    %1942 = vmatprep.subr.mxu0 0.0
    %1943 = vmatpush1.xpose.msra.mxu0 0.0
    %1944 = vmatprep.subr.mxu0 0.0
    %1945 = vmatpush1.xpose.msra.mxu0 0.0
    %1946 = vmatprep.subr.mxu0 0.0
    %1947 = vmatpush1.xpose.msra.mxu0 0.0
    %1948 = vmatprep.subr.mxu0 0.0
    %1949 = vmatpush1.xpose.msra.mxu0 0.0
    %1950 = vmatprep.subr.mxu0 0.0
    %1951 = vmatpush1.xpose.msra.mxu0 0.0
    %1952 = vmatprep.subr.mxu0 0.0
    %1953 = vmatpush1.xpose.msra.mxu0 0.0
    %1954 = vmatprep.subr.mxu0 0.0
    %1955 = vmatpush1.xpose.msra.mxu0 0.0
    %1956 = vmatprep.subr.mxu0 0.0
    %1957 = vmatpush1.xpose.msra.mxu0 0.0
    %1958 = vmatprep.subr.mxu0 0.0
    %1959 = vmatpush1.xpose.msra.mxu0 0.0
    %1960 = vmatprep.subr.mxu0 0.0
    %1961 = vmatpush1.xpose.msra.mxu0 0.0
    %1962 = vmatprep.subr.mxu0 0.0
    %1963 = vmatpush1.xpose.msra.mxu0 0.0
    %1964 = vmatprep.subr.mxu0 0.0
    %1965 = vmatpush1.xpose.msra.mxu0 0.0
    %1966 = vmatprep.subr.mxu0 0.0
    %1967 = vmatpush1.xpose.msra.mxu0 0.0
    %1968 = vmatprep.subr.mxu0 0.0
    %1969 = vmatpush1.xpose.msra.mxu0 0.0
    %1970 = vmatprep.subr.mxu0 0.0
    %1971 = vmatpush1.xpose.msra.mxu0 0.0
    %1972 = vmatprep.subr.mxu0 0.0
    %1973 = vmatpush1.xpose.msra.mxu0 0.0
    %1974 = vmatprep.subr.mxu0 0.0
    %1975 = vmatpush1.xpose.msra.mxu0 0.0
    %1976 = vmatprep.subr.mxu0 0.0
    %1977 = vmatpush1.xpose.msra.mxu0 0.0
    %1978 = vmatprep.subr.mxu0 0.0
    %1979 = vmatpush1.xpose.msra.mxu0 0.0
    %1980 = vmatprep.subr.mxu0 0.0
    %1981 = vmatpush1.xpose.msra.mxu0 0.0
    %1982 = vmatprep.subr.mxu0 0.0
    %1983 = vmatpush1.xpose.msra.mxu0 0.0
    %1984 = vmatprep.mubr.f32.mxu0 0.0
    %1985 = vmatmul.mubr.f32.gmra.mrb[0].mxu0 %v1915
    %v1986 = vpop.f32.mrb[0].mxu0
    %v1987 = vadd.f32 %v1912, %v1986
    %v1988 = vpop.f32.mrb[0].mxu0
    %1989 = vdwg.mxu0
    %1991 = vrot.lane.b32.xlu0 %v54, 120
    %v1992 = vpop.permute.xlu0 %1991
    %v1995 = vsel %vm316, %v1907, 0
    %v1998 = vsel %vm316, %v163, 0
    %2000 = vmatprep.subr.mxu0 0.0
    %2001 = vmatpush1.xpose.msra.mxu0 %v1998
    %2002 = vmatprep.subr.mxu0 0.0
    %2003 = vmatpush1.xpose.msra.mxu0 0.0
    %2004 = vmatprep.subr.mxu0 0.0
    %2005 = vmatpush1.xpose.msra.mxu0 0.0
    %2006 = vmatprep.subr.mxu0 0.0
    %2007 = vmatpush1.xpose.msra.mxu0 0.0
    %2008 = vmatprep.subr.mxu0 0.0
    %2009 = vmatpush1.xpose.msra.mxu0 0.0
    %2010 = vmatprep.subr.mxu0 0.0
    %2011 = vmatpush1.xpose.msra.mxu0 0.0
    %2012 = vmatprep.subr.mxu0 0.0
    %2013 = vmatpush1.xpose.msra.mxu0 0.0
    %2014 = vmatprep.subr.mxu0 0.0
    %2015 = vmatpush1.xpose.msra.mxu0 0.0
    %2016 = vmatprep.subr.mxu0 0.0
    %2017 = vmatpush1.xpose.msra.mxu0 0.0
    %2018 = vmatprep.subr.mxu0 0.0
    %2019 = vmatpush1.xpose.msra.mxu0 0.0
    %2020 = vmatprep.subr.mxu0 0.0
    %2021 = vmatpush1.xpose.msra.mxu0 0.0
    %2022 = vmatprep.subr.mxu0 0.0
    %2023 = vmatpush1.xpose.msra.mxu0 0.0
    %2024 = vmatprep.subr.mxu0 0.0
    %2025 = vmatpush1.xpose.msra.mxu0 0.0
    %2026 = vmatprep.subr.mxu0 0.0
    %2027 = vmatpush1.xpose.msra.mxu0 0.0
    %2028 = vmatprep.subr.mxu0 0.0
    %2029 = vmatpush1.xpose.msra.mxu0 0.0
    %2030 = vmatprep.subr.mxu0 0.0
    %2031 = vmatpush1.xpose.msra.mxu0 0.0
    %2032 = vmatprep.subr.mxu0 0.0
    %2033 = vmatpush1.xpose.msra.mxu0 0.0
    %2034 = vmatprep.subr.mxu0 0.0
    %2035 = vmatpush1.xpose.msra.mxu0 0.0
    %2036 = vmatprep.subr.mxu0 0.0
    %2037 = vmatpush1.xpose.msra.mxu0 0.0
    %2038 = vmatprep.subr.mxu0 0.0
    %2039 = vmatpush1.xpose.msra.mxu0 0.0
    %2040 = vmatprep.subr.mxu0 0.0
    %2041 = vmatpush1.xpose.msra.mxu0 0.0
    %2042 = vmatprep.subr.mxu0 0.0
    %2043 = vmatpush1.xpose.msra.mxu0 0.0
    %2044 = vmatprep.subr.mxu0 0.0
    %2045 = vmatpush1.xpose.msra.mxu0 0.0
    %2046 = vmatprep.subr.mxu0 0.0
    %2047 = vmatpush1.xpose.msra.mxu0 0.0
    %2048 = vmatprep.subr.mxu0 0.0
    %2049 = vmatpush1.xpose.msra.mxu0 0.0
    %2050 = vmatprep.subr.mxu0 0.0
    %2051 = vmatpush1.xpose.msra.mxu0 0.0
    %2052 = vmatprep.subr.mxu0 0.0
    %2053 = vmatpush1.xpose.msra.mxu0 0.0
    %2054 = vmatprep.subr.mxu0 0.0
    %2055 = vmatpush1.xpose.msra.mxu0 0.0
    %2056 = vmatprep.subr.mxu0 0.0
    %2057 = vmatpush1.xpose.msra.mxu0 0.0
    %2058 = vmatprep.subr.mxu0 0.0
    %2059 = vmatpush1.xpose.msra.mxu0 0.0
    %2060 = vmatprep.subr.mxu0 0.0
    %2061 = vmatpush1.xpose.msra.mxu0 0.0
    %2062 = vmatprep.subr.mxu0 0.0
    %2063 = vmatpush1.xpose.msra.mxu0 0.0
    %2064 = vmatprep.mubr.f32.mxu0 0.0
    %2065 = vmatmul.mubr.f32.gmra.mrb[0].mxu0 %v1995
    %v2066 = vpop.f32.mrb[0].mxu0
    %v2067 = vadd.f32 %v1992, %v2066
    %v2068 = vpop.f32.mrb[0].mxu0
    %2069 = vdwg.mxu0
    %v2070 = vsel %vm316, %v1987, -inf
    %2071 = vmax.xlane.f32.xlu0 %v2070
    %v2072 = vpop.xlane.xlu0 %2071
    %v2073 = vsel %vm316, %v2067, -inf
    %2074 = vmax.xlane.f32.xlu0 %v2073
    %v2075 = vpop.xlane.xlu0 %2074
    %v2076 = vsub.f32 %v1987, %v2072
    %v2077 = vsub.f32 %v2067, %v2075
    %v2078 = vmul.f32 %v2076, 1.442695
    %v2079 = vpow.pop %v2078
    %v2080 = vmul.f32 %v2077, 1.442695
    %v2081 = vpow.pop %v2080
    %v2082 = vsel %vm316, %v2079, 0.0
    %2083 = vadd.xlane.f32.xlu0 %v2082
    %v2084 = vpop.xlane.xlu0 %2083
    %v2085 = vsel %vm316, %v2081, 0.0
    %2086 = vadd.xlane.f32.xlu0 %v2085
    %v2087 = vpop.xlane.xlu0 %2086
    %v2088 = vrcp.pop %v2084
    %v2089 = vrcp.pop %v2087
    %v2090 = vmul.f32 %v2079, %v2088
    %v2091 = vmul.f32 %v2081, %v2089
    %2092 = vrot.lane.b32.xlu0 %v158, 96
    %v2093 = vpop.permute.xlu0 %2092
    %v2096 = vsel %vm316, %v2090, 0
    %2098 = vmatprep.subr.mxu0 0.0
    %2099 = vmatpush1.msra.mxu0 %v2093
    %2100 = vmatprep.subr.mxu0 0.0
    %2101 = vmatpush1.msra.mxu0 0.0
    %2102 = vmatprep.subr.mxu0 0.0
    %2103 = vmatpush1.msra.mxu0 0.0
    %2104 = vmatprep.subr.mxu0 0.0
    %2105 = vmatpush1.msra.mxu0 0.0
    %2106 = vmatprep.subr.mxu0 0.0
    %2107 = vmatpush1.msra.mxu0 0.0
    %2108 = vmatprep.subr.mxu0 0.0
    %2109 = vmatpush1.msra.mxu0 0.0
    %2110 = vmatprep.subr.mxu0 0.0
    %2111 = vmatpush1.msra.mxu0 0.0
    %2112 = vmatprep.subr.mxu0 0.0
    %2113 = vmatpush1.msra.mxu0 0.0
    %2114 = vmatprep.subr.mxu0 0.0
    %2115 = vmatpush1.msra.mxu0 0.0
    %2116 = vmatprep.subr.mxu0 0.0
    %2117 = vmatpush1.msra.mxu0 0.0
    %2118 = vmatprep.subr.mxu0 0.0
    %2119 = vmatpush1.msra.mxu0 0.0
    %2120 = vmatprep.subr.mxu0 0.0
    %2121 = vmatpush1.msra.mxu0 0.0
    %2122 = vmatprep.subr.mxu0 0.0
    %2123 = vmatpush1.msra.mxu0 0.0
    %2124 = vmatprep.subr.mxu0 0.0
    %2125 = vmatpush1.msra.mxu0 0.0
    %2126 = vmatprep.subr.mxu0 0.0
    %2127 = vmatpush1.msra.mxu0 0.0
    %2128 = vmatprep.subr.mxu0 0.0
    %2129 = vmatpush1.msra.mxu0 0.0
    %2130 = vmatprep.subr.mxu0 0.0
    %2131 = vmatpush1.msra.mxu0 0.0
    %2132 = vmatprep.subr.mxu0 0.0
    %2133 = vmatpush1.msra.mxu0 0.0
    %2134 = vmatprep.subr.mxu0 0.0
    %2135 = vmatpush1.msra.mxu0 0.0
    %2136 = vmatprep.subr.mxu0 0.0
    %2137 = vmatpush1.msra.mxu0 0.0
    %2138 = vmatprep.subr.mxu0 0.0
    %2139 = vmatpush1.msra.mxu0 0.0
    %2140 = vmatprep.subr.mxu0 0.0
    %2141 = vmatpush1.msra.mxu0 0.0
    %2142 = vmatprep.subr.mxu0 0.0
    %2143 = vmatpush1.msra.mxu0 0.0
    %2144 = vmatprep.subr.mxu0 0.0
    %2145 = vmatpush1.msra.mxu0 0.0
    %2146 = vmatprep.subr.mxu0 0.0
    %2147 = vmatpush1.msra.mxu0 0.0
    %2148 = vmatprep.subr.mxu0 0.0
    %2149 = vmatpush1.msra.mxu0 0.0
    %2150 = vmatprep.subr.mxu0 0.0
    %2151 = vmatpush1.msra.mxu0 0.0
    %2152 = vmatprep.subr.mxu0 0.0
    %2153 = vmatpush1.msra.mxu0 0.0
    %2154 = vmatprep.subr.mxu0 0.0
    %2155 = vmatpush1.msra.mxu0 0.0
    %2156 = vmatprep.subr.mxu0 0.0
    %2157 = vmatpush1.msra.mxu0 0.0
    %2158 = vmatprep.subr.mxu0 0.0
    %2159 = vmatpush1.msra.mxu0 0.0
    %2160 = vmatprep.subr.mxu0 0.0
    %2161 = vmatpush1.msra.mxu0 0.0
    %2162 = vmatprep.mubr.f32.mxu0 0.0
    %2163 = vmatmul.mubr.f32.gmra.mrb[0].mxu0 %v2096
    %v2164 = vpop.f32.mrb[0].mxu0
    %v2165 = vadd.f32 0.0, %v2164
    %v2166 = vpop.f32.mrb[0].mxu0
    %2167 = vdwg.mxu0
    %2168 = vrot.lane.b32.xlu0 %v163, 96
    %v2169 = vpop.permute.xlu0 %2168
    %v2172 = vsel %vm316, %v2091, 0
    %2174 = vmatprep.subr.mxu0 0.0
    %2175 = vmatpush1.msra.mxu0 %v2169
    %2176 = vmatprep.subr.mxu0 0.0
    %2177 = vmatpush1.msra.mxu0 0.0
    %2178 = vmatprep.subr.mxu0 0.0
    %2179 = vmatpush1.msra.mxu0 0.0
    %2180 = vmatprep.subr.mxu0 0.0
    %2181 = vmatpush1.msra.mxu0 0.0
    %2182 = vmatprep.subr.mxu0 0.0
    %2183 = vmatpush1.msra.mxu0 0.0
    %2184 = vmatprep.subr.mxu0 0.0
    %2185 = vmatpush1.msra.mxu0 0.0
    %2186 = vmatprep.subr.mxu0 0.0
    %2187 = vmatpush1.msra.mxu0 0.0
    %2188 = vmatprep.subr.mxu0 0.0
    %2189 = vmatpush1.msra.mxu0 0.0
    %2190 = vmatprep.subr.mxu0 0.0
    %2191 = vmatpush1.msra.mxu0 0.0
    %2192 = vmatprep.subr.mxu0 0.0
    %2193 = vmatpush1.msra.mxu0 0.0
    %2194 = vmatprep.subr.mxu0 0.0
    %2195 = vmatpush1.msra.mxu0 0.0
    %2196 = vmatprep.subr.mxu0 0.0
    %2197 = vmatpush1.msra.mxu0 0.0
    %2198 = vmatprep.subr.mxu0 0.0
    %2199 = vmatpush1.msra.mxu0 0.0
    %2200 = vmatprep.subr.mxu0 0.0
    %2201 = vmatpush1.msra.mxu0 0.0
    %2202 = vmatprep.subr.mxu0 0.0
    %2203 = vmatpush1.msra.mxu0 0.0
    %2204 = vmatprep.subr.mxu0 0.0
    %2205 = vmatpush1.msra.mxu0 0.0
    %2206 = vmatprep.subr.mxu0 0.0
    %2207 = vmatpush1.msra.mxu0 0.0
    %2208 = vmatprep.subr.mxu0 0.0
    %2209 = vmatpush1.msra.mxu0 0.0
    %2210 = vmatprep.subr.mxu0 0.0
    %2211 = vmatpush1.msra.mxu0 0.0
    %2212 = vmatprep.subr.mxu0 0.0
    %2213 = vmatpush1.msra.mxu0 0.0
    %2214 = vmatprep.subr.mxu0 0.0
    %2215 = vmatpush1.msra.mxu0 0.0
    %2216 = vmatprep.subr.mxu0 0.0
    %2217 = vmatpush1.msra.mxu0 0.0
    %2218 = vmatprep.subr.mxu0 0.0
    %2219 = vmatpush1.msra.mxu0 0.0
    %2220 = vmatprep.subr.mxu0 0.0
    %2221 = vmatpush1.msra.mxu0 0.0
    %2222 = vmatprep.subr.mxu0 0.0
    %2223 = vmatpush1.msra.mxu0 0.0
    %2224 = vmatprep.subr.mxu0 0.0
    %2225 = vmatpush1.msra.mxu0 0.0
    %2226 = vmatprep.subr.mxu0 0.0
    %2227 = vmatpush1.msra.mxu0 0.0
    %2228 = vmatprep.subr.mxu0 0.0
    %2229 = vmatpush1.msra.mxu0 0.0
    %2230 = vmatprep.subr.mxu0 0.0
    %2231 = vmatpush1.msra.mxu0 0.0
    %2232 = vmatprep.subr.mxu0 0.0
    %2233 = vmatpush1.msra.mxu0 0.0
    %2234 = vmatprep.subr.mxu0 0.0
    %2235 = vmatpush1.msra.mxu0 0.0
    %2236 = vmatprep.subr.mxu0 0.0
    %2237 = vmatpush1.msra.mxu0 0.0
    %2238 = vmatprep.mubr.f32.mxu0 0.0
    %2239 = vmatmul.mubr.f32.gmra.mrb[0].mxu0 %v2172
    %v2240 = vpop.f32.mrb[0].mxu0
    %v2241 = vadd.f32 0.0, %v2240
    %v2242 = vpop.f32.mrb[0].mxu0
    %2243 = vdwg.mxu0
    %2244 = vrot.lane.b32.xlu0 %v1902, 120
    %v2245 = vpop.permute.xlu0 %2244
    %2246 = vrot.lane.b32.xlu0 %v158, 120
    %v2247 = vpop.permute.xlu0 %2246
    %v2248 = vsel %vm316, %v2245, 0
    %v2250 = vsel %vm316, %v2247, 0
    %2252 = vmatprep.subr.mxu0 0.0
    %2253 = vmatpush1.xpose.msra.mxu0 %v2250
    %2254 = vmatprep.subr.mxu0 0.0
    %2255 = vmatpush1.xpose.msra.mxu0 0.0
    %2256 = vmatprep.subr.mxu0 0.0
    %2257 = vmatpush1.xpose.msra.mxu0 0.0
    %2258 = vmatprep.subr.mxu0 0.0
    %2259 = vmatpush1.xpose.msra.mxu0 0.0
    %2260 = vmatprep.subr.mxu0 0.0
    %2261 = vmatpush1.xpose.msra.mxu0 0.0
    %2262 = vmatprep.subr.mxu0 0.0
    %2263 = vmatpush1.xpose.msra.mxu0 0.0
    %2264 = vmatprep.subr.mxu0 0.0
    %2265 = vmatpush1.xpose.msra.mxu0 0.0
    %2266 = vmatprep.subr.mxu0 0.0
    %2267 = vmatpush1.xpose.msra.mxu0 0.0
    %2268 = vmatprep.subr.mxu0 0.0
    %2269 = vmatpush1.xpose.msra.mxu0 0.0
    %2270 = vmatprep.subr.mxu0 0.0
    %2271 = vmatpush1.xpose.msra.mxu0 0.0
    %2272 = vmatprep.subr.mxu0 0.0
    %2273 = vmatpush1.xpose.msra.mxu0 0.0
    %2274 = vmatprep.subr.mxu0 0.0
    %2275 = vmatpush1.xpose.msra.mxu0 0.0
    %2276 = vmatprep.subr.mxu0 0.0
    %2277 = vmatpush1.xpose.msra.mxu0 0.0
    %2278 = vmatprep.subr.mxu0 0.0
    %2279 = vmatpush1.xpose.msra.mxu0 0.0
    %2280 = vmatprep.subr.mxu0 0.0
    %2281 = vmatpush1.xpose.msra.mxu0 0.0
    %2282 = vmatprep.subr.mxu0 0.0
    %2283 = vmatpush1.xpose.msra.mxu0 0.0
    %2284 = vmatprep.subr.mxu0 0.0
    %2285 = vmatpush1.xpose.msra.mxu0 0.0
    %2286 = vmatprep.subr.mxu0 0.0
    %2287 = vmatpush1.xpose.msra.mxu0 0.0
    %2288 = vmatprep.subr.mxu0 0.0
    %2289 = vmatpush1.xpose.msra.mxu0 0.0
    %2290 = vmatprep.subr.mxu0 0.0
    %2291 = vmatpush1.xpose.msra.mxu0 0.0
    %2292 = vmatprep.subr.mxu0 0.0
    %2293 = vmatpush1.xpose.msra.mxu0 0.0
    %2294 = vmatprep.subr.mxu0 0.0
    %2295 = vmatpush1.xpose.msra.mxu0 0.0
    %2296 = vmatprep.subr.mxu0 0.0
    %2297 = vmatpush1.xpose.msra.mxu0 0.0
    %2298 = vmatprep.subr.mxu0 0.0
    %2299 = vmatpush1.xpose.msra.mxu0 0.0
    %2300 = vmatprep.subr.mxu0 0.0
    %2301 = vmatpush1.xpose.msra.mxu0 0.0
    %2302 = vmatprep.subr.mxu0 0.0
    %2303 = vmatpush1.xpose.msra.mxu0 0.0
    %2304 = vmatprep.subr.mxu0 0.0
    %2305 = vmatpush1.xpose.msra.mxu0 0.0
    %2306 = vmatprep.subr.mxu0 0.0
    %2307 = vmatpush1.xpose.msra.mxu0 0.0
    %2308 = vmatprep.subr.mxu0 0.0
    %2309 = vmatpush1.xpose.msra.mxu0 0.0
    %2310 = vmatprep.subr.mxu0 0.0
    %2311 = vmatpush1.xpose.msra.mxu0 0.0
    %2312 = vmatprep.subr.mxu0 0.0
    %2313 = vmatpush1.xpose.msra.mxu0 0.0
    %2314 = vmatprep.subr.mxu0 0.0
    %2315 = vmatpush1.xpose.msra.mxu0 0.0
    %2316 = vmatprep.mubr.f32.mxu0 0.0
    %2317 = vmatmul.mubr.f32.gmra.mrb[0].mxu0 %v2248
    %v2318 = vpop.f32.mrb[0].mxu0
    %v2319 = vadd.f32 %v1912, %v2318
    %v2320 = vpop.f32.mrb[0].mxu0
    %2321 = vdwg.mxu0
    %2322 = vrot.lane.b32.xlu0 %v1907, 120
    %v2323 = vpop.permute.xlu0 %2322
    %2324 = vrot.lane.b32.xlu0 %v163, 120
    %v2325 = vpop.permute.xlu0 %2324
    %v2326 = vsel %vm316, %v2323, 0
    %v2328 = vsel %vm316, %v2325, 0
    %2330 = vmatprep.subr.mxu0 0.0
    %2331 = vmatpush1.xpose.msra.mxu0 %v2328
    %2332 = vmatprep.subr.mxu0 0.0
    %2333 = vmatpush1.xpose.msra.mxu0 0.0
    %2334 = vmatprep.subr.mxu0 0.0
    %2335 = vmatpush1.xpose.msra.mxu0 0.0
    %2336 = vmatprep.subr.mxu0 0.0
    %2337 = vmatpush1.xpose.msra.mxu0 0.0
    %2338 = vmatprep.subr.mxu0 0.0
    %2339 = vmatpush1.xpose.msra.mxu0 0.0
    %2340 = vmatprep.subr.mxu0 0.0
    %2341 = vmatpush1.xpose.msra.mxu0 0.0
    %2342 = vmatprep.subr.mxu0 0.0
    %2343 = vmatpush1.xpose.msra.mxu0 0.0
    %2344 = vmatprep.subr.mxu0 0.0
    %2345 = vmatpush1.xpose.msra.mxu0 0.0
    %2346 = vmatprep.subr.mxu0 0.0
    %2347 = vmatpush1.xpose.msra.mxu0 0.0
    %2348 = vmatprep.subr.mxu0 0.0
    %2349 = vmatpush1.xpose.msra.mxu0 0.0
    %2350 = vmatprep.subr.mxu0 0.0
    %2351 = vmatpush1.xpose.msra.mxu0 0.0
    %2352 = vmatprep.subr.mxu0 0.0
    %2353 = vmatpush1.xpose.msra.mxu0 0.0
    %2354 = vmatprep.subr.mxu0 0.0
    %2355 = vmatpush1.xpose.msra.mxu0 0.0
    %2356 = vmatprep.subr.mxu0 0.0
    %2357 = vmatpush1.xpose.msra.mxu0 0.0
    %2358 = vmatprep.subr.mxu0 0.0
    %2359 = vmatpush1.xpose.msra.mxu0 0.0
    %2360 = vmatprep.subr.mxu0 0.0
    %2361 = vmatpush1.xpose.msra.mxu0 0.0
    %2362 = vmatprep.subr.mxu0 0.0
    %2363 = vmatpush1.xpose.msra.mxu0 0.0
    %2364 = vmatprep.subr.mxu0 0.0
    %2365 = vmatpush1.xpose.msra.mxu0 0.0
    %2366 = vmatprep.subr.mxu0 0.0
    %2367 = vmatpush1.xpose.msra.mxu0 0.0
    %2368 = vmatprep.subr.mxu0 0.0
    %2369 = vmatpush1.xpose.msra.mxu0 0.0
    %2370 = vmatprep.subr.mxu0 0.0
    %2371 = vmatpush1.xpose.msra.mxu0 0.0
    %2372 = vmatprep.subr.mxu0 0.0
    %2373 = vmatpush1.xpose.msra.mxu0 0.0
    %2374 = vmatprep.subr.mxu0 0.0
    %2375 = vmatpush1.xpose.msra.mxu0 0.0
    %2376 = vmatprep.subr.mxu0 0.0
    %2377 = vmatpush1.xpose.msra.mxu0 0.0
    %2378 = vmatprep.subr.mxu0 0.0
    %2379 = vmatpush1.xpose.msra.mxu0 0.0
    %2380 = vmatprep.subr.mxu0 0.0
    %2381 = vmatpush1.xpose.msra.mxu0 0.0
    %2382 = vmatprep.subr.mxu0 0.0
    %2383 = vmatpush1.xpose.msra.mxu0 0.0
    %2384 = vmatprep.subr.mxu0 0.0
    %2385 = vmatpush1.xpose.msra.mxu0 0.0
    %2386 = vmatprep.subr.mxu0 0.0
    %2387 = vmatpush1.xpose.msra.mxu0 0.0
    %2388 = vmatprep.subr.mxu0 0.0
    %2389 = vmatpush1.xpose.msra.mxu0 0.0
    %2390 = vmatprep.subr.mxu0 0.0
    %2391 = vmatpush1.xpose.msra.mxu0 0.0
    %2392 = vmatprep.subr.mxu0 0.0
    %2393 = vmatpush1.xpose.msra.mxu0 0.0
    %2394 = vmatprep.mubr.f32.mxu0 0.0
    %2395 = vmatmul.mubr.f32.gmra.mrb[0].mxu0 %v2326
    %v2396 = vpop.f32.mrb[0].mxu0
    %v2397 = vadd.f32 %v1992, %v2396
    %v2398 = vpop.f32.mrb[0].mxu0
    %2399 = vdwg.mxu0
    %v2400 = vsel %vm316, %v2319, -inf
    %2401 = vmax.xlane.f32.xlu0 %v2400
    %v2402 = vpop.xlane.xlu0 %2401
    %v2403 = vsel %vm316, %v2397, -inf
    %2404 = vmax.xlane.f32.xlu0 %v2403
    %v2405 = vpop.xlane.xlu0 %2404
    %v2406 = vsub.f32 %v2319, %v2402
    %v2407 = vsub.f32 %v2397, %v2405
    %v2408 = vmul.f32 %v2406, 1.442695
    %v2409 = vpow.pop %v2408
    %v2410 = vmul.f32 %v2407, 1.442695
    %v2411 = vpow.pop %v2410
    %v2412 = vsel %vm316, %v2409, 0.0
    %2413 = vadd.xlane.f32.xlu0 %v2412
    %v2414 = vpop.xlane.xlu0 %2413
    %v2415 = vsel %vm316, %v2411, 0.0
    %2416 = vadd.xlane.f32.xlu0 %v2415
    %v2417 = vpop.xlane.xlu0 %2416
    %v2418 = vrcp.pop %v2414
    %v2419 = vrcp.pop %v2417
    %v2420 = vmul.f32 %v2409, %v2418
    %v2421 = vmul.f32 %v2411, %v2419
    %2422 = vrot.lane.b32.xlu0 %v158, 88
    %v2423 = vpop.permute.xlu0 %2422
    %v2426 = vsel %vm316, %v2420, 0
    %2428 = vmatprep.subr.mxu0 0.0
    %2429 = vmatpush1.msra.mxu0 %v2423
    %2430 = vmatprep.subr.mxu0 0.0
    %2431 = vmatpush1.msra.mxu0 0.0
    %2432 = vmatprep.subr.mxu0 0.0
    %2433 = vmatpush1.msra.mxu0 0.0
    %2434 = vmatprep.subr.mxu0 0.0
    %2435 = vmatpush1.msra.mxu0 0.0
    %2436 = vmatprep.subr.mxu0 0.0
    %2437 = vmatpush1.msra.mxu0 0.0
    %2438 = vmatprep.subr.mxu0 0.0
    %2439 = vmatpush1.msra.mxu0 0.0
    %2440 = vmatprep.subr.mxu0 0.0
    %2441 = vmatpush1.msra.mxu0 0.0
    %2442 = vmatprep.subr.mxu0 0.0
    %2443 = vmatpush1.msra.mxu0 0.0
    %2444 = vmatprep.subr.mxu0 0.0
    %2445 = vmatpush1.msra.mxu0 0.0
    %2446 = vmatprep.subr.mxu0 0.0
    %2447 = vmatpush1.msra.mxu0 0.0
    %2448 = vmatprep.subr.mxu0 0.0
    %2449 = vmatpush1.msra.mxu0 0.0
    %2450 = vmatprep.subr.mxu0 0.0
    %2451 = vmatpush1.msra.mxu0 0.0
    %2452 = vmatprep.subr.mxu0 0.0
    %2453 = vmatpush1.msra.mxu0 0.0
    %2454 = vmatprep.subr.mxu0 0.0
    %2455 = vmatpush1.msra.mxu0 0.0
    %2456 = vmatprep.subr.mxu0 0.0
    %2457 = vmatpush1.msra.mxu0 0.0
    %2458 = vmatprep.subr.mxu0 0.0
    %2459 = vmatpush1.msra.mxu0 0.0
    %2460 = vmatprep.subr.mxu0 0.0
    %2461 = vmatpush1.msra.mxu0 0.0
    %2462 = vmatprep.subr.mxu0 0.0
    %2463 = vmatpush1.msra.mxu0 0.0
    %2464 = vmatprep.subr.mxu0 0.0
    %2465 = vmatpush1.msra.mxu0 0.0
    %2466 = vmatprep.subr.mxu0 0.0
    %2467 = vmatpush1.msra.mxu0 0.0
    %2468 = vmatprep.subr.mxu0 0.0
    %2469 = vmatpush1.msra.mxu0 0.0
    %2470 = vmatprep.subr.mxu0 0.0
    %2471 = vmatpush1.msra.mxu0 0.0
    %2472 = vmatprep.subr.mxu0 0.0
    %2473 = vmatpush1.msra.mxu0 0.0
    %2474 = vmatprep.subr.mxu0 0.0
    %2475 = vmatpush1.msra.mxu0 0.0
    %2476 = vmatprep.subr.mxu0 0.0
    %2477 = vmatpush1.msra.mxu0 0.0
    %2478 = vmatprep.subr.mxu0 0.0
    %2479 = vmatpush1.msra.mxu0 0.0
    %2480 = vmatprep.subr.mxu0 0.0
    %2481 = vmatpush1.msra.mxu0 0.0
    %2482 = vmatprep.subr.mxu0 0.0
    %2483 = vmatpush1.msra.mxu0 0.0
    %2484 = vmatprep.subr.mxu0 0.0
    %2485 = vmatpush1.msra.mxu0 0.0
    %2486 = vmatprep.subr.mxu0 0.0
    %2487 = vmatpush1.msra.mxu0 0.0
    %2488 = vmatprep.subr.mxu0 0.0
    %2489 = vmatpush1.msra.mxu0 0.0
    %2490 = vmatprep.subr.mxu0 0.0
    %2491 = vmatpush1.msra.mxu0 0.0
    %2492 = vmatprep.mubr.f32.mxu0 0.0
    %2493 = vmatmul.mubr.f32.gmra.mrb[0].mxu0 %v2426
    %v2494 = vpop.f32.mrb[0].mxu0
    %v2495 = vadd.f32 0.0, %v2494
    %v2496 = vpop.f32.mrb[0].mxu0
    %2497 = vdwg.mxu0
    %2498 = vrot.lane.b32.xlu0 %v163, 88
    %v2499 = vpop.permute.xlu0 %2498
    %v2502 = vsel %vm316, %v2421, 0
    %2504 = vmatprep.subr.mxu0 0.0
    %2505 = vmatpush1.msra.mxu0 %v2499
    %2506 = vmatprep.subr.mxu0 0.0
    %2507 = vmatpush1.msra.mxu0 0.0
    %2508 = vmatprep.subr.mxu0 0.0
    %2509 = vmatpush1.msra.mxu0 0.0
    %2510 = vmatprep.subr.mxu0 0.0
    %2511 = vmatpush1.msra.mxu0 0.0
    %2512 = vmatprep.subr.mxu0 0.0
    %2513 = vmatpush1.msra.mxu0 0.0
    %2514 = vmatprep.subr.mxu0 0.0
    %2515 = vmatpush1.msra.mxu0 0.0
    %2516 = vmatprep.subr.mxu0 0.0
    %2517 = vmatpush1.msra.mxu0 0.0
    %2518 = vmatprep.subr.mxu0 0.0
    %2519 = vmatpush1.msra.mxu0 0.0
    %2520 = vmatprep.subr.mxu0 0.0
    %2521 = vmatpush1.msra.mxu0 0.0
    %2522 = vmatprep.subr.mxu0 0.0
    %2523 = vmatpush1.msra.mxu0 0.0
    %2524 = vmatprep.subr.mxu0 0.0
    %2525 = vmatpush1.msra.mxu0 0.0
    %2526 = vmatprep.subr.mxu0 0.0
    %2527 = vmatpush1.msra.mxu0 0.0
    %2528 = vmatprep.subr.mxu0 0.0
    %2529 = vmatpush1.msra.mxu0 0.0
    %2530 = vmatprep.subr.mxu0 0.0
    %2531 = vmatpush1.msra.mxu0 0.0
    %2532 = vmatprep.subr.mxu0 0.0
    %2533 = vmatpush1.msra.mxu0 0.0
    %2534 = vmatprep.subr.mxu0 0.0
    %2535 = vmatpush1.msra.mxu0 0.0
    %2536 = vmatprep.subr.mxu0 0.0
    %2537 = vmatpush1.msra.mxu0 0.0
    %2538 = vmatprep.subr.mxu0 0.0
    %2539 = vmatpush1.msra.mxu0 0.0
    %2540 = vmatprep.subr.mxu0 0.0
    %2541 = vmatpush1.msra.mxu0 0.0
    %2542 = vmatprep.subr.mxu0 0.0
    %2543 = vmatpush1.msra.mxu0 0.0
    %2544 = vmatprep.subr.mxu0 0.0
    %2545 = vmatpush1.msra.mxu0 0.0
    %2546 = vmatprep.subr.mxu0 0.0
    %2547 = vmatpush1.msra.mxu0 0.0
    %2548 = vmatprep.subr.mxu0 0.0
    %2549 = vmatpush1.msra.mxu0 0.0
    %2550 = vmatprep.subr.mxu0 0.0
    %2551 = vmatpush1.msra.mxu0 0.0
    %2552 = vmatprep.subr.mxu0 0.0
    %2553 = vmatpush1.msra.mxu0 0.0
    %2554 = vmatprep.subr.mxu0 0.0
    %2555 = vmatpush1.msra.mxu0 0.0
    %2556 = vmatprep.subr.mxu0 0.0
    %2557 = vmatpush1.msra.mxu0 0.0
    %2558 = vmatprep.subr.mxu0 0.0
    %2559 = vmatpush1.msra.mxu0 0.0
    %2560 = vmatprep.subr.mxu0 0.0
    %2561 = vmatpush1.msra.mxu0 0.0
    %2562 = vmatprep.subr.mxu0 0.0
    %2563 = vmatpush1.msra.mxu0 0.0
    %2564 = vmatprep.subr.mxu0 0.0
    %2565 = vmatpush1.msra.mxu0 0.0
    %2566 = vmatprep.subr.mxu0 0.0
    %2567 = vmatpush1.msra.mxu0 0.0
    %2568 = vmatprep.mubr.f32.mxu0 0.0
    %2569 = vmatmul.mubr.f32.gmra.mrb[0].mxu0 %v2502
    %v2570 = vpop.f32.mrb[0].mxu0
    %v2571 = vadd.f32 0.0, %v2570
    %v2572 = vpop.f32.mrb[0].mxu0
    %2573 = vdwg.mxu0
    %2574 = vrot.lane.b32.xlu0 %v1902, 112
    %v2575 = vpop.permute.xlu0 %2574
    %2576 = vrot.lane.b32.xlu0 %v158, 112
    %v2577 = vpop.permute.xlu0 %2576
    %v2578 = vsel %vm316, %v2575, 0
    %v2580 = vsel %vm316, %v2577, 0
    %2582 = vmatprep.subr.mxu0 0.0
    %2583 = vmatpush1.xpose.msra.mxu0 %v2580
    %2584 = vmatprep.subr.mxu0 0.0
    %2585 = vmatpush1.xpose.msra.mxu0 0.0
    %2586 = vmatprep.subr.mxu0 0.0
    %2587 = vmatpush1.xpose.msra.mxu0 0.0
    %2588 = vmatprep.subr.mxu0 0.0
    %2589 = vmatpush1.xpose.msra.mxu0 0.0
    %2590 = vmatprep.subr.mxu0 0.0
    %2591 = vmatpush1.xpose.msra.mxu0 0.0
    %2592 = vmatprep.subr.mxu0 0.0
    %2593 = vmatpush1.xpose.msra.mxu0 0.0
    %2594 = vmatprep.subr.mxu0 0.0
    %2595 = vmatpush1.xpose.msra.mxu0 0.0
    %2596 = vmatprep.subr.mxu0 0.0
    %2597 = vmatpush1.xpose.msra.mxu0 0.0
    %2598 = vmatprep.subr.mxu0 0.0
    %2599 = vmatpush1.xpose.msra.mxu0 0.0
    %2600 = vmatprep.subr.mxu0 0.0
    %2601 = vmatpush1.xpose.msra.mxu0 0.0
    %2602 = vmatprep.subr.mxu0 0.0
    %2603 = vmatpush1.xpose.msra.mxu0 0.0
    %2604 = vmatprep.subr.mxu0 0.0
    %2605 = vmatpush1.xpose.msra.mxu0 0.0
    %2606 = vmatprep.subr.mxu0 0.0
    %2607 = vmatpush1.xpose.msra.mxu0 0.0
    %2608 = vmatprep.subr.mxu0 0.0
    %2609 = vmatpush1.xpose.msra.mxu0 0.0
    %2610 = vmatprep.subr.mxu0 0.0
    %2611 = vmatpush1.xpose.msra.mxu0 0.0
    %2612 = vmatprep.subr.mxu0 0.0
    %2613 = vmatpush1.xpose.msra.mxu0 0.0
    %2614 = vmatprep.subr.mxu0 0.0
    %2615 = vmatpush1.xpose.msra.mxu0 0.0
    %2616 = vmatprep.subr.mxu0 0.0
    %2617 = vmatpush1.xpose.msra.mxu0 0.0
    %2618 = vmatprep.subr.mxu0 0.0
    %2619 = vmatpush1.xpose.msra.mxu0 0.0
    %2620 = vmatprep.subr.mxu0 0.0
    %2621 = vmatpush1.xpose.msra.mxu0 0.0
    %2622 = vmatprep.subr.mxu0 0.0
    %2623 = vmatpush1.xpose.msra.mxu0 0.0
    %2624 = vmatprep.subr.mxu0 0.0
    %2625 = vmatpush1.xpose.msra.mxu0 0.0
    %2626 = vmatprep.subr.mxu0 0.0
    %2627 = vmatpush1.xpose.msra.mxu0 0.0
    %2628 = vmatprep.subr.mxu0 0.0
    %2629 = vmatpush1.xpose.msra.mxu0 0.0
    %2630 = vmatprep.subr.mxu0 0.0
    %2631 = vmatpush1.xpose.msra.mxu0 0.0
    %2632 = vmatprep.subr.mxu0 0.0
    %2633 = vmatpush1.xpose.msra.mxu0 0.0
    %2634 = vmatprep.subr.mxu0 0.0
    %2635 = vmatpush1.xpose.msra.mxu0 0.0
    %2636 = vmatprep.subr.mxu0 0.0
    %2637 = vmatpush1.xpose.msra.mxu0 0.0
    %2638 = vmatprep.subr.mxu0 0.0
    %2639 = vmatpush1.xpose.msra.mxu0 0.0
    %2640 = vmatprep.subr.mxu0 0.0
    %2641 = vmatpush1.xpose.msra.mxu0 0.0
    %2642 = vmatprep.subr.mxu0 0.0
    %2643 = vmatpush1.xpose.msra.mxu0 0.0
    %2644 = vmatprep.subr.mxu0 0.0
    %2645 = vmatpush1.xpose.msra.mxu0 0.0
    %2646 = vmatprep.mubr.f32.mxu0 0.0
    %2647 = vmatmul.mubr.f32.gmra.mrb[0].mxu0 %v2578
    %v2648 = vpop.f32.mrb[0].mxu0
    %v2649 = vadd.f32 %v1912, %v2648
    %v2650 = vpop.f32.mrb[0].mxu0
    %2651 = vdwg.mxu0
    %2652 = vrot.lane.b32.xlu0 %v1907, 112
    %v2653 = vpop.permute.xlu0 %2652
    %2654 = vrot.lane.b32.xlu0 %v163, 112
    %v2655 = vpop.permute.xlu0 %2654
    %v2656 = vsel %vm316, %v2653, 0
    %v2658 = vsel %vm316, %v2655, 0
    %2660 = vmatprep.subr.mxu0 0.0
    %2661 = vmatpush1.xpose.msra.mxu0 %v2658
    %2662 = vmatprep.subr.mxu0 0.0
    %2663 = vmatpush1.xpose.msra.mxu0 0.0
    %2664 = vmatprep.subr.mxu0 0.0
    %2665 = vmatpush1.xpose.msra.mxu0 0.0
    %2666 = vmatprep.subr.mxu0 0.0
    %2667 = vmatpush1.xpose.msra.mxu0 0.0
    %2668 = vmatprep.subr.mxu0 0.0
    %2669 = vmatpush1.xpose.msra.mxu0 0.0
    %2670 = vmatprep.subr.mxu0 0.0
    %2671 = vmatpush1.xpose.msra.mxu0 0.0
    %2672 = vmatprep.subr.mxu0 0.0
    %2673 = vmatpush1.xpose.msra.mxu0 0.0
    %2674 = vmatprep.subr.mxu0 0.0
    %2675 = vmatpush1.xpose.msra.mxu0 0.0
    %2676 = vmatprep.subr.mxu0 0.0
    %2677 = vmatpush1.xpose.msra.mxu0 0.0
    %2678 = vmatprep.subr.mxu0 0.0
    %2679 = vmatpush1.xpose.msra.mxu0 0.0
    %2680 = vmatprep.subr.mxu0 0.0
    %2681 = vmatpush1.xpose.msra.mxu0 0.0
    %2682 = vmatprep.subr.mxu0 0.0
    %2683 = vmatpush1.xpose.msra.mxu0 0.0
    %2684 = vmatprep.subr.mxu0 0.0
    %2685 = vmatpush1.xpose.msra.mxu0 0.0
    %2686 = vmatprep.subr.mxu0 0.0
    %2687 = vmatpush1.xpose.msra.mxu0 0.0
    %2688 = vmatprep.subr.mxu0 0.0
    %2689 = vmatpush1.xpose.msra.mxu0 0.0
    %2690 = vmatprep.subr.mxu0 0.0
    %2691 = vmatpush1.xpose.msra.mxu0 0.0
    %2692 = vmatprep.subr.mxu0 0.0
    %2693 = vmatpush1.xpose.msra.mxu0 0.0
    %2694 = vmatprep.subr.mxu0 0.0
    %2695 = vmatpush1.xpose.msra.mxu0 0.0
    %2696 = vmatprep.subr.mxu0 0.0
    %2697 = vmatpush1.xpose.msra.mxu0 0.0
    %2698 = vmatprep.subr.mxu0 0.0
    %2699 = vmatpush1.xpose.msra.mxu0 0.0
    %2700 = vmatprep.subr.mxu0 0.0
    %2701 = vmatpush1.xpose.msra.mxu0 0.0
    %2702 = vmatprep.subr.mxu0 0.0
    %2703 = vmatpush1.xpose.msra.mxu0 0.0
    %2704 = vmatprep.subr.mxu0 0.0
    %2705 = vmatpush1.xpose.msra.mxu0 0.0
    %2706 = vmatprep.subr.mxu0 0.0
    %2707 = vmatpush1.xpose.msra.mxu0 0.0
    %2708 = vmatprep.subr.mxu0 0.0
    %2709 = vmatpush1.xpose.msra.mxu0 0.0
    %2710 = vmatprep.subr.mxu0 0.0
    %2711 = vmatpush1.xpose.msra.mxu0 0.0
    %2712 = vmatprep.subr.mxu0 0.0
    %2713 = vmatpush1.xpose.msra.mxu0 0.0
    %2714 = vmatprep.subr.mxu0 0.0
    %2715 = vmatpush1.xpose.msra.mxu0 0.0
    %2716 = vmatprep.subr.mxu0 0.0
    %2717 = vmatpush1.xpose.msra.mxu0 0.0
    %2718 = vmatprep.subr.mxu0 0.0
    %2719 = vmatpush1.xpose.msra.mxu0 0.0
    %2720 = vmatprep.subr.mxu0 0.0
    %2721 = vmatpush1.xpose.msra.mxu0 0.0
    %2722 = vmatprep.subr.mxu0 0.0
    %2723 = vmatpush1.xpose.msra.mxu0 0.0
    %2724 = vmatprep.mubr.f32.mxu0 0.0
    %2725 = vmatmul.mubr.f32.gmra.mrb[0].mxu0 %v2656
    %v2726 = vpop.f32.mrb[0].mxu0
    %v2727 = vadd.f32 %v1992, %v2726
    %v2728 = vpop.f32.mrb[0].mxu0
    %2729 = vdwg.mxu0
    %v2730 = vsel %vm316, %v2649, -inf
    %2731 = vmax.xlane.f32.xlu0 %v2730
    %v2732 = vpop.xlane.xlu0 %2731
    %v2733 = vsel %vm316, %v2727, -inf
    %2734 = vmax.xlane.f32.xlu0 %v2733
    %v2735 = vpop.xlane.xlu0 %2734
    %v2736 = vsub.f32 %v2649, %v2732
    %v2737 = vsub.f32 %v2727, %v2735
    %v2738 = vmul.f32 %v2736, 1.442695
    %v2739 = vpow.pop %v2738
    %v2740 = vmul.f32 %v2737, 1.442695
    %v2741 = vpow.pop %v2740
    %v2742 = vsel %vm316, %v2739, 0.0
    %2743 = vadd.xlane.f32.xlu0 %v2742
    %v2744 = vpop.xlane.xlu0 %2743
    %v2745 = vsel %vm316, %v2741, 0.0
    %2746 = vadd.xlane.f32.xlu0 %v2745
    %v2747 = vpop.xlane.xlu0 %2746
    %v2748 = vrcp.pop %v2744
    %v2749 = vrcp.pop %v2747
    %v2750 = vmul.f32 %v2739, %v2748
    %v2751 = vmul.f32 %v2741, %v2749
    %2752 = vrot.lane.b32.xlu0 %v158, 80
    %v2753 = vpop.permute.xlu0 %2752
    %v2756 = vsel %vm316, %v2750, 0
    %2758 = vmatprep.subr.mxu0 0.0
    %2759 = vmatpush1.msra.mxu0 %v2753
    %2760 = vmatprep.subr.mxu0 0.0
    %2761 = vmatpush1.msra.mxu0 0.0
    %2762 = vmatprep.subr.mxu0 0.0
    %2763 = vmatpush1.msra.mxu0 0.0
    %2764 = vmatprep.subr.mxu0 0.0
    %2765 = vmatpush1.msra.mxu0 0.0
    %2766 = vmatprep.subr.mxu0 0.0
    %2767 = vmatpush1.msra.mxu0 0.0
    %2768 = vmatprep.subr.mxu0 0.0
    %2769 = vmatpush1.msra.mxu0 0.0
    %2770 = vmatprep.subr.mxu0 0.0
    %2771 = vmatpush1.msra.mxu0 0.0
    %2772 = vmatprep.subr.mxu0 0.0
    %2773 = vmatpush1.msra.mxu0 0.0
    %2774 = vmatprep.subr.mxu0 0.0
    %2775 = vmatpush1.msra.mxu0 0.0
    %2776 = vmatprep.subr.mxu0 0.0
    %2777 = vmatpush1.msra.mxu0 0.0
    %2778 = vmatprep.subr.mxu0 0.0
    %2779 = vmatpush1.msra.mxu0 0.0
    %2780 = vmatprep.subr.mxu0 0.0
    %2781 = vmatpush1.msra.mxu0 0.0
    %2782 = vmatprep.subr.mxu0 0.0
    %2783 = vmatpush1.msra.mxu0 0.0
    %2784 = vmatprep.subr.mxu0 0.0
    %2785 = vmatpush1.msra.mxu0 0.0
    %2786 = vmatprep.subr.mxu0 0.0
    %2787 = vmatpush1.msra.mxu0 0.0
    %2788 = vmatprep.subr.mxu0 0.0
    %2789 = vmatpush1.msra.mxu0 0.0
    %2790 = vmatprep.subr.mxu0 0.0
    %2791 = vmatpush1.msra.mxu0 0.0
    %2792 = vmatprep.subr.mxu0 0.0
    %2793 = vmatpush1.msra.mxu0 0.0
    %2794 = vmatprep.subr.mxu0 0.0
    %2795 = vmatpush1.msra.mxu0 0.0
    %2796 = vmatprep.subr.mxu0 0.0
    %2797 = vmatpush1.msra.mxu0 0.0
    %2798 = vmatprep.subr.mxu0 0.0
    %2799 = vmatpush1.msra.mxu0 0.0
    %2800 = vmatprep.subr.mxu0 0.0
    %2801 = vmatpush1.msra.mxu0 0.0
    %2802 = vmatprep.subr.mxu0 0.0
    %2803 = vmatpush1.msra.mxu0 0.0
    %2804 = vmatprep.subr.mxu0 0.0
    %2805 = vmatpush1.msra.mxu0 0.0
    %2806 = vmatprep.subr.mxu0 0.0
    %2807 = vmatpush1.msra.mxu0 0.0
    %2808 = vmatprep.subr.mxu0 0.0
    %2809 = vmatpush1.msra.mxu0 0.0
    %2810 = vmatprep.subr.mxu0 0.0
    %2811 = vmatpush1.msra.mxu0 0.0
    %2812 = vmatprep.subr.mxu0 0.0
    %2813 = vmatpush1.msra.mxu0 0.0
    %2814 = vmatprep.subr.mxu0 0.0
    %2815 = vmatpush1.msra.mxu0 0.0
    %2816 = vmatprep.subr.mxu0 0.0
    %2817 = vmatpush1.msra.mxu0 0.0
    %2818 = vmatprep.subr.mxu0 0.0
    %2819 = vmatpush1.msra.mxu0 0.0
    %2820 = vmatprep.subr.mxu0 0.0
    %2821 = vmatpush1.msra.mxu0 0.0
    %2822 = vmatprep.mubr.f32.mxu0 0.0
    %2823 = vmatmul.mubr.f32.gmra.mrb[0].mxu0 %v2756
    %v2824 = vpop.f32.mrb[0].mxu0
    %v2825 = vadd.f32 0.0, %v2824
    %v2826 = vpop.f32.mrb[0].mxu0
    %2827 = vdwg.mxu0
    %2828 = vrot.lane.b32.xlu0 %v163, 80
    %v2829 = vpop.permute.xlu0 %2828
    %v2832 = vsel %vm316, %v2751, 0
    %2834 = vmatprep.subr.mxu0 0.0
    %2835 = vmatpush1.msra.mxu0 %v2829
    %2836 = vmatprep.subr.mxu0 0.0
    %2837 = vmatpush1.msra.mxu0 0.0
    %2838 = vmatprep.subr.mxu0 0.0
    %2839 = vmatpush1.msra.mxu0 0.0
    %2840 = vmatprep.subr.mxu0 0.0
    %2841 = vmatpush1.msra.mxu0 0.0
    %2842 = vmatprep.subr.mxu0 0.0
    %2843 = vmatpush1.msra.mxu0 0.0
    %2844 = vmatprep.subr.mxu0 0.0
    %2845 = vmatpush1.msra.mxu0 0.0
    %2846 = vmatprep.subr.mxu0 0.0
    %2847 = vmatpush1.msra.mxu0 0.0
    %2848 = vmatprep.subr.mxu0 0.0
    %2849 = vmatpush1.msra.mxu0 0.0
    %2850 = vmatprep.subr.mxu0 0.0
    %2851 = vmatpush1.msra.mxu0 0.0
    %2852 = vmatprep.subr.mxu0 0.0
    %2853 = vmatpush1.msra.mxu0 0.0
    %2854 = vmatprep.subr.mxu0 0.0
    %2855 = vmatpush1.msra.mxu0 0.0
    %2856 = vmatprep.subr.mxu0 0.0
    %2857 = vmatpush1.msra.mxu0 0.0
    %2858 = vmatprep.subr.mxu0 0.0
    %2859 = vmatpush1.msra.mxu0 0.0
    %2860 = vmatprep.subr.mxu0 0.0
    %2861 = vmatpush1.msra.mxu0 0.0
    %2862 = vmatprep.subr.mxu0 0.0
    %2863 = vmatpush1.msra.mxu0 0.0
    %2864 = vmatprep.subr.mxu0 0.0
    %2865 = vmatpush1.msra.mxu0 0.0
    %2866 = vmatprep.subr.mxu0 0.0
    %2867 = vmatpush1.msra.mxu0 0.0
    %2868 = vmatprep.subr.mxu0 0.0
    %2869 = vmatpush1.msra.mxu0 0.0
    %2870 = vmatprep.subr.mxu0 0.0
    %2871 = vmatpush1.msra.mxu0 0.0
    %2872 = vmatprep.subr.mxu0 0.0
    %2873 = vmatpush1.msra.mxu0 0.0
    %2874 = vmatprep.subr.mxu0 0.0
    %2875 = vmatpush1.msra.mxu0 0.0
    %2876 = vmatprep.subr.mxu0 0.0
    %2877 = vmatpush1.msra.mxu0 0.0
    %2878 = vmatprep.subr.mxu0 0.0
    %2879 = vmatpush1.msra.mxu0 0.0
    %2880 = vmatprep.subr.mxu0 0.0
    %2881 = vmatpush1.msra.mxu0 0.0
    %2882 = vmatprep.subr.mxu0 0.0
    %2883 = vmatpush1.msra.mxu0 0.0
    %2884 = vmatprep.subr.mxu0 0.0
    %2885 = vmatpush1.msra.mxu0 0.0
    %2886 = vmatprep.subr.mxu0 0.0
    %2887 = vmatpush1.msra.mxu0 0.0
    %2888 = vmatprep.subr.mxu0 0.0
    %2889 = vmatpush1.msra.mxu0 0.0
    %2890 = vmatprep.subr.mxu0 0.0
    %2891 = vmatpush1.msra.mxu0 0.0
    %2892 = vmatprep.subr.mxu0 0.0
    %2893 = vmatpush1.msra.mxu0 0.0
    %2894 = vmatprep.subr.mxu0 0.0
    %2895 = vmatpush1.msra.mxu0 0.0
    %2896 = vmatprep.subr.mxu0 0.0
    %2897 = vmatpush1.msra.mxu0 0.0
    %2898 = vmatprep.mubr.f32.mxu0 0.0
    %2899 = vmatmul.mubr.f32.gmra.mrb[0].mxu0 %v2832
    %v2900 = vpop.f32.mrb[0].mxu0
    %v2901 = vadd.f32 0.0, %v2900
    %v2902 = vpop.f32.mrb[0].mxu0
    %2903 = vdwg.mxu0
    %2904 = vrot.lane.b32.xlu0 %v1902, 104
    %v2905 = vpop.permute.xlu0 %2904
    %2906 = vrot.lane.b32.xlu0 %v158, 104
    %v2907 = vpop.permute.xlu0 %2906
    %v2908 = vsel %vm316, %v2905, 0
    %v2910 = vsel %vm316, %v2907, 0
    %2912 = vmatprep.subr.mxu0 0.0
    %2913 = vmatpush1.xpose.msra.mxu0 %v2910
    %2914 = vmatprep.subr.mxu0 0.0
    %2915 = vmatpush1.xpose.msra.mxu0 0.0
    %2916 = vmatprep.subr.mxu0 0.0
    %2917 = vmatpush1.xpose.msra.mxu0 0.0
    %2918 = vmatprep.subr.mxu0 0.0
    %2919 = vmatpush1.xpose.msra.mxu0 0.0
    %2920 = vmatprep.subr.mxu0 0.0
    %2921 = vmatpush1.xpose.msra.mxu0 0.0
    %2922 = vmatprep.subr.mxu0 0.0
    %2923 = vmatpush1.xpose.msra.mxu0 0.0
    %2924 = vmatprep.subr.mxu0 0.0
    %2925 = vmatpush1.xpose.msra.mxu0 0.0
    %2926 = vmatprep.subr.mxu0 0.0
    %2927 = vmatpush1.xpose.msra.mxu0 0.0
    %2928 = vmatprep.subr.mxu0 0.0
    %2929 = vmatpush1.xpose.msra.mxu0 0.0
    %2930 = vmatprep.subr.mxu0 0.0
    %2931 = vmatpush1.xpose.msra.mxu0 0.0
    %2932 = vmatprep.subr.mxu0 0.0
    %2933 = vmatpush1.xpose.msra.mxu0 0.0
    %2934 = vmatprep.subr.mxu0 0.0
    %2935 = vmatpush1.xpose.msra.mxu0 0.0
    %2936 = vmatprep.subr.mxu0 0.0
    %2937 = vmatpush1.xpose.msra.mxu0 0.0
    %2938 = vmatprep.subr.mxu0 0.0
    %2939 = vmatpush1.xpose.msra.mxu0 0.0
    %2940 = vmatprep.subr.mxu0 0.0
    %2941 = vmatpush1.xpose.msra.mxu0 0.0
    %2942 = vmatprep.subr.mxu0 0.0
    %2943 = vmatpush1.xpose.msra.mxu0 0.0
    %2944 = vmatprep.subr.mxu0 0.0
    %2945 = vmatpush1.xpose.msra.mxu0 0.0
    %2946 = vmatprep.subr.mxu0 0.0
    %2947 = vmatpush1.xpose.msra.mxu0 0.0
    %2948 = vmatprep.subr.mxu0 0.0
    %2949 = vmatpush1.xpose.msra.mxu0 0.0
    %2950 = vmatprep.subr.mxu0 0.0
    %2951 = vmatpush1.xpose.msra.mxu0 0.0
    %2952 = vmatprep.subr.mxu0 0.0
    %2953 = vmatpush1.xpose.msra.mxu0 0.0
    %2954 = vmatprep.subr.mxu0 0.0
    %2955 = vmatpush1.xpose.msra.mxu0 0.0
    %2956 = vmatprep.subr.mxu0 0.0
    %2957 = vmatpush1.xpose.msra.mxu0 0.0
    %2958 = vmatprep.subr.mxu0 0.0
    %2959 = vmatpush1.xpose.msra.mxu0 0.0
    %2960 = vmatprep.subr.mxu0 0.0
    %2961 = vmatpush1.xpose.msra.mxu0 0.0
    %2962 = vmatprep.subr.mxu0 0.0
    %2963 = vmatpush1.xpose.msra.mxu0 0.0
    %2964 = vmatprep.subr.mxu0 0.0
    %2965 = vmatpush1.xpose.msra.mxu0 0.0
    %2966 = vmatprep.subr.mxu0 0.0
    %2967 = vmatpush1.xpose.msra.mxu0 0.0
    %2968 = vmatprep.subr.mxu0 0.0
    %2969 = vmatpush1.xpose.msra.mxu0 0.0
    %2970 = vmatprep.subr.mxu0 0.0
    %2971 = vmatpush1.xpose.msra.mxu0 0.0
    %2972 = vmatprep.subr.mxu0 0.0
    %2973 = vmatpush1.xpose.msra.mxu0 0.0
    %2974 = vmatprep.subr.mxu0 0.0
    %2975 = vmatpush1.xpose.msra.mxu0 0.0
    %2976 = vmatprep.mubr.f32.mxu0 0.0
    %2977 = vmatmul.mubr.f32.gmra.mrb[0].mxu0 %v2908
    %v2978 = vpop.f32.mrb[0].mxu0
    %v2979 = vadd.f32 %v1912, %v2978
    %v2980 = vpop.f32.mrb[0].mxu0
    %2981 = vdwg.mxu0
    %2982 = vrot.lane.b32.xlu0 %v1907, 104
    %v2983 = vpop.permute.xlu0 %2982
    %2984 = vrot.lane.b32.xlu0 %v163, 104
    %v2985 = vpop.permute.xlu0 %2984
    %v2986 = vsel %vm316, %v2983, 0
    %v2988 = vsel %vm316, %v2985, 0
    %2990 = vmatprep.subr.mxu0 0.0
    %2991 = vmatpush1.xpose.msra.mxu0 %v2988
    %2992 = vmatprep.subr.mxu0 0.0
    %2993 = vmatpush1.xpose.msra.mxu0 0.0
    %2994 = vmatprep.subr.mxu0 0.0
    %2995 = vmatpush1.xpose.msra.mxu0 0.0
    %2996 = vmatprep.subr.mxu0 0.0
    %2997 = vmatpush1.xpose.msra.mxu0 0.0
    %2998 = vmatprep.subr.mxu0 0.0
    %2999 = vmatpush1.xpose.msra.mxu0 0.0
    %3000 = vmatprep.subr.mxu0 0.0
    %3001 = vmatpush1.xpose.msra.mxu0 0.0
    %3002 = vmatprep.subr.mxu0 0.0
    %3003 = vmatpush1.xpose.msra.mxu0 0.0
    %3004 = vmatprep.subr.mxu0 0.0
    %3005 = vmatpush1.xpose.msra.mxu0 0.0
    %3006 = vmatprep.subr.mxu0 0.0
    %3007 = vmatpush1.xpose.msra.mxu0 0.0
    %3008 = vmatprep.subr.mxu0 0.0
    %3009 = vmatpush1.xpose.msra.mxu0 0.0
    %3010 = vmatprep.subr.mxu0 0.0
    %3011 = vmatpush1.xpose.msra.mxu0 0.0
    %3012 = vmatprep.subr.mxu0 0.0
    %3013 = vmatpush1.xpose.msra.mxu0 0.0
    %3014 = vmatprep.subr.mxu0 0.0
    %3015 = vmatpush1.xpose.msra.mxu0 0.0
    %3016 = vmatprep.subr.mxu0 0.0
    %3017 = vmatpush1.xpose.msra.mxu0 0.0
    %3018 = vmatprep.subr.mxu0 0.0
    %3019 = vmatpush1.xpose.msra.mxu0 0.0
    %3020 = vmatprep.subr.mxu0 0.0
    %3021 = vmatpush1.xpose.msra.mxu0 0.0
    %3022 = vmatprep.subr.mxu0 0.0
    %3023 = vmatpush1.xpose.msra.mxu0 0.0
    %3024 = vmatprep.subr.mxu0 0.0
    %3025 = vmatpush1.xpose.msra.mxu0 0.0
    %3026 = vmatprep.subr.mxu0 0.0
    %3027 = vmatpush1.xpose.msra.mxu0 0.0
    %3028 = vmatprep.subr.mxu0 0.0
    %3029 = vmatpush1.xpose.msra.mxu0 0.0
    %3030 = vmatprep.subr.mxu0 0.0
    %3031 = vmatpush1.xpose.msra.mxu0 0.0
    %3032 = vmatprep.subr.mxu0 0.0
    %3033 = vmatpush1.xpose.msra.mxu0 0.0
    %3034 = vmatprep.subr.mxu0 0.0
    %3035 = vmatpush1.xpose.msra.mxu0 0.0
    %3036 = vmatprep.subr.mxu0 0.0
    %3037 = vmatpush1.xpose.msra.mxu0 0.0
    %3038 = vmatprep.subr.mxu0 0.0
    %3039 = vmatpush1.xpose.msra.mxu0 0.0
    %3040 = vmatprep.subr.mxu0 0.0
    %3041 = vmatpush1.xpose.msra.mxu0 0.0
    %3042 = vmatprep.subr.mxu0 0.0
    %3043 = vmatpush1.xpose.msra.mxu0 0.0
    %3044 = vmatprep.subr.mxu0 0.0
    %3045 = vmatpush1.xpose.msra.mxu0 0.0
    %3046 = vmatprep.subr.mxu0 0.0
    %3047 = vmatpush1.xpose.msra.mxu0 0.0
    %3048 = vmatprep.subr.mxu0 0.0
    %3049 = vmatpush1.xpose.msra.mxu0 0.0
    %3050 = vmatprep.subr.mxu0 0.0
    %3051 = vmatpush1.xpose.msra.mxu0 0.0
    %3052 = vmatprep.subr.mxu0 0.0
    %3053 = vmatpush1.xpose.msra.mxu0 0.0
    %3054 = vmatprep.mubr.f32.mxu0 0.0
    %3055 = vmatmul.mubr.f32.gmra.mrb[0].mxu0 %v2986
    %v3056 = vpop.f32.mrb[0].mxu0
    %v3057 = vadd.f32 %v1992, %v3056
    %v3058 = vpop.f32.mrb[0].mxu0
    %3059 = vdwg.mxu0
    %v3060 = vsel %vm316, %v2979, -inf
    %3061 = vmax.xlane.f32.xlu0 %v3060
    %v3062 = vpop.xlane.xlu0 %3061
    %v3063 = vsel %vm316, %v3057, -inf
    %3064 = vmax.xlane.f32.xlu0 %v3063
    %v3065 = vpop.xlane.xlu0 %3064
    %v3066 = vsub.f32 %v2979, %v3062
    %v3067 = vsub.f32 %v3057, %v3065
    %v3068 = vmul.f32 %v3066, 1.442695
    %v3069 = vpow.pop %v3068
    %v3070 = vmul.f32 %v3067, 1.442695
    %v3071 = vpow.pop %v3070
    %v3072 = vsel %vm316, %v3069, 0.0
    %3073 = vadd.xlane.f32.xlu0 %v3072
    %v3074 = vpop.xlane.xlu0 %3073
    %v3075 = vsel %vm316, %v3071, 0.0
    %3076 = vadd.xlane.f32.xlu0 %v3075
    %v3077 = vpop.xlane.xlu0 %3076
    %v3078 = vrcp.pop %v3074
    %v3079 = vrcp.pop %v3077
    %v3080 = vmul.f32 %v3069, %v3078
    %v3081 = vmul.f32 %v3071, %v3079
    %3082 = vrot.lane.b32.xlu0 %v158, 72
    %v3083 = vpop.permute.xlu0 %3082
    %v3086 = vsel %vm316, %v3080, 0
    %3088 = vmatprep.subr.mxu0 0.0
    %3089 = vmatpush1.msra.mxu0 %v3083
    %3090 = vmatprep.subr.mxu0 0.0
    %3091 = vmatpush1.msra.mxu0 0.0
    %3092 = vmatprep.subr.mxu0 0.0
    %3093 = vmatpush1.msra.mxu0 0.0
    %3094 = vmatprep.subr.mxu0 0.0
    %3095 = vmatpush1.msra.mxu0 0.0
    %3096 = vmatprep.subr.mxu0 0.0
    %3097 = vmatpush1.msra.mxu0 0.0
    %3098 = vmatprep.subr.mxu0 0.0
    %3099 = vmatpush1.msra.mxu0 0.0
    %3100 = vmatprep.subr.mxu0 0.0
    %3101 = vmatpush1.msra.mxu0 0.0
    %3102 = vmatprep.subr.mxu0 0.0
    %3103 = vmatpush1.msra.mxu0 0.0
    %3104 = vmatprep.subr.mxu0 0.0
    %3105 = vmatpush1.msra.mxu0 0.0
    %3106 = vmatprep.subr.mxu0 0.0
    %3107 = vmatpush1.msra.mxu0 0.0
    %3108 = vmatprep.subr.mxu0 0.0
    %3109 = vmatpush1.msra.mxu0 0.0
    %3110 = vmatprep.subr.mxu0 0.0
    %3111 = vmatpush1.msra.mxu0 0.0
    %3112 = vmatprep.subr.mxu0 0.0
    %3113 = vmatpush1.msra.mxu0 0.0
    %3114 = vmatprep.subr.mxu0 0.0
    %3115 = vmatpush1.msra.mxu0 0.0
    %3116 = vmatprep.subr.mxu0 0.0
    %3117 = vmatpush1.msra.mxu0 0.0
    %3118 = vmatprep.subr.mxu0 0.0
    %3119 = vmatpush1.msra.mxu0 0.0
    %3120 = vmatprep.subr.mxu0 0.0
    %3121 = vmatpush1.msra.mxu0 0.0
    %3122 = vmatprep.subr.mxu0 0.0
    %3123 = vmatpush1.msra.mxu0 0.0
    %3124 = vmatprep.subr.mxu0 0.0
    %3125 = vmatpush1.msra.mxu0 0.0
    %3126 = vmatprep.subr.mxu0 0.0
    %3127 = vmatpush1.msra.mxu0 0.0
    %3128 = vmatprep.subr.mxu0 0.0
    %3129 = vmatpush1.msra.mxu0 0.0
    %3130 = vmatprep.subr.mxu0 0.0
    %3131 = vmatpush1.msra.mxu0 0.0
    %3132 = vmatprep.subr.mxu0 0.0
    %3133 = vmatpush1.msra.mxu0 0.0
    %3134 = vmatprep.subr.mxu0 0.0
    %3135 = vmatpush1.msra.mxu0 0.0
    %3136 = vmatprep.subr.mxu0 0.0
    %3137 = vmatpush1.msra.mxu0 0.0
    %3138 = vmatprep.subr.mxu0 0.0
    %3139 = vmatpush1.msra.mxu0 0.0
    %3140 = vmatprep.subr.mxu0 0.0
    %3141 = vmatpush1.msra.mxu0 0.0
    %3142 = vmatprep.subr.mxu0 0.0
    %3143 = vmatpush1.msra.mxu0 0.0
    %3144 = vmatprep.subr.mxu0 0.0
    %3145 = vmatpush1.msra.mxu0 0.0
    %3146 = vmatprep.subr.mxu0 0.0
    %3147 = vmatpush1.msra.mxu0 0.0
    %3148 = vmatprep.subr.mxu0 0.0
    %3149 = vmatpush1.msra.mxu0 0.0
    %3150 = vmatprep.subr.mxu0 0.0
    %3151 = vmatpush1.msra.mxu0 0.0
    %3152 = vmatprep.mubr.f32.mxu0 0.0
    %3153 = vmatmul.mubr.f32.gmra.mrb[0].mxu0 %v3086
    %v3154 = vpop.f32.mrb[0].mxu0
    %v3155 = vadd.f32 0.0, %v3154
    %v3156 = vpop.f32.mrb[0].mxu0
    %3157 = vdwg.mxu0
    %3158 = vrot.lane.b32.xlu0 %v163, 72
    %v3159 = vpop.permute.xlu0 %3158
    %v3162 = vsel %vm316, %v3081, 0
    %3164 = vmatprep.subr.mxu0 0.0
    %3165 = vmatpush1.msra.mxu0 %v3159
    %3166 = vmatprep.subr.mxu0 0.0
    %3167 = vmatpush1.msra.mxu0 0.0
    %3168 = vmatprep.subr.mxu0 0.0
    %3169 = vmatpush1.msra.mxu0 0.0
    %3170 = vmatprep.subr.mxu0 0.0
    %3171 = vmatpush1.msra.mxu0 0.0
    %3172 = vmatprep.subr.mxu0 0.0
    %3173 = vmatpush1.msra.mxu0 0.0
    %3174 = vmatprep.subr.mxu0 0.0
    %3175 = vmatpush1.msra.mxu0 0.0
    %3176 = vmatprep.subr.mxu0 0.0
    %3177 = vmatpush1.msra.mxu0 0.0
    %3178 = vmatprep.subr.mxu0 0.0
    %3179 = vmatpush1.msra.mxu0 0.0
    %3180 = vmatprep.subr.mxu0 0.0
    %3181 = vmatpush1.msra.mxu0 0.0
    %3182 = vmatprep.subr.mxu0 0.0
    %3183 = vmatpush1.msra.mxu0 0.0
    %3184 = vmatprep.subr.mxu0 0.0
    %3185 = vmatpush1.msra.mxu0 0.0
    %3186 = vmatprep.subr.mxu0 0.0
    %3187 = vmatpush1.msra.mxu0 0.0
    %3188 = vmatprep.subr.mxu0 0.0
    %3189 = vmatpush1.msra.mxu0 0.0
    %3190 = vmatprep.subr.mxu0 0.0
    %3191 = vmatpush1.msra.mxu0 0.0
    %3192 = vmatprep.subr.mxu0 0.0
    %3193 = vmatpush1.msra.mxu0 0.0
    %3194 = vmatprep.subr.mxu0 0.0
    %3195 = vmatpush1.msra.mxu0 0.0
    %3196 = vmatprep.subr.mxu0 0.0
    %3197 = vmatpush1.msra.mxu0 0.0
    %3198 = vmatprep.subr.mxu0 0.0
    %3199 = vmatpush1.msra.mxu0 0.0
    %3200 = vmatprep.subr.mxu0 0.0
    %3201 = vmatpush1.msra.mxu0 0.0
    %3202 = vmatprep.subr.mxu0 0.0
    %3203 = vmatpush1.msra.mxu0 0.0
    %3204 = vmatprep.subr.mxu0 0.0
    %3205 = vmatpush1.msra.mxu0 0.0
    %3206 = vmatprep.subr.mxu0 0.0
    %3207 = vmatpush1.msra.mxu0 0.0
    %3208 = vmatprep.subr.mxu0 0.0
    %3209 = vmatpush1.msra.mxu0 0.0
    %3210 = vmatprep.subr.mxu0 0.0
    %3211 = vmatpush1.msra.mxu0 0.0
    %3212 = vmatprep.subr.mxu0 0.0
    %3213 = vmatpush1.msra.mxu0 0.0
    %3214 = vmatprep.subr.mxu0 0.0
    %3215 = vmatpush1.msra.mxu0 0.0
    %3216 = vmatprep.subr.mxu0 0.0
    %3217 = vmatpush1.msra.mxu0 0.0
    %3218 = vmatprep.subr.mxu0 0.0
    %3219 = vmatpush1.msra.mxu0 0.0
    %3220 = vmatprep.subr.mxu0 0.0
    %3221 = vmatpush1.msra.mxu0 0.0
    %3222 = vmatprep.subr.mxu0 0.0
    %3223 = vmatpush1.msra.mxu0 0.0
    %3224 = vmatprep.subr.mxu0 0.0
    %3225 = vmatpush1.msra.mxu0 0.0
    %3226 = vmatprep.subr.mxu0 0.0
    %3227 = vmatpush1.msra.mxu0 0.0
    %3228 = vmatprep.mubr.f32.mxu0 0.0
    %3229 = vmatmul.mubr.f32.gmra.mrb[0].mxu0 %v3162
    %v3230 = vpop.f32.mrb[0].mxu0
    %v3231 = vadd.f32 0.0, %v3230
    %v3232 = vpop.f32.mrb[0].mxu0
    %3233 = vdwg.mxu0
    %3236 = vrot.lane.b32.xlu0 %v2495, 8
    %v3237 = vpop.permute.xlu0 %3236
    %3238 = vrot.lane.b32.xlu0 %v2571, 8
    %v3239 = vpop.permute.xlu0 %3238
    %3244 = vrot.lane.b32.xlu0 %v2825, 16
    %v3245 = vpop.permute.xlu0 %3244
    %3246 = vrot.lane.b32.xlu0 %v2901, 16
    %v3247 = vpop.permute.xlu0 %3246
    %3252 = vrot.lane.b32.xlu0 %v3155, 24
    %v3253 = vpop.permute.xlu0 %3252
    %3254 = vrot.lane.b32.xlu0 %v3231, 24
    %v3255 = vpop.permute.xlu0 %3254
    %v3258 = vsel %vm316, %v2165, %v3237
    %v3259 = vsel %vm316, %v2241, %v3239
    %v3260 = vsel %vm1658, %v3258, %v3245
    %v3261 = vsel %vm1658, %v3259, %v3247
    %v3262 = vsel %vm1661, %v3260, %v3253
    %v3263 = vsel %vm1661, %v3261, %v3255
    %v3264 = vld [vmem:[%s2 + $0x8] sm:$0xff]
    %v3265 = vld [vmem:[%s2 + $0x20] sm:$0xff]
    %v3266 = vld [vmem:[%s2 + $0x38] sm:$0xff]
    %v3267 = vld [vmem:[%s2 + $0x50] sm:$0xff]
    %3272 = vrot.lane.b32.xlu0 %v3264, 32
    %v3273 = vpop.permute.xlu0 %3272
    %3274 = vrot.lane.b32.xlu0 %v3265, 32
    %v3275 = vpop.permute.xlu0 %3274
    %3276 = vrot.lane.b32.xlu0 %v3266, 32
    %v3277 = vpop.permute.xlu0 %3276
    %3278 = vrot.lane.b32.xlu0 %v3267, 32
    %v3279 = vpop.permute.xlu0 %3278
    %v3285 = vsel %vm84, %v3262, 0
    %v3288 = vsel %vm84, %v3263, 0
    %3290 = vmatprep.subr.mxu0 0.0
    %3291 = vmatpush1.msra.mxu0 %v3273
    %3292 = vmatprep.subr.mxu0 0.0
    %3293 = vmatpush1.msra.mxu0 %v3275
    %3294 = vmatprep.subr.mxu0 0.0
    %3295 = vmatpush1.msra.mxu0 %v3277
    %3296 = vmatprep.subr.mxu0 0.0
    %3297 = vmatpush1.msra.mxu0 %v3279
    %3298 = vmatprep.subr.mxu0 0.0
    %3299 = vmatpush1.msra.mxu0 0.0
    %3300 = vmatprep.subr.mxu0 0.0
    %3301 = vmatpush1.msra.mxu0 0.0
    %3302 = vmatprep.subr.mxu0 0.0
    %3303 = vmatpush1.msra.mxu0 0.0
    %3304 = vmatprep.subr.mxu0 0.0
    %3305 = vmatpush1.msra.mxu0 0.0
    %3306 = vmatprep.subr.mxu0 0.0
    %3307 = vmatpush1.msra.mxu0 0.0
    %3308 = vmatprep.subr.mxu0 0.0
    %3309 = vmatpush1.msra.mxu0 0.0
    %3310 = vmatprep.subr.mxu0 0.0
    %3311 = vmatpush1.msra.mxu0 0.0
    %3312 = vmatprep.subr.mxu0 0.0
    %3313 = vmatpush1.msra.mxu0 0.0
    %3314 = vmatprep.subr.mxu0 0.0
    %3315 = vmatpush1.msra.mxu0 0.0
    %3316 = vmatprep.subr.mxu0 0.0
    %3317 = vmatpush1.msra.mxu0 0.0
    %3318 = vmatprep.subr.mxu0 0.0
    %3319 = vmatpush1.msra.mxu0 0.0
    %3320 = vmatprep.subr.mxu0 0.0
    %3321 = vmatpush1.msra.mxu0 0.0
    %3322 = vmatprep.subr.mxu0 0.0
    %3323 = vmatpush1.msra.mxu0 0.0
    %3324 = vmatprep.subr.mxu0 0.0
    %3325 = vmatpush1.msra.mxu0 0.0
    %3326 = vmatprep.subr.mxu0 0.0
    %3327 = vmatpush1.msra.mxu0 0.0
    %3328 = vmatprep.subr.mxu0 0.0
    %3329 = vmatpush1.msra.mxu0 0.0
    %3330 = vmatprep.subr.mxu0 0.0
    %3331 = vmatpush1.msra.mxu0 0.0
    %3332 = vmatprep.subr.mxu0 0.0
    %3333 = vmatpush1.msra.mxu0 0.0
    %3334 = vmatprep.subr.mxu0 0.0
    %3335 = vmatpush1.msra.mxu0 0.0
    %3336 = vmatprep.subr.mxu0 0.0
    %3337 = vmatpush1.msra.mxu0 0.0
    %3338 = vmatprep.subr.mxu0 0.0
    %3339 = vmatpush1.msra.mxu0 0.0
    %3340 = vmatprep.subr.mxu0 0.0
    %3341 = vmatpush1.msra.mxu0 0.0
    %3342 = vmatprep.subr.mxu0 0.0
    %3343 = vmatpush1.msra.mxu0 0.0
    %3344 = vmatprep.subr.mxu0 0.0
    %3345 = vmatpush1.msra.mxu0 0.0
    %3346 = vmatprep.subr.mxu0 0.0
    %3347 = vmatpush1.msra.mxu0 0.0
    %3348 = vmatprep.subr.mxu0 0.0
    %3349 = vmatpush1.msra.mxu0 0.0
    %3350 = vmatprep.subr.mxu0 0.0
    %3351 = vmatpush1.msra.mxu0 0.0
    %3352 = vmatprep.subr.mxu0 0.0
    %3353 = vmatpush1.msra.mxu0 0.0
    %3354 = vmatprep.mubr.f32.mxu0 0.0
    %3355 = vmatmul.mubr.f32.gmra.mrb[0].mxu0 %v3285
    %v3356 = vpop.f32.mrb[0].mxu0
    %v3357 = vadd.f32 0.0, %v3356
    %v3358 = vpop.f32.mrb[0].mxu0
    %3359 = vmatprep.mubr.f32.mxu0 0.0
    %3360 = vmatmul.mubr.f32.gmra.mrb[0].mxu0 %v3288
    %v3361 = vpop.f32.mrb[0].mxu0
    %v3362 = vadd.f32 0.0, %v3361
    %v3363 = vpop.f32.mrb[0].mxu0
    %3364 = vdwg.mxu0
    %v3365 = vadd.f32 %v1776, %v3357
    %v3366 = vadd.f32 %v1777, %v3362
    %v3367 = vld [vmem:[%s4 + $0x2] sm:$0x1]
    %v3369 = vlaneseq
    %v3370 = vshrl.u32 %v3369, 7
    %v3371 = vsub.s32 0, %v3370
    %v3372 = vrot.slane %v3367, %v3371
    %3373 = vrot.lane.b32.xlu0 %v3372, 32
    %v3374 = vpop.permute.xlu0 %3373
    %v3376 = vadd.f32 %v3365, %v3374
    %v3377 = vadd.f32 %v3366, %v3374
    %v3378 = vsel %vm84, %v3376, 0.0
    %3379 = vadd.xlane.f32.xlu0 %v3378
    %v3380 = vpop.xlane.xlu0 %3379
    %v3381 = vsel %vm84, %v3377, 0.0
    %3382 = vadd.xlane.f32.xlu0 %v3381
    %v3383 = vpop.xlane.xlu0 %3382
    %v3384 = vmul.f32 %v3380, %v172
    %v3385 = vmul.f32 %v3383, %v172
    %v3386 = vmul.f32 %v3376, %v3376
    %v3387 = vmul.f32 %v3377, %v3377
    %v3388 = vsel %vm84, %v3386, 0.0
    %3389 = vadd.xlane.f32.xlu0 %v3388
    %v3390 = vpop.xlane.xlu0 %3389
    %v3391 = vsel %vm84, %v3387, 0.0
    %3392 = vadd.xlane.f32.xlu0 %v3391
    %v3393 = vpop.xlane.xlu0 %3392
    %v3394 = vmul.f32 %v3390, %v172
    %v3395 = vmul.f32 %v3393, %v172
    %v3396 = vmul.f32 %v3384, %v3384
    %v3397 = vmul.f32 %v3385, %v3385
    %v3398 = vsub.f32 %v3394, %v3396
    %v3399 = vsub.f32 %v3395, %v3397
    %v3400 = vsub.f32 %v3376, %v3384
    %v3401 = vsub.f32 %v3377, %v3385
    %v3402 = vadd.f32 %v3398, 1e-05
    %v3403 = vadd.f32 %v3399, 1e-05
    %v3404 = vrsqrt.pop %v3402
    %v3405 = vrsqrt.pop %v3403
    %v3406 = vmul.f32 %v3400, %v3404
    %v3407 = vmul.f32 %v3401, %v3405
    %v3408 = vld [vmem:[%s4 + $0x3] sm:$0x1]
    %v3410 = vlaneseq
    %v3411 = vshrl.u32 %v3410, 7
    %v3412 = vsub.s32 0, %v3411
    %v3413 = vrot.slane %v3408, %v3412
    %v3415 = vmul.f32 %v3406, %v3413
    %v3416 = vmul.f32 %v3407, %v3413
    %3417 = vrot.lane.b32.xlu0 %v3413, 96
    %v3418 = vpop.permute.xlu0 %3417
    %v3420 = vadd.f32 %v3415, %v3418
    %v3421 = vadd.f32 %v3416, %v3418
    %v3422 = vld [vmem:[%s2 + $0x10] sm:$0xff]
    %v3423 = vld [vmem:[%s2 + $0x28] sm:$0xff]
    %v3424 = vld [vmem:[%s2 + $0x40] sm:$0xff]
    %v3425 = vld [vmem:[%s2 + $0x58] sm:$0xff]
    %3426 = vrot.lane.b32.xlu0 %v3413, 64
    %v3427 = vpop.permute.xlu0 %3426
    %v3430 = vsel %vm84, %v3420, 0
    %v3433 = vsel %vm84, %v3421, 0
    %3435 = vmatprep.subr.mxu0 0.0
    %3436 = vmatpush1.msra.mxu0 %v3422
    %3437 = vmatprep.subr.mxu0 0.0
    %3438 = vmatpush1.msra.mxu0 %v3423
    %3439 = vmatprep.subr.mxu0 0.0
    %3440 = vmatpush1.msra.mxu0 %v3424
    %3441 = vmatprep.subr.mxu0 0.0
    %3442 = vmatpush1.msra.mxu0 %v3425
    %3443 = vmatprep.subr.mxu0 0.0
    %3444 = vmatpush1.msra.mxu0 0.0
    %3445 = vmatprep.subr.mxu0 0.0
    %3446 = vmatpush1.msra.mxu0 0.0
    %3447 = vmatprep.subr.mxu0 0.0
    %3448 = vmatpush1.msra.mxu0 0.0
    %3449 = vmatprep.subr.mxu0 0.0
    %3450 = vmatpush1.msra.mxu0 0.0
    %3451 = vmatprep.subr.mxu0 0.0
    %3452 = vmatpush1.msra.mxu0 0.0
    %3453 = vmatprep.subr.mxu0 0.0
    %3454 = vmatpush1.msra.mxu0 0.0
    %3455 = vmatprep.subr.mxu0 0.0
    %3456 = vmatpush1.msra.mxu0 0.0
    %3457 = vmatprep.subr.mxu0 0.0
    %3458 = vmatpush1.msra.mxu0 0.0
    %3459 = vmatprep.subr.mxu0 0.0
    %3460 = vmatpush1.msra.mxu0 0.0
    %3461 = vmatprep.subr.mxu0 0.0
    %3462 = vmatpush1.msra.mxu0 0.0
    %3463 = vmatprep.subr.mxu0 0.0
    %3464 = vmatpush1.msra.mxu0 0.0
    %3465 = vmatprep.subr.mxu0 0.0
    %3466 = vmatpush1.msra.mxu0 0.0
    %3467 = vmatprep.subr.mxu0 0.0
    %3468 = vmatpush1.msra.mxu0 0.0
    %3469 = vmatprep.subr.mxu0 0.0
    %3470 = vmatpush1.msra.mxu0 0.0
    %3471 = vmatprep.subr.mxu0 0.0
    %3472 = vmatpush1.msra.mxu0 0.0
    %3473 = vmatprep.subr.mxu0 0.0
    %3474 = vmatpush1.msra.mxu0 0.0
    %3475 = vmatprep.subr.mxu0 0.0
    %3476 = vmatpush1.msra.mxu0 0.0
    %3477 = vmatprep.subr.mxu0 0.0
    %3478 = vmatpush1.msra.mxu0 0.0
    %3479 = vmatprep.subr.mxu0 0.0
    %3480 = vmatpush1.msra.mxu0 0.0
    %3481 = vmatprep.subr.mxu0 0.0
    %3482 = vmatpush1.msra.mxu0 0.0
    %3483 = vmatprep.subr.mxu0 0.0
    %3484 = vmatpush1.msra.mxu0 0.0
    %3485 = vmatprep.subr.mxu0 0.0
    %3486 = vmatpush1.msra.mxu0 0.0
    %3487 = vmatprep.subr.mxu0 0.0
    %3488 = vmatpush1.msra.mxu0 0.0
    %3489 = vmatprep.subr.mxu0 0.0
    %3490 = vmatpush1.msra.mxu0 0.0
    %3491 = vmatprep.subr.mxu0 0.0
    %3492 = vmatpush1.msra.mxu0 0.0
    %3493 = vmatprep.subr.mxu0 0.0
    %3494 = vmatpush1.msra.mxu0 0.0
    %3495 = vmatprep.subr.mxu0 0.0
    %3496 = vmatpush1.msra.mxu0 0.0
    %3497 = vmatprep.subr.mxu0 0.0
    %3498 = vmatpush1.msra.mxu0 0.0
    %3499 = vmatprep.mubr.f32.mxu0 0.0
    %3500 = vmatmul.mubr.f32.gmra.mrb[0].mxu0 %v3430
    %v3501 = vpop.f32.mrb[0].mxu0
    %v3502 = vadd.f32 %v3427, %v3501
    %v3503 = vpop.f32.mrb[0].mxu0
    %3504 = vmatprep.mubr.f32.mxu0 0.0
    %3505 = vmatmul.mubr.f32.gmra.mrb[0].mxu0 %v3433
    %v3506 = vpop.f32.mrb[0].mxu0
    %v3507 = vadd.f32 %v3427, %v3506
    %v3508 = vpop.f32.mrb[0].mxu0
    %3509 = vdwg.mxu0
    %v3510 = vmax.f32 %v3502, 0.0
    %v3511 = vmax.f32 %v3507, 0.0
    %v3512 = vld [vmem:[%s3] sm:$0xff]
    %v3513 = vld [vmem:[%s3 + $0x8] sm:$0xff]
    %v3514 = vld [vmem:[%s3 + $0x10] sm:$0xff]
    %v3515 = vld [vmem:[%s3 + $0x18] sm:$0xff]
    %v3516 = vld [vmem:[%s3 + $0x20] sm:$0xff]
    %v3517 = vld [vmem:[%s3 + $0x28] sm:$0xff]
    %v3518 = vld [vmem:[%s3 + $0x30] sm:$0xff]
    %v3519 = vld [vmem:[%s3 + $0x38] sm:$0xff]
    %v3521 = vsel %vm229, %v3510, 0
    %v3524 = vsel %vm229, %v3511, 0
    %3526 = vmatprep.subr.mxu0 0.0
    %3527 = vmatpush1.msra.mxu0 %v3512
    %3528 = vmatprep.subr.mxu0 0.0
    %3529 = vmatpush1.msra.mxu0 %v3513
    %3530 = vmatprep.subr.mxu0 0.0
    %3531 = vmatpush1.msra.mxu0 %v3514
    %3532 = vmatprep.subr.mxu0 0.0
    %3533 = vmatpush1.msra.mxu0 %v3515
    %3534 = vmatprep.subr.mxu0 0.0
    %3535 = vmatpush1.msra.mxu0 %v3516
    %3536 = vmatprep.subr.mxu0 0.0
    %3537 = vmatpush1.msra.mxu0 %v3517
    %3538 = vmatprep.subr.mxu0 0.0
    %3539 = vmatpush1.msra.mxu0 %v3518
    %3540 = vmatprep.subr.mxu0 0.0
    %3541 = vmatpush1.msra.mxu0 %v3519
    %3542 = vmatprep.subr.mxu0 0.0
    %3543 = vmatpush1.msra.mxu0 0.0
    %3544 = vmatprep.subr.mxu0 0.0
    %3545 = vmatpush1.msra.mxu0 0.0
    %3546 = vmatprep.subr.mxu0 0.0
    %3547 = vmatpush1.msra.mxu0 0.0
    %3548 = vmatprep.subr.mxu0 0.0
    %3549 = vmatpush1.msra.mxu0 0.0
    %3550 = vmatprep.subr.mxu0 0.0
    %3551 = vmatpush1.msra.mxu0 0.0
    %3552 = vmatprep.subr.mxu0 0.0
    %3553 = vmatpush1.msra.mxu0 0.0
    %3554 = vmatprep.subr.mxu0 0.0
    %3555 = vmatpush1.msra.mxu0 0.0
    %3556 = vmatprep.subr.mxu0 0.0
    %3557 = vmatpush1.msra.mxu0 0.0
    %3558 = vmatprep.subr.mxu0 0.0
    %3559 = vmatpush1.msra.mxu0 0.0
    %3560 = vmatprep.subr.mxu0 0.0
    %3561 = vmatpush1.msra.mxu0 0.0
    %3562 = vmatprep.subr.mxu0 0.0
    %3563 = vmatpush1.msra.mxu0 0.0
    %3564 = vmatprep.subr.mxu0 0.0
    %3565 = vmatpush1.msra.mxu0 0.0
    %3566 = vmatprep.subr.mxu0 0.0
    %3567 = vmatpush1.msra.mxu0 0.0
    %3568 = vmatprep.subr.mxu0 0.0
    %3569 = vmatpush1.msra.mxu0 0.0
    %3570 = vmatprep.subr.mxu0 0.0
    %3571 = vmatpush1.msra.mxu0 0.0
    %3572 = vmatprep.subr.mxu0 0.0
    %3573 = vmatpush1.msra.mxu0 0.0
    %3574 = vmatprep.subr.mxu0 0.0
    %3575 = vmatpush1.msra.mxu0 0.0
    %3576 = vmatprep.subr.mxu0 0.0
    %3577 = vmatpush1.msra.mxu0 0.0
    %3578 = vmatprep.subr.mxu0 0.0
    %3579 = vmatpush1.msra.mxu0 0.0
    %3580 = vmatprep.subr.mxu0 0.0
    %3581 = vmatpush1.msra.mxu0 0.0
    %3582 = vmatprep.subr.mxu0 0.0
    %3583 = vmatpush1.msra.mxu0 0.0
    %3584 = vmatprep.subr.mxu0 0.0
    %3585 = vmatpush1.msra.mxu0 0.0
    %3586 = vmatprep.subr.mxu0 0.0
    %3587 = vmatpush1.msra.mxu0 0.0
    %3588 = vmatprep.subr.mxu0 0.0
    %3589 = vmatpush1.msra.mxu0 0.0
    %3590 = vmatprep.mubr.f32.mxu0 0.0
    %3591 = vmatmul.mubr.f32.gmra.mrb[0].mxu0 %v3521
    %v3592 = vpop.f32.mrb[0].mxu0
    %v3593 = vadd.f32 0.0, %v3592
    %v3594 = vpop.f32.mrb[0].mxu0
    %3595 = vmatprep.mubr.f32.mxu0 0.0
    %3596 = vmatmul.mubr.f32.gmra.mrb[0].mxu0 %v3524
    %v3597 = vpop.f32.mrb[0].mxu0
    %v3598 = vadd.f32 0.0, %v3597
    %v3599 = vpop.f32.mrb[0].mxu0
    %3600 = vdwg.mxu0
    %v3601 = vadd.f32 %v3376, %v3593
    %v3602 = vadd.f32 %v3377, %v3598
    %v3603 = vld [vmem:[%s4 + $0x4] sm:$0x1]
    %v3605 = vlaneseq
    %v3606 = vshrl.u32 %v3605, 7
    %v3607 = vsub.s32 0, %v3606
    %v3608 = vrot.slane %v3603, %v3607
    %v3610 = vadd.f32 %v3601, %v3608
    %v3611 = vadd.f32 %v3602, %v3608
    %3612 = vst.msk [vmem:[#allocation7] sm:$0xff] %vm84, %v3610
    %3613 = vst.msk [vmem:[#allocation7 + $0x8] sm:$0xff] %vm84, %v3611
    // Predicated region
    $region30: #{tpu_custom_call.1} parent=1 // pred_check
      _
    $region31: #{tpu_custom_call.1} parent=1 // pred_check_branch
      %3615 = sbr.rel (0) target = $region33
    $region32: #{tpu_custom_call.1} parent=1 // pred_region
      %s3617 = ssub.s32 256, 256
      %3618 = vsyncadd [#allocation4], %s3617
      %s3619 = sshll.u32 [#allocation7], 4
      %s3620 = int_to_ptr.vmem [resolvable:$true] %s3619
      %3625 = dma.vmem_to_hbm [thread:$0]  %s3620, 256, %s5, [#allocation4], 128, 128, 8
    $region33: #{tpu_custom_call.1} parent=1 // pred_fallthru
      _
    // Predicated region
    $region34: #{tpu_custom_call.1} parent=1 // pred_check
      _
    $region35: #{tpu_custom_call.1} parent=1 // pred_check_branch
      %3627 = sbr.rel (0) target = $region37
    $region36: #{tpu_custom_call.1} parent=1 // pred_region
      %3628 = dma.done [#allocation4], 256
    $region37: #{tpu_custom_call.1} parent=1 // pred_fallthru
      _
    %3629 = vsyncpa [#allocation3], 1
    %3630 = vsyncpa [#allocation6], 1
    %3631 = vsyncpa [#allocation4], 1

</llo_original>
